<compile_context>
chip_gen: v7x
topology: tpu7x:2x2x1
jax: 0.10.0
libtpu: 0.0.40
codegen_flags: <defaults>
</compile_context>

<pallas_src>
import jax
import jax.numpy as jnp
from jax.experimental import pallas as pl
from jax.experimental.pallas import tpu as pltpu


def _autoencoder_kernel(x_ref,
                        w1_ref, b1_ref,
                        w2_ref, b2_ref,
                        w3_ref, b3_ref,
                        w4_ref, b4_ref,
                        o_ref):
    # x arrives f32; cast to bf16 in-register for the MXU (cheap VPU op).
    x = x_ref[...].astype(jnp.bfloat16)

    # encoder
    h = jnp.dot(x, w1_ref[...], preferred_element_type=jnp.float32) + b1_ref[...]
    h = jnp.maximum(h, 0.0).astype(jnp.bfloat16)
    h = jnp.dot(h, w2_ref[...], preferred_element_type=jnp.float32) + b2_ref[...]
    h = jnp.maximum(h, 0.0).astype(jnp.bfloat16)

    # decoder
    h = jnp.dot(h, w3_ref[...], preferred_element_type=jnp.float32) + b3_ref[...]
    h = jnp.maximum(h, 0.0).astype(jnp.bfloat16)
    z = jnp.dot(h, w4_ref[...], preferred_element_type=jnp.float32) + b4_ref[...]

    # sigmoid(z) = 0.5 * tanh(0.5 * z) + 0.5  -> single EUP push, stays in [0, 1]
    o_ref[...] = (0.5 * jnp.tanh(0.5 * z) + 0.5).astype(o_ref.dtype)


def _round_up(n, m):
    return ((n + m - 1) // m) * m


def _pad2(a, rows, cols):
    if a.shape == (rows, cols):
        return a
    return jnp.zeros((rows, cols), a.dtype).at[:a.shape[0], :a.shape[1]].set(a)


def _num_tensorcores():
    """1 TC/chip on v5e/v6e, 2 on v7x; feed at least one batch tile per TC."""
    try:
        kind = jax.devices()[0].device_kind.lower()
    except Exception:
        return 1
    return 2 if "v7" in kind else 1


def prepare_params(params):
    """One-time prep: pad feature dims to a lane multiple (128), cast weights to
    bf16 and biases to f32.  Call once at init, not per forward call."""
    F, H1 = params["w1"].shape
    Fp = _round_up(F, 128)
    return {
        "w1": _pad2(params["w1"], Fp, H1).astype(jnp.bfloat16),
        "b1": params["b1"].astype(jnp.float32),
        "w2": params["w2"].astype(jnp.bfloat16),
        "b2": params["b2"].astype(jnp.float32),
        "w3": params["w3"].astype(jnp.bfloat16),
        "b3": params["b3"].astype(jnp.float32),
        "w4": _pad2(params["w4"], H1, Fp).astype(jnp.bfloat16),
        "b4": _pad2(params["b4"], 1, Fp).astype(jnp.float32),
    }


def autoencoder_forward(x, prepped, *, out_dtype=jnp.float32, max_batch_tile=1024):
    """x: (B, F) float32.  prepped: output of prepare_params (padded/cast once)."""
    B, F = x.shape
    Fp, H1 = prepped["w1"].shape
    H2 = prepped["w2"].shape[1]

    # Grid shaping: one tile per TensorCore; rows rounded to a sublane multiple.
    # Per-tile footprint (weights ~1 MiB bf16 + f32 x/out tiles + intermediates)
    # stays far under the 32 MiB scoped VMEM on every generation incl. v7x.
    num_tc = _num_tensorcores()
    batch_tile = min(max_batch_tile, _round_up(pl.cdiv(B, num_tc), 8))
    Bp = _round_up(B, batch_tile)

    # No per-call dtype cast of x; only pad if shapes are not already aligned.
    x_p = _pad2(x, Bp, Fp)

    grid = (Bp // batch_tile,)

    flops = 2 * Bp * (Fp * H1 + H1 * H2 + H2 * H1 + H1 * Fp)
    bytes_accessed = (
        x_p.size * 4                                            # f32 input
        + Bp * Fp * jnp.dtype(out_dtype).itemsize               # output
        + sum(prepped[k].size * 2 for k in ("w1", "w2", "w3", "w4"))  # bf16 weights
        + sum(prepped[k].size * 4 for k in ("b1", "b2", "b3", "b4"))  # f32 biases
    )
    cost = pl.CostEstimate(flops=flops,
                           transcendentals=Bp * Fp,
                           bytes_accessed=bytes_accessed)

    def full(shape):
        # Constant index_map: block index never changes across grid steps, so the
        # pipeline keeps the weight resident in VMEM (no re-DMA per step).
        return pl.BlockSpec(shape, lambda i: (0, 0))

    out = pl.pallas_call(
        _autoencoder_kernel,
        out_shape=jax.ShapeDtypeStruct((Bp, Fp), out_dtype),
        grid_spec=pltpu.PrefetchScalarGridSpec(
            num_scalar_prefetch=0,
            grid=grid,
            in_specs=[
                pl.BlockSpec((batch_tile, Fp), lambda i: (i, 0)),   # x tile
                full((Fp, H1)), full((1, H1)),
                full((H1, H2)), full((1, H2)),
                full((H2, H1)), full((1, H1)),
                full((H1, Fp)), full((1, Fp)),
            ],
            out_specs=pl.BlockSpec((batch_tile, Fp), lambda i: (i, 0)),
        ),
        compiler_params=pltpu.CompilerParams(
            dimension_semantics=("parallel",),
            vmem_limit_bytes=32 * 1024 * 1024),
        cost_estimate=cost,
    )(x_p,
      prepped["w1"], prepped["b1"],
      prepped["w2"], prepped["b2"],
      prepped["w3"], prepped["b3"],
      prepped["w4"], prepped["b4"])

    return out[:B, :F]


def init_params(key, num_features):
    """nn.Linear-style init (uniform +/- 1/sqrt(fan_in)); weights stored as (in, out)."""
    dims = [(num_features, 512), (512, 256), (256, 512), (512, num_features)]
    params = {}
    for idx, (fan_in, fan_out) in enumerate(dims, start=1):
        key, kw, kb = jax.random.split(key, 3)
        bound = 1.0 / (fan_in ** 0.5)
        params[f"w{idx}"] = jax.random.uniform(
            kw, (fan_in, fan_out), jnp.float32, -bound, bound)
        params[f"b{idx}"] = jax.random.uniform(
            kb, (1, fan_out), jnp.float32, -bound, bound)
    return params


def reference_forward(x, p):
    h = jnp.maximum(x @ p["w1"] + p["b1"], 0.0)
    h = jnp.maximum(h @ p["w2"] + p["b2"], 0.0)
    h = jnp.maximum(h @ p["w3"] + p["b3"], 0.0)
    return jax.nn.sigmoid(h @ p["w4"] + p["b4"])


if __name__ == "__main__":
    key = jax.random.PRNGKey(0)
    k_x, k_p = jax.random.split(key)

    BATCH = 512          # 1 grid step on v5e/v6e, 2 parallel steps on v7x
    NUM_FEATURES = 256   # stands in for X_train.shape[1]; already lane-dense (x128)

    # synthetic "one-hot-ish" DNA feature matrix
    x = jax.random.uniform(k_x, (BATCH, NUM_FEATURES), jnp.float32)
    params = init_params(k_p, NUM_FEATURES)

    # one-time weight prep (pad + bf16 cast), then the fused forward
    prepped = jax.tree_util.tree_map(jax.block_until_ready, prepare_params(params))
    out = jax.block_until_ready(autoencoder_forward(x, prepped))
    ref = reference_forward(x, params)

    assert out.shape == (BATCH, NUM_FEATURES)
    assert bool(jnp.all(jnp.isfinite(out)))
    assert bool(jnp.all(out >= 0.0)) and bool(jnp.all(out <= 1.0))
    # bf16 matmuls with f32 accumulation vs the pure-f32 reference.
    assert float(jnp.max(jnp.abs(out - ref))) < 3e-2

    print("KERNEL_OK")
</pallas_src>

<mosaic_0001>
module attributes {stable_mosaic.version = 11 : i64} {
  func.func @_autoencoder_kernel(%arg0: i32, %arg1: memref<512x256xf32, #tpu.memory_space<vmem>>, %arg2: memref<256x512xbf16, #tpu.memory_space<vmem>>, %arg3: memref<1x512xf32, #tpu.memory_space<vmem>>, %arg4: memref<512x256xbf16, #tpu.memory_space<vmem>>, %arg5: memref<1x256xf32, #tpu.memory_space<vmem>>, %arg6: memref<256x512xbf16, #tpu.memory_space<vmem>>, %arg7: memref<1x512xf32, #tpu.memory_space<vmem>>, %arg8: memref<512x256xbf16, #tpu.memory_space<vmem>>, %arg9: memref<1x256xf32, #tpu.memory_space<vmem>>, %arg10: memref<512x256xf32, #tpu.memory_space<vmem>>) attributes {dimension_semantics = [#tpu.dimension_semantics<parallel>], iteration_bounds = array<i64: 1>, scalar_prefetch = 0 : i64, scratch_operands = 0 : i64, tpu.core_type = #tpu.core_type<tc>, window_params = [{transform_indices = @transform_0, window_bounds = array<i64: 512, 256>}, {pipeline_mode = #tpu.pipeline_mode<synchronous>, transform_indices = @transform_1, window_bounds = array<i64: 256, 512>}, {pipeline_mode = #tpu.pipeline_mode<synchronous>, transform_indices = @transform_2, window_bounds = array<i64: 1, 512>}, {pipeline_mode = #tpu.pipeline_mode<synchronous>, transform_indices = @transform_3, window_bounds = array<i64: 512, 256>}, {pipeline_mode = #tpu.pipeline_mode<synchronous>, transform_indices = @transform_4, window_bounds = array<i64: 1, 256>}, {pipeline_mode = #tpu.pipeline_mode<synchronous>, transform_indices = @transform_5, window_bounds = array<i64: 256, 512>}, {pipeline_mode = #tpu.pipeline_mode<synchronous>, transform_indices = @transform_6, window_bounds = array<i64: 1, 512>}, {pipeline_mode = #tpu.pipeline_mode<synchronous>, transform_indices = @transform_7, window_bounds = array<i64: 512, 256>}, {pipeline_mode = #tpu.pipeline_mode<synchronous>, transform_indices = @transform_8, window_bounds = array<i64: 1, 256>}, {transform_indices = @transform_9, window_bounds = array<i64: 512, 256>}]} {
    %c0 = arith.constant 0 : index
    %c0_0 = arith.constant 0 : index
    %0 = vector.load %arg1[%c0, %c0_0] : memref<512x256xf32, #tpu.memory_space<vmem>>, vector<512x256xf32>
    %1 = arith.truncf %0 : vector<512x256xf32> to vector<512x256xbf16>
    %c0_1 = arith.constant 0 : index
    %c0_2 = arith.constant 0 : index
    %2 = vector.load %arg2[%c0_1, %c0_2] : memref<256x512xbf16, #tpu.memory_space<vmem>>, vector<256x512xbf16>
    %cst = arith.constant dense<0.000000e+00> : vector<512x512xf32>
    %3 = tpu.matmul %1, %2, %cst {dimension_numbers = #tpu.dot_dimension_numbers<[1], [0], [0], [1], [0, 0, 1, 1], [], []>} : vector<512x256xbf16>, vector<256x512xbf16>, vector<512x512xf32> -> vector<512x512xf32>
    %c0_3 = arith.constant 0 : index
    %c0_4 = arith.constant 0 : index
    %4 = vector.load %arg3[%c0_3, %c0_4] : memref<1x512xf32, #tpu.memory_space<vmem>>, vector<1x512xf32>
    %5 = vector.broadcast %4 : vector<1x512xf32> to vector<512x512xf32>
    %6 = arith.addf %3, %5 : vector<512x512xf32>
    %cst_5 = arith.constant 0.000000e+00 : f32
    %7 = vector.broadcast %cst_5 : f32 to vector<512x512xf32>
    %8 = arith.maximumf %6, %7 : vector<512x512xf32>
    %9 = arith.truncf %8 : vector<512x512xf32> to vector<512x512xbf16>
    %c0_6 = arith.constant 0 : index
    %c0_7 = arith.constant 0 : index
    %10 = vector.load %arg4[%c0_6, %c0_7] : memref<512x256xbf16, #tpu.memory_space<vmem>>, vector<512x256xbf16>
    %cst_8 = arith.constant dense<0.000000e+00> : vector<512x256xf32>
    %11 = tpu.matmul %9, %10, %cst_8 {dimension_numbers = #tpu.dot_dimension_numbers<[1], [0], [0], [1], [0, 0, 1, 1], [], []>} : vector<512x512xbf16>, vector<512x256xbf16>, vector<512x256xf32> -> vector<512x256xf32>
    %c0_9 = arith.constant 0 : index
    %c0_10 = arith.constant 0 : index
    %12 = vector.load %arg5[%c0_9, %c0_10] : memref<1x256xf32, #tpu.memory_space<vmem>>, vector<1x256xf32>
    %13 = vector.broadcast %12 : vector<1x256xf32> to vector<512x256xf32>
    %14 = arith.addf %11, %13 : vector<512x256xf32>
    %cst_11 = arith.constant 0.000000e+00 : f32
    %15 = vector.broadcast %cst_11 : f32 to vector<512x256xf32>
    %16 = arith.maximumf %14, %15 : vector<512x256xf32>
    %17 = arith.truncf %16 : vector<512x256xf32> to vector<512x256xbf16>
    %c0_12 = arith.constant 0 : index
    %c0_13 = arith.constant 0 : index
    %18 = vector.load %arg6[%c0_12, %c0_13] : memref<256x512xbf16, #tpu.memory_space<vmem>>, vector<256x512xbf16>
    %cst_14 = arith.constant dense<0.000000e+00> : vector<512x512xf32>
    %19 = tpu.matmul %17, %18, %cst_14 {dimension_numbers = #tpu.dot_dimension_numbers<[1], [0], [0], [1], [0, 0, 1, 1], [], []>} : vector<512x256xbf16>, vector<256x512xbf16>, vector<512x512xf32> -> vector<512x512xf32>
    %c0_15 = arith.constant 0 : index
    %c0_16 = arith.constant 0 : index
    %20 = vector.load %arg7[%c0_15, %c0_16] : memref<1x512xf32, #tpu.memory_space<vmem>>, vector<1x512xf32>
    %21 = vector.broadcast %20 : vector<1x512xf32> to vector<512x512xf32>
    %22 = arith.addf %19, %21 : vector<512x512xf32>
    %cst_17 = arith.constant 0.000000e+00 : f32
    %23 = vector.broadcast %cst_17 : f32 to vector<512x512xf32>
    %24 = arith.maximumf %22, %23 : vector<512x512xf32>
    %25 = arith.truncf %24 : vector<512x512xf32> to vector<512x512xbf16>
    %c0_18 = arith.constant 0 : index
    %c0_19 = arith.constant 0 : index
    %26 = vector.load %arg8[%c0_18, %c0_19] : memref<512x256xbf16, #tpu.memory_space<vmem>>, vector<512x256xbf16>
    %cst_20 = arith.constant dense<0.000000e+00> : vector<512x256xf32>
    %27 = tpu.matmul %25, %26, %cst_20 {dimension_numbers = #tpu.dot_dimension_numbers<[1], [0], [0], [1], [0, 0, 1, 1], [], []>} : vector<512x512xbf16>, vector<512x256xbf16>, vector<512x256xf32> -> vector<512x256xf32>
    %c0_21 = arith.constant 0 : index
    %c0_22 = arith.constant 0 : index
    %28 = vector.load %arg9[%c0_21, %c0_22] : memref<1x256xf32, #tpu.memory_space<vmem>>, vector<1x256xf32>
    %29 = vector.broadcast %28 : vector<1x256xf32> to vector<512x256xf32>
    %30 = arith.addf %27, %29 : vector<512x256xf32>
    %cst_23 = arith.constant 5.000000e-01 : f32
    %31 = vector.broadcast %cst_23 : f32 to vector<512x256xf32>
    %32 = arith.mulf %31, %30 : vector<512x256xf32>
    %33 = math.tanh %32 : vector<512x256xf32>
    %cst_24 = arith.constant 5.000000e-01 : f32
    %34 = vector.broadcast %cst_24 : f32 to vector<512x256xf32>
    %35 = arith.mulf %34, %33 : vector<512x256xf32>
    %cst_25 = arith.constant 5.000000e-01 : f32
    %36 = vector.broadcast %cst_25 : f32 to vector<512x256xf32>
    %37 = arith.addf %35, %36 : vector<512x256xf32>
    %c0_26 = arith.constant 0 : index
    %c0_27 = arith.constant 0 : index
    %38 = vector.load %arg10[%c0_26, %c0_27] : memref<512x256xf32, #tpu.memory_space<vmem>>, vector<512x256xf32>
    tpu.vector_store %arg10[%c0_26, %c0_27], %37 {strides = array<i32>} : memref<512x256xf32, #tpu.memory_space<vmem>>, vector<512x256xf32>,
    return
  }
  func.func @transform_0(%arg0: i32) -> (i32, i32) {
    %c0_i32 = arith.constant 0 : i32
    %c0_i32_0 = arith.constant 0 : i32
    return %arg0, %c0_i32 : i32, i32
  }
  func.func @transform_1(%arg0: i32) -> (i32, i32) {
    %c0_i32 = arith.constant 0 : i32
    %c0_i32_0 = arith.constant 0 : i32
    %c0_i32_1 = arith.constant 0 : i32
    return %c0_i32, %c0_i32_0 : i32, i32
  }
  func.func @transform_2(%arg0: i32) -> (i32, i32) {
    %c0_i32 = arith.constant 0 : i32
    %c0_i32_0 = arith.constant 0 : i32
    %c0_i32_1 = arith.constant 0 : i32
    return %c0_i32, %c0_i32_0 : i32, i32
  }
  func.func @transform_3(%arg0: i32) -> (i32, i32) {
    %c0_i32 = arith.constant 0 : i32
    %c0_i32_0 = arith.constant 0 : i32
    %c0_i32_1 = arith.constant 0 : i32
    return %c0_i32, %c0_i32_0 : i32, i32
  }
  func.func @transform_4(%arg0: i32) -> (i32, i32) {
    %c0_i32 = arith.constant 0 : i32
    %c0_i32_0 = arith.constant 0 : i32
    %c0_i32_1 = arith.constant 0 : i32
    return %c0_i32, %c0_i32_0 : i32, i32
  }
  func.func @transform_5(%arg0: i32) -> (i32, i32) {
    %c0_i32 = arith.constant 0 : i32
    %c0_i32_0 = arith.constant 0 : i32
    %c0_i32_1 = arith.constant 0 : i32
    return %c0_i32, %c0_i32_0 : i32, i32
  }
  func.func @transform_6(%arg0: i32) -> (i32, i32) {
    %c0_i32 = arith.constant 0 : i32
    %c0_i32_0 = arith.constant 0 : i32
    %c0_i32_1 = arith.constant 0 : i32
    return %c0_i32, %c0_i32_0 : i32, i32
  }
  func.func @transform_7(%arg0: i32) -> (i32, i32) {
    %c0_i32 = arith.constant 0 : i32
    %c0_i32_0 = arith.constant 0 : i32
    %c0_i32_1 = arith.constant 0 : i32
    return %c0_i32, %c0_i32_0 : i32, i32
  }
  func.func @transform_8(%arg0: i32) -> (i32, i32) {
    %c0_i32 = arith.constant 0 : i32
    %c0_i32_0 = arith.constant 0 : i32
    %c0_i32_1 = arith.constant 0 : i32
    return %c0_i32, %c0_i32_0 : i32, i32
  }
  func.func @transform_9(%arg0: i32) -> (i32, i32) {
    %c0_i32 = arith.constant 0 : i32
    %c0_i32_0 = arith.constant 0 : i32
    return %arg0, %c0_i32 : i32, i32
  }
}

</mosaic_0001>

<llo_original>
// kernel: tpu_custom_call.1
$region0: #{tpu_custom_call.1}
  #allocation0 [shape = 'u32[]', space=smem, size = 0x4, offset = 0x4, fixed_abs, tag = 'smem constant byte address 0x4 - core index']
  #allocation1 [shape = 'u32[144,128]{1,0:T(1,128)}', space=vmem, size = 0x12000, scoped, tag = 'internal scratch']
  %s0 = inlined_call_operand.hbm [shape: f32[512,256], index: 0, kind: input, shape index: {}]
  %s1 = inlined_call_operand.hbm [shape: bf16[256,512], index: 1, kind: input, shape index: {}]
  %s2 = inlined_call_operand.vmem [shape: f32[1,512], index: 2, kind: input, shape index: {}]
  %s3 = inlined_call_operand.hbm [shape: bf16[512,256], index: 3, kind: input, shape index: {}]
  %s4 = inlined_call_operand.vmem [shape: f32[1,256], index: 4, kind: input, shape index: {}]
  %s5 = inlined_call_operand.hbm [shape: bf16[256,512], index: 5, kind: input, shape index: {}]
  %s6 = inlined_call_operand.vmem [shape: f32[1,512], index: 6, kind: input, shape index: {}]
  %s7 = inlined_call_operand.hbm [shape: bf16[512,256], index: 7, kind: input, shape index: {}]
  %s8 = inlined_call_operand.vmem [shape: f32[1,256], index: 8, kind: input, shape index: {}]
  %s9 = inlined_call_operand.hbm [shape: f32[512,256], index: 9, kind: output, shape index: {}]
  %s10 = sld [smem:[#allocation0]]
  $region66: #{tpu_custom_call.1} parent=0
    _
  %s12 = ssub.s32 1, %s10
  %s13 = scalar_select 0, %s12, %s10
  $region1: #{tpu_custom_call.1} parent=0
    #allocation2 [shape = 'u8[524288]{0}', space=vmem, size = 0x80000, scoped, tag = 'input window, operand 0, single buffered']
    #allocation3 [shape = 's32[1]{0}', space=sflag, size = 0x4, scoped, tag = 'scoped memory for tpu_custom_call.1']
    #allocation4 [shape = 's32[1]{0}', space=sflag, size = 0x4, scoped, tag = 'scoped memory for tpu_custom_call.1']
    #allocation5 [shape = 'u8[262144]{0}', space=vmem, size = 0x40000, scoped, tag = 'input window, operand 1, single buffered']
    #allocation6 [shape = 's32[1]{0}', space=sflag, size = 0x4, scoped, tag = 'scoped memory for tpu_custom_call.1']
    #allocation7 [shape = 'u8[262144]{0}', space=vmem, size = 0x40000, scoped, tag = 'input window, operand 3, single buffered']
    #allocation8 [shape = 'u8[262144]{0}', space=vmem, size = 0x40000, scoped, tag = 'input window, operand 5, single buffered']
    #allocation9 [shape = 's32[1]{0}', space=sflag, size = 0x4, scoped, tag = 'scoped memory for tpu_custom_call.1']
    #allocation10 [shape = 'u8[262144]{0}', space=vmem, size = 0x40000, scoped, tag = 'input window, operand 7, single buffered']
    #allocation11 [shape = 'u8[524288]{0}', space=vmem, size = 0x80000, scoped, tag = 'output window, operand 0, single buffered']
    %14 = vsyncpa [#allocation3], 0
    %15 = vsyncpa [#allocation6], 0
    %16 = vsyncpa [#allocation9], 0
    %17 = vsyncpa [#allocation4], 0
    // Predicated region
    $region2: #{tpu_custom_call.1} parent=1 // pred_check
      _
    $region3: #{tpu_custom_call.1} parent=1 // pred_check_branch
      %19 = sbr.rel (0) target = $region5
    $region4: #{tpu_custom_call.1} parent=1 // pred_region
      %s21 = ssub.s32 16384, 16384
      %22 = vsyncadd [#allocation3], %s21
      %s23 = sshll.u32 [#allocation2], 4
      %s24 = int_to_ptr.vmem [resolvable:$true] %s23
      %29 = dma.hbm_to_vmem [thread:$0]  %s0, 16384, %s24, [#allocation3], 256, 256, 16
    $region5: #{tpu_custom_call.1} parent=1 // pred_fallthru
      _
    // Predicated region
    $region6: #{tpu_custom_call.1} parent=1 // pred_check
      _
    $region7: #{tpu_custom_call.1} parent=1 // pred_check_branch
      %31 = sbr.rel (0) target = $region9
    $region8: #{tpu_custom_call.1} parent=1 // pred_region
      %s33 = ssub.s32 8192, 8192
      %34 = vsyncadd [#allocation6], %s33
      %s35 = sshll.u32 [#allocation5], 4
      %s36 = int_to_ptr.vmem [resolvable:$true] %s35
      %41 = dma.hbm_to_vmem [thread:$0]  %s1, 8192, %s36, [#allocation6], 256, 256, 16
    $region9: #{tpu_custom_call.1} parent=1 // pred_fallthru
      _
    // Predicated region
    $region10: #{tpu_custom_call.1} parent=1 // pred_check
      _
    $region11: #{tpu_custom_call.1} parent=1 // pred_check_branch
      %43 = sbr.rel (0) target = $region13
    $region12: #{tpu_custom_call.1} parent=1 // pred_region
      _
    $region13: #{tpu_custom_call.1} parent=1 // pred_fallthru
      _
    // Predicated region
    $region14: #{tpu_custom_call.1} parent=1 // pred_check
      _
    $region15: #{tpu_custom_call.1} parent=1 // pred_check_branch
      %45 = sbr.rel (0) target = $region17
    $region16: #{tpu_custom_call.1} parent=1 // pred_region
      %s47 = ssub.s32 8192, 8192
      %48 = vsyncadd [#allocation6], %s47
      %s49 = sshll.u32 [#allocation7], 4
      %s50 = int_to_ptr.vmem [resolvable:$true] %s49
      %55 = dma.hbm_to_vmem [thread:$0]  %s3, 8192, %s50, [#allocation6], 128, 128, 8
    $region17: #{tpu_custom_call.1} parent=1 // pred_fallthru
      _
    // Predicated region
    $region18: #{tpu_custom_call.1} parent=1 // pred_check
      _
    $region19: #{tpu_custom_call.1} parent=1 // pred_check_branch
      %57 = sbr.rel (0) target = $region21
    $region20: #{tpu_custom_call.1} parent=1 // pred_region
      _
    $region21: #{tpu_custom_call.1} parent=1 // pred_fallthru
      _
    // Predicated region
    $region22: #{tpu_custom_call.1} parent=1 // pred_check
      _
    $region23: #{tpu_custom_call.1} parent=1 // pred_check_branch
      %59 = sbr.rel (0) target = $region25
    $region24: #{tpu_custom_call.1} parent=1 // pred_region
      %s61 = ssub.s32 8192, 8192
      %62 = vsyncadd [#allocation9], %s61
      %s63 = sshll.u32 [#allocation8], 4
      %s64 = int_to_ptr.vmem [resolvable:$true] %s63
      %69 = dma.hbm_to_vmem [thread:$0]  %s5, 8192, %s64, [#allocation9], 256, 256, 16
    $region25: #{tpu_custom_call.1} parent=1 // pred_fallthru
      _
    // Predicated region
    $region26: #{tpu_custom_call.1} parent=1 // pred_check
      _
    $region27: #{tpu_custom_call.1} parent=1 // pred_check_branch
      %71 = sbr.rel (0) target = $region29
    $region28: #{tpu_custom_call.1} parent=1 // pred_region
      _
    $region29: #{tpu_custom_call.1} parent=1 // pred_fallthru
      _
    // Predicated region
    $region30: #{tpu_custom_call.1} parent=1 // pred_check
      _
    $region31: #{tpu_custom_call.1} parent=1 // pred_check_branch
      %73 = sbr.rel (0) target = $region33
    $region32: #{tpu_custom_call.1} parent=1 // pred_region
      %s75 = ssub.s32 8192, 8192
      %76 = vsyncadd [#allocation9], %s75
      %s77 = sshll.u32 [#allocation10], 4
      %s78 = int_to_ptr.vmem [resolvable:$true] %s77
      %83 = dma.hbm_to_vmem [thread:$0]  %s7, 8192, %s78, [#allocation9], 128, 128, 8
    $region33: #{tpu_custom_call.1} parent=1 // pred_fallthru
      _
    // Predicated region
    $region34: #{tpu_custom_call.1} parent=1 // pred_check
      _
    $region35: #{tpu_custom_call.1} parent=1 // pred_check_branch
      %85 = sbr.rel (0) target = $region37
    $region36: #{tpu_custom_call.1} parent=1 // pred_region
      _
    $region37: #{tpu_custom_call.1} parent=1 // pred_fallthru
      _
    // Predicated region
    $region38: #{tpu_custom_call.1} parent=1 // pred_check
      _
    $region39: #{tpu_custom_call.1} parent=1 // pred_check_branch
      %87 = sbr.rel (0) target = $region41
    $region40: #{tpu_custom_call.1} parent=1 // pred_region
      %88 = dma.done [#allocation3], 16384
    $region41: #{tpu_custom_call.1} parent=1 // pred_fallthru
      _
    // Predicated region
    $region42: #{tpu_custom_call.1} parent=1 // pred_check
      _
    $region43: #{tpu_custom_call.1} parent=1 // pred_check_branch
      %90 = sbr.rel (0) target = $region45
    $region44: #{tpu_custom_call.1} parent=1 // pred_region
      %91 = dma.done [#allocation6], 8192
    $region45: #{tpu_custom_call.1} parent=1 // pred_fallthru
      _
    // Predicated region
    $region46: #{tpu_custom_call.1} parent=1 // pred_check
      _
    $region47: #{tpu_custom_call.1} parent=1 // pred_check_branch
      %93 = sbr.rel (0) target = $region49
    $region48: #{tpu_custom_call.1} parent=1 // pred_region
      %94 = dma.done [#allocation6], 8192
    $region49: #{tpu_custom_call.1} parent=1 // pred_fallthru
      _
    // Predicated region
    $region50: #{tpu_custom_call.1} parent=1 // pred_check
      _
    $region51: #{tpu_custom_call.1} parent=1 // pred_check_branch
      %96 = sbr.rel (0) target = $region53
    $region52: #{tpu_custom_call.1} parent=1 // pred_region
      %97 = dma.done [#allocation9], 8192
    $region53: #{tpu_custom_call.1} parent=1 // pred_fallthru
      _
    // Predicated region
    $region54: #{tpu_custom_call.1} parent=1 // pred_check
      _
    $region55: #{tpu_custom_call.1} parent=1 // pred_check_branch
      %99 = sbr.rel (0) target = $region57
    $region56: #{tpu_custom_call.1} parent=1 // pred_region
      %100 = dma.done [#allocation9], 8192
    $region57: #{tpu_custom_call.1} parent=1 // pred_fallthru
      _
    %v101 = vld [vmem:[#allocation2] sm:$0xff]
    %v102 = vld [vmem:[#allocation2 + $0x8] sm:$0xff]
    %v103 = vld [vmem:[#allocation2 + $0x10] sm:$0xff]
    %v104 = vld [vmem:[#allocation2 + $0x18] sm:$0xff]
    %v105 = vld [vmem:[#allocation2 + $0x20] sm:$0xff]
    %v106 = vld [vmem:[#allocation2 + $0x28] sm:$0xff]
    %v107 = vld [vmem:[#allocation2 + $0x30] sm:$0xff]
    %v108 = vld [vmem:[#allocation2 + $0x38] sm:$0xff]
    %v109 = vld [vmem:[#allocation2 + $0x40] sm:$0xff]
    %v110 = vld [vmem:[#allocation2 + $0x48] sm:$0xff]
    %v111 = vld [vmem:[#allocation2 + $0x50] sm:$0xff]
    %v112 = vld [vmem:[#allocation2 + $0x58] sm:$0xff]
    %v113 = vld [vmem:[#allocation2 + $0x60] sm:$0xff]
    %v114 = vld [vmem:[#allocation2 + $0x68] sm:$0xff]
    %v115 = vld [vmem:[#allocation2 + $0x70] sm:$0xff]
    %v116 = vld [vmem:[#allocation2 + $0x78] sm:$0xff]
    %v117 = vld [vmem:[#allocation2 + $0x80] sm:$0xff]
    %v118 = vld [vmem:[#allocation2 + $0x88] sm:$0xff]
    %v119 = vld [vmem:[#allocation2 + $0x90] sm:$0xff]
    %v120 = vld [vmem:[#allocation2 + $0x98] sm:$0xff]
    %v121 = vld [vmem:[#allocation2 + $0xa0] sm:$0xff]
    %v122 = vld [vmem:[#allocation2 + $0xa8] sm:$0xff]
    %v123 = vld [vmem:[#allocation2 + $0xb0] sm:$0xff]
    %v124 = vld [vmem:[#allocation2 + $0xb8] sm:$0xff]
    %v125 = vld [vmem:[#allocation2 + $0xc0] sm:$0xff]
    %v126 = vld [vmem:[#allocation2 + $0xc8] sm:$0xff]
    %v127 = vld [vmem:[#allocation2 + $0xd0] sm:$0xff]
    %v128 = vld [vmem:[#allocation2 + $0xd8] sm:$0xff]
    %v129 = vld [vmem:[#allocation2 + $0xe0] sm:$0xff]
    %v130 = vld [vmem:[#allocation2 + $0xe8] sm:$0xff]
    %v131 = vld [vmem:[#allocation2 + $0xf0] sm:$0xff]
    %v132 = vld [vmem:[#allocation2 + $0xf8] sm:$0xff]
    %v133 = vld [vmem:[#allocation2 + $0x100] sm:$0xff]
    %v134 = vld [vmem:[#allocation2 + $0x108] sm:$0xff]
    %v135 = vld [vmem:[#allocation2 + $0x110] sm:$0xff]
    %v136 = vld [vmem:[#allocation2 + $0x118] sm:$0xff]
    %v137 = vld [vmem:[#allocation2 + $0x120] sm:$0xff]
    %v138 = vld [vmem:[#allocation2 + $0x128] sm:$0xff]
    %v139 = vld [vmem:[#allocation2 + $0x130] sm:$0xff]
    %v140 = vld [vmem:[#allocation2 + $0x138] sm:$0xff]
    %v141 = vld [vmem:[#allocation2 + $0x140] sm:$0xff]
    %v142 = vld [vmem:[#allocation2 + $0x148] sm:$0xff]
    %v143 = vld [vmem:[#allocation2 + $0x150] sm:$0xff]
    %v144 = vld [vmem:[#allocation2 + $0x158] sm:$0xff]
    %v145 = vld [vmem:[#allocation2 + $0x160] sm:$0xff]
    %v146 = vld [vmem:[#allocation2 + $0x168] sm:$0xff]
    %v147 = vld [vmem:[#allocation2 + $0x170] sm:$0xff]
    %v148 = vld [vmem:[#allocation2 + $0x178] sm:$0xff]
    %v149 = vld [vmem:[#allocation2 + $0x180] sm:$0xff]
    %v150 = vld [vmem:[#allocation2 + $0x188] sm:$0xff]
    %v151 = vld [vmem:[#allocation2 + $0x190] sm:$0xff]
    %v152 = vld [vmem:[#allocation2 + $0x198] sm:$0xff]
    %v153 = vld [vmem:[#allocation2 + $0x1a0] sm:$0xff]
    %v154 = vld [vmem:[#allocation2 + $0x1a8] sm:$0xff]
    %v155 = vld [vmem:[#allocation2 + $0x1b0] sm:$0xff]
    %v156 = vld [vmem:[#allocation2 + $0x1b8] sm:$0xff]
    %v157 = vld [vmem:[#allocation2 + $0x1c0] sm:$0xff]
    %v158 = vld [vmem:[#allocation2 + $0x1c8] sm:$0xff]
    %v159 = vld [vmem:[#allocation2 + $0x1d0] sm:$0xff]
    %v160 = vld [vmem:[#allocation2 + $0x1d8] sm:$0xff]
    %v161 = vld [vmem:[#allocation2 + $0x1e0] sm:$0xff]
    %v162 = vld [vmem:[#allocation2 + $0x1e8] sm:$0xff]
    %v163 = vld [vmem:[#allocation2 + $0x1f0] sm:$0xff]
    %v164 = vld [vmem:[#allocation2 + $0x1f8] sm:$0xff]
    %v165 = vld [vmem:[#allocation2 + $0x200] sm:$0xff]
    %v166 = vld [vmem:[#allocation2 + $0x208] sm:$0xff]
    %v167 = vld [vmem:[#allocation2 + $0x210] sm:$0xff]
    %v168 = vld [vmem:[#allocation2 + $0x218] sm:$0xff]
    %v169 = vld [vmem:[#allocation2 + $0x220] sm:$0xff]
    %v170 = vld [vmem:[#allocation2 + $0x228] sm:$0xff]
    %v171 = vld [vmem:[#allocation2 + $0x230] sm:$0xff]
    %v172 = vld [vmem:[#allocation2 + $0x238] sm:$0xff]
    %v173 = vld [vmem:[#allocation2 + $0x240] sm:$0xff]
    %v174 = vld [vmem:[#allocation2 + $0x248] sm:$0xff]
    %v175 = vld [vmem:[#allocation2 + $0x250] sm:$0xff]
    %v176 = vld [vmem:[#allocation2 + $0x258] sm:$0xff]
    %v177 = vld [vmem:[#allocation2 + $0x260] sm:$0xff]
    %v178 = vld [vmem:[#allocation2 + $0x268] sm:$0xff]
    %v179 = vld [vmem:[#allocation2 + $0x270] sm:$0xff]
    %v180 = vld [vmem:[#allocation2 + $0x278] sm:$0xff]
    %v181 = vld [vmem:[#allocation2 + $0x280] sm:$0xff]
    %v182 = vld [vmem:[#allocation2 + $0x288] sm:$0xff]
    %v183 = vld [vmem:[#allocation2 + $0x290] sm:$0xff]
    %v184 = vld [vmem:[#allocation2 + $0x298] sm:$0xff]
    %v185 = vld [vmem:[#allocation2 + $0x2a0] sm:$0xff]
    %v186 = vld [vmem:[#allocation2 + $0x2a8] sm:$0xff]
    %v187 = vld [vmem:[#allocation2 + $0x2b0] sm:$0xff]
    %v188 = vld [vmem:[#allocation2 + $0x2b8] sm:$0xff]
    %v189 = vld [vmem:[#allocation2 + $0x2c0] sm:$0xff]
    %v190 = vld [vmem:[#allocation2 + $0x2c8] sm:$0xff]
    %v191 = vld [vmem:[#allocation2 + $0x2d0] sm:$0xff]
    %v192 = vld [vmem:[#allocation2 + $0x2d8] sm:$0xff]
    %v193 = vld [vmem:[#allocation2 + $0x2e0] sm:$0xff]
    %v194 = vld [vmem:[#allocation2 + $0x2e8] sm:$0xff]
    %v195 = vld [vmem:[#allocation2 + $0x2f0] sm:$0xff]
    %v196 = vld [vmem:[#allocation2 + $0x2f8] sm:$0xff]
    %v197 = vld [vmem:[#allocation2 + $0x300] sm:$0xff]
    %v198 = vld [vmem:[#allocation2 + $0x308] sm:$0xff]
    %v199 = vld [vmem:[#allocation2 + $0x310] sm:$0xff]
    %v200 = vld [vmem:[#allocation2 + $0x318] sm:$0xff]
    %v201 = vld [vmem:[#allocation2 + $0x320] sm:$0xff]
    %v202 = vld [vmem:[#allocation2 + $0x328] sm:$0xff]
    %v203 = vld [vmem:[#allocation2 + $0x330] sm:$0xff]
    %v204 = vld [vmem:[#allocation2 + $0x338] sm:$0xff]
    %v205 = vld [vmem:[#allocation2 + $0x340] sm:$0xff]
    %v206 = vld [vmem:[#allocation2 + $0x348] sm:$0xff]
    %v207 = vld [vmem:[#allocation2 + $0x350] sm:$0xff]
    %v208 = vld [vmem:[#allocation2 + $0x358] sm:$0xff]
    %v209 = vld [vmem:[#allocation2 + $0x360] sm:$0xff]
    %v210 = vld [vmem:[#allocation2 + $0x368] sm:$0xff]
    %v211 = vld [vmem:[#allocation2 + $0x370] sm:$0xff]
    %v212 = vld [vmem:[#allocation2 + $0x378] sm:$0xff]
    %v213 = vld [vmem:[#allocation2 + $0x380] sm:$0xff]
    %v214 = vld [vmem:[#allocation2 + $0x388] sm:$0xff]
    %v215 = vld [vmem:[#allocation2 + $0x390] sm:$0xff]
    %v216 = vld [vmem:[#allocation2 + $0x398] sm:$0xff]
    %v217 = vld [vmem:[#allocation2 + $0x3a0] sm:$0xff]
    %v218 = vld [vmem:[#allocation2 + $0x3a8] sm:$0xff]
    %v219 = vld [vmem:[#allocation2 + $0x3b0] sm:$0xff]
    %v220 = vld [vmem:[#allocation2 + $0x3b8] sm:$0xff]
    %v221 = vld [vmem:[#allocation2 + $0x3c0] sm:$0xff]
    %v222 = vld [vmem:[#allocation2 + $0x3c8] sm:$0xff]
    %v223 = vld [vmem:[#allocation2 + $0x3d0] sm:$0xff]
    %v224 = vld [vmem:[#allocation2 + $0x3d8] sm:$0xff]
    %v225 = vld [vmem:[#allocation2 + $0x3e0] sm:$0xff]
    %v226 = vld [vmem:[#allocation2 + $0x3e8] sm:$0xff]
    %v227 = vld [vmem:[#allocation2 + $0x3f0] sm:$0xff]
    %v228 = vld [vmem:[#allocation2 + $0x3f8] sm:$0xff]
    %v229 = vpack.c.bf16 %v103, %v101
    %v230 = vpack.c.bf16 %v104, %v102
    %v231 = vpack.c.bf16 %v107, %v105
    %v232 = vpack.c.bf16 %v108, %v106
    %v233 = vpack.c.bf16 %v111, %v109
    %v234 = vpack.c.bf16 %v112, %v110
    %v235 = vpack.c.bf16 %v115, %v113
    %v236 = vpack.c.bf16 %v116, %v114
    %v237 = vpack.c.bf16 %v119, %v117
    %v238 = vpack.c.bf16 %v120, %v118
    %v239 = vpack.c.bf16 %v123, %v121
    %v240 = vpack.c.bf16 %v124, %v122
    %v241 = vpack.c.bf16 %v127, %v125
    %v242 = vpack.c.bf16 %v128, %v126
    %v243 = vpack.c.bf16 %v131, %v129
    %v244 = vpack.c.bf16 %v132, %v130
    %v245 = vpack.c.bf16 %v135, %v133
    %v246 = vpack.c.bf16 %v136, %v134
    %v247 = vpack.c.bf16 %v139, %v137
    %v248 = vpack.c.bf16 %v140, %v138
    %v249 = vpack.c.bf16 %v143, %v141
    %v250 = vpack.c.bf16 %v144, %v142
    %v251 = vpack.c.bf16 %v147, %v145
    %v252 = vpack.c.bf16 %v148, %v146
    %v253 = vpack.c.bf16 %v151, %v149
    %v254 = vpack.c.bf16 %v152, %v150
    %v255 = vpack.c.bf16 %v155, %v153
    %v256 = vpack.c.bf16 %v156, %v154
    %v257 = vpack.c.bf16 %v159, %v157
    %v258 = vpack.c.bf16 %v160, %v158
    %v259 = vpack.c.bf16 %v163, %v161
    %v260 = vpack.c.bf16 %v164, %v162
    %v261 = vpack.c.bf16 %v167, %v165
    %v262 = vpack.c.bf16 %v168, %v166
    %v263 = vpack.c.bf16 %v171, %v169
    %v264 = vpack.c.bf16 %v172, %v170
    %v265 = vpack.c.bf16 %v175, %v173
    %v266 = vpack.c.bf16 %v176, %v174
    %v267 = vpack.c.bf16 %v179, %v177
    %v268 = vpack.c.bf16 %v180, %v178
    %v269 = vpack.c.bf16 %v183, %v181
    %v270 = vpack.c.bf16 %v184, %v182
    %v271 = vpack.c.bf16 %v187, %v185
    %v272 = vpack.c.bf16 %v188, %v186
    %v273 = vpack.c.bf16 %v191, %v189
    %v274 = vpack.c.bf16 %v192, %v190
    %v275 = vpack.c.bf16 %v195, %v193
    %v276 = vpack.c.bf16 %v196, %v194
    %v277 = vpack.c.bf16 %v199, %v197
    %v278 = vpack.c.bf16 %v200, %v198
    %v279 = vpack.c.bf16 %v203, %v201
    %v280 = vpack.c.bf16 %v204, %v202
    %v281 = vpack.c.bf16 %v207, %v205
    %v282 = vpack.c.bf16 %v208, %v206
    %v283 = vpack.c.bf16 %v211, %v209
    %v284 = vpack.c.bf16 %v212, %v210
    %v285 = vpack.c.bf16 %v215, %v213
    %v286 = vpack.c.bf16 %v216, %v214
    %v287 = vpack.c.bf16 %v219, %v217
    %v288 = vpack.c.bf16 %v220, %v218
    %v289 = vpack.c.bf16 %v223, %v221
    %v290 = vpack.c.bf16 %v224, %v222
    %v291 = vpack.c.bf16 %v227, %v225
    %v292 = vpack.c.bf16 %v228, %v226
    %v293 = vld [vmem:[#allocation5] sm:$0xff]
    %v294 = vld [vmem:[#allocation5 + $0x8] sm:$0xff]
    %v295 = vld [vmem:[#allocation5 + $0x10] sm:$0xff]
    %v296 = vld [vmem:[#allocation5 + $0x18] sm:$0xff]
    %v297 = vld [vmem:[#allocation5 + $0x20] sm:$0xff]
    %v298 = vld [vmem:[#allocation5 + $0x28] sm:$0xff]
    %v299 = vld [vmem:[#allocation5 + $0x30] sm:$0xff]
    %v300 = vld [vmem:[#allocation5 + $0x38] sm:$0xff]
    %v301 = vld [vmem:[#allocation5 + $0x40] sm:$0xff]
    %v302 = vld [vmem:[#allocation5 + $0x48] sm:$0xff]
    %v303 = vld [vmem:[#allocation5 + $0x50] sm:$0xff]
    %v304 = vld [vmem:[#allocation5 + $0x58] sm:$0xff]
    %v305 = vld [vmem:[#allocation5 + $0x60] sm:$0xff]
    %v306 = vld [vmem:[#allocation5 + $0x68] sm:$0xff]
    %v307 = vld [vmem:[#allocation5 + $0x70] sm:$0xff]
    %v308 = vld [vmem:[#allocation5 + $0x78] sm:$0xff]
    %v309 = vld [vmem:[#allocation5 + $0x80] sm:$0xff]
    %v310 = vld [vmem:[#allocation5 + $0x88] sm:$0xff]
    %v311 = vld [vmem:[#allocation5 + $0x90] sm:$0xff]
    %v312 = vld [vmem:[#allocation5 + $0x98] sm:$0xff]
    %v313 = vld [vmem:[#allocation5 + $0xa0] sm:$0xff]
    %v314 = vld [vmem:[#allocation5 + $0xa8] sm:$0xff]
    %v315 = vld [vmem:[#allocation5 + $0xb0] sm:$0xff]
    %v316 = vld [vmem:[#allocation5 + $0xb8] sm:$0xff]
    %v317 = vld [vmem:[#allocation5 + $0xc0] sm:$0xff]
    %v318 = vld [vmem:[#allocation5 + $0xc8] sm:$0xff]
    %v319 = vld [vmem:[#allocation5 + $0xd0] sm:$0xff]
    %v320 = vld [vmem:[#allocation5 + $0xd8] sm:$0xff]
    %v321 = vld [vmem:[#allocation5 + $0xe0] sm:$0xff]
    %v322 = vld [vmem:[#allocation5 + $0xe8] sm:$0xff]
    %v323 = vld [vmem:[#allocation5 + $0xf0] sm:$0xff]
    %v324 = vld [vmem:[#allocation5 + $0xf8] sm:$0xff]
    %v325 = vld [vmem:[#allocation5 + $0x100] sm:$0xff]
    %v326 = vld [vmem:[#allocation5 + $0x108] sm:$0xff]
    %v327 = vld [vmem:[#allocation5 + $0x110] sm:$0xff]
    %v328 = vld [vmem:[#allocation5 + $0x118] sm:$0xff]
    %v329 = vld [vmem:[#allocation5 + $0x120] sm:$0xff]
    %v330 = vld [vmem:[#allocation5 + $0x128] sm:$0xff]
    %v331 = vld [vmem:[#allocation5 + $0x130] sm:$0xff]
    %v332 = vld [vmem:[#allocation5 + $0x138] sm:$0xff]
    %v333 = vld [vmem:[#allocation5 + $0x140] sm:$0xff]
    %v334 = vld [vmem:[#allocation5 + $0x148] sm:$0xff]
    %v335 = vld [vmem:[#allocation5 + $0x150] sm:$0xff]
    %v336 = vld [vmem:[#allocation5 + $0x158] sm:$0xff]
    %v337 = vld [vmem:[#allocation5 + $0x160] sm:$0xff]
    %v338 = vld [vmem:[#allocation5 + $0x168] sm:$0xff]
    %v339 = vld [vmem:[#allocation5 + $0x170] sm:$0xff]
    %v340 = vld [vmem:[#allocation5 + $0x178] sm:$0xff]
    %v341 = vld [vmem:[#allocation5 + $0x180] sm:$0xff]
    %v342 = vld [vmem:[#allocation5 + $0x188] sm:$0xff]
    %v343 = vld [vmem:[#allocation5 + $0x190] sm:$0xff]
    %v344 = vld [vmem:[#allocation5 + $0x198] sm:$0xff]
    %v345 = vld [vmem:[#allocation5 + $0x1a0] sm:$0xff]
    %v346 = vld [vmem:[#allocation5 + $0x1a8] sm:$0xff]
    %v347 = vld [vmem:[#allocation5 + $0x1b0] sm:$0xff]
    %v348 = vld [vmem:[#allocation5 + $0x1b8] sm:$0xff]
    %v349 = vld [vmem:[#allocation5 + $0x1c0] sm:$0xff]
    %v350 = vld [vmem:[#allocation5 + $0x1c8] sm:$0xff]
    %v351 = vld [vmem:[#allocation5 + $0x1d0] sm:$0xff]
    %v352 = vld [vmem:[#allocation5 + $0x1d8] sm:$0xff]
    %v353 = vld [vmem:[#allocation5 + $0x1e0] sm:$0xff]
    %v354 = vld [vmem:[#allocation5 + $0x1e8] sm:$0xff]
    %v355 = vld [vmem:[#allocation5 + $0x1f0] sm:$0xff]
    %v356 = vld [vmem:[#allocation5 + $0x1f8] sm:$0xff]
    %v357 = vld [vmem:[%s2] sm:$0xf]
    %v359 = vlaneseq
    %v360 = vshrl.u32 %v359, 7
    %v361 = vsub.s32 0, %v360
    %v362 = vrot.slane %v357, %v361
    %v363 = vlaneseq
    %v364 = vshrl.u32 %v363, 7
    %v365 = vsub.s32 1, %v364
    %v366 = vrot.slane %v357, %v365
    %v367 = vlaneseq
    %v368 = vshrl.u32 %v367, 7
    %v369 = vsub.s32 2, %v368
    %v370 = vrot.slane %v357, %v369
    %v371 = vlaneseq
    %v372 = vshrl.u32 %v371, 7
    %v373 = vsub.s32 3, %v372
    %v374 = vrot.slane %v357, %v373
    %v443 = vunpack.c.l.b16 %v293
    %v444 = vunpack.c.h.b16 %v293
    %v445 = vunpack.c.l.b16 %v294
    %v446 = vunpack.c.h.b16 %v294
    %v447 = vunpack.c.l.b16 %v295
    %v448 = vunpack.c.h.b16 %v295
    %v449 = vunpack.c.l.b16 %v296
    %v450 = vunpack.c.h.b16 %v296
    %v451 = vunpack.c.l.b16 %v297
    %v452 = vunpack.c.h.b16 %v297
    %v453 = vunpack.c.l.b16 %v298
    %v454 = vunpack.c.h.b16 %v298
    %v455 = vunpack.c.l.b16 %v299
    %v456 = vunpack.c.h.b16 %v299
    %v457 = vunpack.c.l.b16 %v300
    %v458 = vunpack.c.h.b16 %v300
    %v459 = vunpack.c.l.b16 %v301
    %v460 = vunpack.c.h.b16 %v301
    %v461 = vunpack.c.l.b16 %v302
    %v462 = vunpack.c.h.b16 %v302
    %v463 = vunpack.c.l.b16 %v303
    %v464 = vunpack.c.h.b16 %v303
    %v465 = vunpack.c.l.b16 %v304
    %v466 = vunpack.c.h.b16 %v304
    %v467 = vunpack.c.l.b16 %v305
    %v468 = vunpack.c.h.b16 %v305
    %v469 = vunpack.c.l.b16 %v306
    %v470 = vunpack.c.h.b16 %v306
    %v471 = vunpack.c.l.b16 %v307
    %v472 = vunpack.c.h.b16 %v307
    %v473 = vunpack.c.l.b16 %v308
    %v474 = vunpack.c.h.b16 %v308
    %v475 = vunpack.c.l.b16 %v309
    %v476 = vunpack.c.h.b16 %v309
    %v477 = vunpack.c.l.b16 %v310
    %v478 = vunpack.c.h.b16 %v310
    %v479 = vunpack.c.l.b16 %v311
    %v480 = vunpack.c.h.b16 %v311
    %v481 = vunpack.c.l.b16 %v312
    %v482 = vunpack.c.h.b16 %v312
    %v483 = vunpack.c.l.b16 %v313
    %v484 = vunpack.c.h.b16 %v313
    %v485 = vunpack.c.l.b16 %v314
    %v486 = vunpack.c.h.b16 %v314
    %v487 = vunpack.c.l.b16 %v315
    %v488 = vunpack.c.h.b16 %v315
    %v489 = vunpack.c.l.b16 %v316
    %v490 = vunpack.c.h.b16 %v316
    %v491 = vunpack.c.l.b16 %v317
    %v492 = vunpack.c.h.b16 %v317
    %v493 = vunpack.c.l.b16 %v318
    %v494 = vunpack.c.h.b16 %v318
    %v495 = vunpack.c.l.b16 %v319
    %v496 = vunpack.c.h.b16 %v319
    %v497 = vunpack.c.l.b16 %v320
    %v498 = vunpack.c.h.b16 %v320
    %v499 = vunpack.c.l.b16 %v321
    %v500 = vunpack.c.h.b16 %v321
    %v501 = vunpack.c.l.b16 %v322
    %v502 = vunpack.c.h.b16 %v322
    %v503 = vunpack.c.l.b16 %v323
    %v504 = vunpack.c.h.b16 %v323
    %v505 = vunpack.c.l.b16 %v324
    %v506 = vunpack.c.h.b16 %v324
    %v507 = vunpack.c.l.b16 %v325
    %v508 = vunpack.c.h.b16 %v325
    %v509 = vunpack.c.l.b16 %v326
    %v510 = vunpack.c.h.b16 %v326
    %v511 = vunpack.c.l.b16 %v327
    %v512 = vunpack.c.h.b16 %v327
    %v513 = vunpack.c.l.b16 %v328
    %v514 = vunpack.c.h.b16 %v328
    %v515 = vunpack.c.l.b16 %v329
    %v516 = vunpack.c.h.b16 %v329
    %v517 = vunpack.c.l.b16 %v330
    %v518 = vunpack.c.h.b16 %v330
    %v519 = vunpack.c.l.b16 %v331
    %v520 = vunpack.c.h.b16 %v331
    %v521 = vunpack.c.l.b16 %v332
    %v522 = vunpack.c.h.b16 %v332
    %v523 = vunpack.c.l.b16 %v333
    %v524 = vunpack.c.h.b16 %v333
    %v525 = vunpack.c.l.b16 %v334
    %v526 = vunpack.c.h.b16 %v334
    %v527 = vunpack.c.l.b16 %v335
    %v528 = vunpack.c.h.b16 %v335
    %v529 = vunpack.c.l.b16 %v336
    %v530 = vunpack.c.h.b16 %v336
    %v531 = vunpack.c.l.b16 %v337
    %v532 = vunpack.c.h.b16 %v337
    %v533 = vunpack.c.l.b16 %v338
    %v534 = vunpack.c.h.b16 %v338
    %v535 = vunpack.c.l.b16 %v339
    %v536 = vunpack.c.h.b16 %v339
    %v537 = vunpack.c.l.b16 %v340
    %v538 = vunpack.c.h.b16 %v340
    %v539 = vunpack.c.l.b16 %v341
    %v540 = vunpack.c.h.b16 %v341
    %v541 = vunpack.c.l.b16 %v342
    %v542 = vunpack.c.h.b16 %v342
    %v543 = vunpack.c.l.b16 %v343
    %v544 = vunpack.c.h.b16 %v343
    %v545 = vunpack.c.l.b16 %v344
    %v546 = vunpack.c.h.b16 %v344
    %v547 = vunpack.c.l.b16 %v345
    %v548 = vunpack.c.h.b16 %v345
    %v549 = vunpack.c.l.b16 %v346
    %v550 = vunpack.c.h.b16 %v346
    %v551 = vunpack.c.l.b16 %v347
    %v552 = vunpack.c.h.b16 %v347
    %v553 = vunpack.c.l.b16 %v348
    %v554 = vunpack.c.h.b16 %v348
    %v555 = vunpack.c.l.b16 %v349
    %v556 = vunpack.c.h.b16 %v349
    %v557 = vunpack.c.l.b16 %v350
    %v558 = vunpack.c.h.b16 %v350
    %v559 = vunpack.c.l.b16 %v351
    %v560 = vunpack.c.h.b16 %v351
    %v561 = vunpack.c.l.b16 %v352
    %v562 = vunpack.c.h.b16 %v352
    %v563 = vunpack.c.l.b16 %v353
    %v564 = vunpack.c.h.b16 %v353
    %v565 = vunpack.c.l.b16 %v354
    %v566 = vunpack.c.h.b16 %v354
    %v567 = vunpack.c.l.b16 %v355
    %v568 = vunpack.c.h.b16 %v355
    %v569 = vunpack.c.l.b16 %v356
    %v570 = vunpack.c.h.b16 %v356
    %v571 = vpack.c.b16 %v447, %v443
    %v572 = vpack.c.b16 %v448, %v444
    %v573 = vpack.c.b16 %v449, %v445
    %v574 = vpack.c.b16 %v450, %v446
    %v575 = vpack.c.b16 %v455, %v451
    %v576 = vpack.c.b16 %v456, %v452
    %v577 = vpack.c.b16 %v457, %v453
    %v578 = vpack.c.b16 %v458, %v454
    %v579 = vpack.c.b16 %v463, %v459
    %v580 = vpack.c.b16 %v464, %v460
    %v581 = vpack.c.b16 %v465, %v461
    %v582 = vpack.c.b16 %v466, %v462
    %v583 = vpack.c.b16 %v471, %v467
    %v584 = vpack.c.b16 %v472, %v468
    %v585 = vpack.c.b16 %v473, %v469
    %v586 = vpack.c.b16 %v474, %v470
    %v587 = vpack.c.b16 %v479, %v475
    %v588 = vpack.c.b16 %v480, %v476
    %v589 = vpack.c.b16 %v481, %v477
    %v590 = vpack.c.b16 %v482, %v478
    %v591 = vpack.c.b16 %v487, %v483
    %v592 = vpack.c.b16 %v488, %v484
    %v593 = vpack.c.b16 %v489, %v485
    %v594 = vpack.c.b16 %v490, %v486
    %v595 = vpack.c.b16 %v495, %v491
    %v596 = vpack.c.b16 %v496, %v492
    %v597 = vpack.c.b16 %v497, %v493
    %v598 = vpack.c.b16 %v498, %v494
    %v599 = vpack.c.b16 %v503, %v499
    %v600 = vpack.c.b16 %v504, %v500
    %v601 = vpack.c.b16 %v505, %v501
    %v602 = vpack.c.b16 %v506, %v502
    %v603 = vpack.c.b16 %v511, %v507
    %v604 = vpack.c.b16 %v512, %v508
    %v605 = vpack.c.b16 %v513, %v509
    %v606 = vpack.c.b16 %v514, %v510
    %v607 = vpack.c.b16 %v519, %v515
    %v608 = vpack.c.b16 %v520, %v516
    %v609 = vpack.c.b16 %v521, %v517
    %v610 = vpack.c.b16 %v522, %v518
    %v611 = vpack.c.b16 %v527, %v523
    %v612 = vpack.c.b16 %v528, %v524
    %v613 = vpack.c.b16 %v529, %v525
    %v614 = vpack.c.b16 %v530, %v526
    %v615 = vpack.c.b16 %v535, %v531
    %v616 = vpack.c.b16 %v536, %v532
    %v617 = vpack.c.b16 %v537, %v533
    %v618 = vpack.c.b16 %v538, %v534
    %v619 = vpack.c.b16 %v543, %v539
    %v620 = vpack.c.b16 %v544, %v540
    %v621 = vpack.c.b16 %v545, %v541
    %v622 = vpack.c.b16 %v546, %v542
    %v623 = vpack.c.b16 %v551, %v547
    %v624 = vpack.c.b16 %v552, %v548
    %v625 = vpack.c.b16 %v553, %v549
    %v626 = vpack.c.b16 %v554, %v550
    %v627 = vpack.c.b16 %v559, %v555
    %v628 = vpack.c.b16 %v560, %v556
    %v629 = vpack.c.b16 %v561, %v557
    %v630 = vpack.c.b16 %v562, %v558
    %v631 = vpack.c.b16 %v567, %v563
    %v632 = vpack.c.b16 %v568, %v564
    %v633 = vpack.c.b16 %v569, %v565
    %v634 = vpack.c.b16 %v570, %v566
    %699 = vmatprep.subr.bf16.mxu0 %v572
    %700 = vmatpush1.bf16.msra.mxu0 %v571
    %701 = vmatprep.subr.bf16.mxu0 %v576
    %702 = vmatpush1.bf16.msra.mxu0 %v575
    %703 = vmatprep.subr.bf16.mxu0 %v580
    %704 = vmatpush1.bf16.msra.mxu0 %v579
    %705 = vmatprep.subr.bf16.mxu0 %v584
    %706 = vmatpush1.bf16.msra.mxu0 %v583
    %707 = vmatprep.subr.bf16.mxu0 %v588
    %708 = vmatpush1.bf16.msra.mxu0 %v587
    %709 = vmatprep.subr.bf16.mxu0 %v592
    %710 = vmatpush1.bf16.msra.mxu0 %v591
    %711 = vmatprep.subr.bf16.mxu0 %v596
    %712 = vmatpush1.bf16.msra.mxu0 %v595
    %713 = vmatprep.subr.bf16.mxu0 %v600
    %714 = vmatpush1.bf16.msra.mxu0 %v599
    %715 = vmatprep.subr.bf16.mxu0 %v604
    %716 = vmatpush1.bf16.msra.mxu0 %v603
    %717 = vmatprep.subr.bf16.mxu0 %v608
    %718 = vmatpush1.bf16.msra.mxu0 %v607
    %719 = vmatprep.subr.bf16.mxu0 %v612
    %720 = vmatpush1.bf16.msra.mxu0 %v611
    %721 = vmatprep.subr.bf16.mxu0 %v616
    %722 = vmatpush1.bf16.msra.mxu0 %v615
    %723 = vmatprep.subr.bf16.mxu0 %v620
    %724 = vmatpush1.bf16.msra.mxu0 %v619
    %725 = vmatprep.subr.bf16.mxu0 %v624
    %726 = vmatpush1.bf16.msra.mxu0 %v623
    %727 = vmatprep.subr.bf16.mxu0 %v628
    %728 = vmatpush1.bf16.msra.mxu0 %v627
    %729 = vmatprep.subr.bf16.mxu0 %v632
    %730 = vmatpush1.bf16.msra.mxu0 %v631
    %731 = vmatprep.mubr.bf16.mxu0 %v230
    %732 = vmatmul.mubr.bf16.gmra.mrb[0].mxu0 %v229
    %v733 = vpop.f32.mrb[0].mxu0
    %v734 = vadd.f32 %v362, %v733
    %v735 = vpop.f32.mrb[0].mxu0
    %v736 = vadd.f32 %v366, %v735
    %v737 = vpop.f32.mrb[0].mxu0
    %v738 = vadd.f32 %v362, %v737
    %v739 = vpop.f32.mrb[0].mxu0
    %v740 = vadd.f32 %v366, %v739
    %741 = vmatprep.mubr.bf16.mxu0 %v232
    %742 = vmatmul.mubr.bf16.gmra.mrb[0].mxu0 %v231
    %v743 = vpop.f32.mrb[0].mxu0
    %v744 = vadd.f32 %v362, %v743
    %v745 = vpop.f32.mrb[0].mxu0
    %v746 = vadd.f32 %v366, %v745
    %v747 = vpop.f32.mrb[0].mxu0
    %v748 = vadd.f32 %v362, %v747
    %v749 = vpop.f32.mrb[0].mxu0
    %v750 = vadd.f32 %v366, %v749
    %751 = vmatprep.mubr.bf16.mxu0 %v234
    %752 = vmatmul.mubr.bf16.gmra.mrb[0].mxu0 %v233
    %v753 = vpop.f32.mrb[0].mxu0
    %v754 = vadd.f32 %v362, %v753
    %v755 = vpop.f32.mrb[0].mxu0
    %v756 = vadd.f32 %v366, %v755
    %v757 = vpop.f32.mrb[0].mxu0
    %v758 = vadd.f32 %v362, %v757
    %v759 = vpop.f32.mrb[0].mxu0
    %v760 = vadd.f32 %v366, %v759
    %761 = vmatprep.mubr.bf16.mxu0 %v236
    %762 = vmatmul.mubr.bf16.gmra.mrb[0].mxu0 %v235
    %v763 = vpop.f32.mrb[0].mxu0
    %v764 = vadd.f32 %v362, %v763
    %v765 = vpop.f32.mrb[0].mxu0
    %v766 = vadd.f32 %v366, %v765
    %v767 = vpop.f32.mrb[0].mxu0
    %v768 = vadd.f32 %v362, %v767
    %v769 = vpop.f32.mrb[0].mxu0
    %v770 = vadd.f32 %v366, %v769
    %771 = vmatprep.mubr.bf16.mxu0 %v238
    %772 = vmatmul.mubr.bf16.gmra.mrb[0].mxu0 %v237
    %v773 = vpop.f32.mrb[0].mxu0
    %v774 = vadd.f32 %v362, %v773
    %v775 = vpop.f32.mrb[0].mxu0
    %v776 = vadd.f32 %v366, %v775
    %v777 = vpop.f32.mrb[0].mxu0
    %v778 = vadd.f32 %v362, %v777
    %v779 = vpop.f32.mrb[0].mxu0
    %v780 = vadd.f32 %v366, %v779
    %781 = vmatprep.mubr.bf16.mxu0 %v240
    %782 = vmatmul.mubr.bf16.gmra.mrb[0].mxu0 %v239
    %v783 = vpop.f32.mrb[0].mxu0
    %v784 = vadd.f32 %v362, %v783
    %v785 = vpop.f32.mrb[0].mxu0
    %v786 = vadd.f32 %v366, %v785
    %v787 = vpop.f32.mrb[0].mxu0
    %v788 = vadd.f32 %v362, %v787
    %v789 = vpop.f32.mrb[0].mxu0
    %v790 = vadd.f32 %v366, %v789
    %791 = vmatprep.mubr.bf16.mxu0 %v242
    %792 = vmatmul.mubr.bf16.gmra.mrb[0].mxu0 %v241
    %v793 = vpop.f32.mrb[0].mxu0
    %v794 = vadd.f32 %v362, %v793
    %v795 = vpop.f32.mrb[0].mxu0
    %v796 = vadd.f32 %v366, %v795
    %v797 = vpop.f32.mrb[0].mxu0
    %v798 = vadd.f32 %v362, %v797
    %v799 = vpop.f32.mrb[0].mxu0
    %v800 = vadd.f32 %v366, %v799
    %801 = vmatprep.mubr.bf16.mxu0 %v244
    %802 = vmatmul.mubr.bf16.gmra.mrb[0].mxu0 %v243
    %v803 = vpop.f32.mrb[0].mxu0
    %v804 = vadd.f32 %v362, %v803
    %v805 = vpop.f32.mrb[0].mxu0
    %v806 = vadd.f32 %v366, %v805
    %v807 = vpop.f32.mrb[0].mxu0
    %v808 = vadd.f32 %v362, %v807
    %v809 = vpop.f32.mrb[0].mxu0
    %v810 = vadd.f32 %v366, %v809
    %811 = vmatprep.mubr.bf16.mxu0 %v246
    %812 = vmatmul.mubr.bf16.gmra.mrb[0].mxu0 %v245
    %v813 = vpop.f32.mrb[0].mxu0
    %v814 = vadd.f32 %v362, %v813
    %v815 = vpop.f32.mrb[0].mxu0
    %v816 = vadd.f32 %v366, %v815
    %v817 = vpop.f32.mrb[0].mxu0
    %v818 = vadd.f32 %v362, %v817
    %v819 = vpop.f32.mrb[0].mxu0
    %v820 = vadd.f32 %v366, %v819
    %821 = vmatprep.mubr.bf16.mxu0 %v248
    %822 = vmatmul.mubr.bf16.gmra.mrb[0].mxu0 %v247
    %v823 = vpop.f32.mrb[0].mxu0
    %v824 = vadd.f32 %v362, %v823
    %v825 = vpop.f32.mrb[0].mxu0
    %v826 = vadd.f32 %v366, %v825
    %v827 = vpop.f32.mrb[0].mxu0
    %v828 = vadd.f32 %v362, %v827
    %v829 = vpop.f32.mrb[0].mxu0
    %v830 = vadd.f32 %v366, %v829
    %831 = vmatprep.mubr.bf16.mxu0 %v250
    %832 = vmatmul.mubr.bf16.gmra.mrb[0].mxu0 %v249
    %v833 = vpop.f32.mrb[0].mxu0
    %v834 = vadd.f32 %v362, %v833
    %v835 = vpop.f32.mrb[0].mxu0
    %v836 = vadd.f32 %v366, %v835
    %v837 = vpop.f32.mrb[0].mxu0
    %v838 = vadd.f32 %v362, %v837
    %v839 = vpop.f32.mrb[0].mxu0
    %v840 = vadd.f32 %v366, %v839
    %841 = vmatprep.mubr.bf16.mxu0 %v252
    %842 = vmatmul.mubr.bf16.gmra.mrb[0].mxu0 %v251
    %v843 = vpop.f32.mrb[0].mxu0
    %v844 = vadd.f32 %v362, %v843
    %v845 = vpop.f32.mrb[0].mxu0
    %v846 = vadd.f32 %v366, %v845
    %v847 = vpop.f32.mrb[0].mxu0
    %v848 = vadd.f32 %v362, %v847
    %v849 = vpop.f32.mrb[0].mxu0
    %v850 = vadd.f32 %v366, %v849
    %851 = vmatprep.mubr.bf16.mxu0 %v254
    %852 = vmatmul.mubr.bf16.gmra.mrb[0].mxu0 %v253
    %v853 = vpop.f32.mrb[0].mxu0
    %v854 = vadd.f32 %v362, %v853
    %v855 = vpop.f32.mrb[0].mxu0
    %v856 = vadd.f32 %v366, %v855
    %v857 = vpop.f32.mrb[0].mxu0
    %v858 = vadd.f32 %v362, %v857
    %v859 = vpop.f32.mrb[0].mxu0
    %v860 = vadd.f32 %v366, %v859
    %861 = vmatprep.mubr.bf16.mxu0 %v256
    %862 = vmatmul.mubr.bf16.gmra.mrb[0].mxu0 %v255
    %v863 = vpop.f32.mrb[0].mxu0
    %v864 = vadd.f32 %v362, %v863
    %v865 = vpop.f32.mrb[0].mxu0
    %v866 = vadd.f32 %v366, %v865
    %v867 = vpop.f32.mrb[0].mxu0
    %v868 = vadd.f32 %v362, %v867
    %v869 = vpop.f32.mrb[0].mxu0
    %v870 = vadd.f32 %v366, %v869
    %871 = vmatprep.mubr.bf16.mxu0 %v258
    %872 = vmatmul.mubr.bf16.gmra.mrb[0].mxu0 %v257
    %v873 = vpop.f32.mrb[0].mxu0
    %v874 = vadd.f32 %v362, %v873
    %v875 = vpop.f32.mrb[0].mxu0
    %v876 = vadd.f32 %v366, %v875
    %v877 = vpop.f32.mrb[0].mxu0
    %v878 = vadd.f32 %v362, %v877
    %v879 = vpop.f32.mrb[0].mxu0
    %v880 = vadd.f32 %v366, %v879
    %881 = vmatprep.mubr.bf16.mxu0 %v260
    %882 = vmatmul.mubr.bf16.gmra.mrb[0].mxu0 %v259
    %v883 = vpop.f32.mrb[0].mxu0
    %v884 = vadd.f32 %v362, %v883
    %v885 = vpop.f32.mrb[0].mxu0
    %v886 = vadd.f32 %v366, %v885
    %v887 = vpop.f32.mrb[0].mxu0
    %v888 = vadd.f32 %v362, %v887
    %v889 = vpop.f32.mrb[0].mxu0
    %v890 = vadd.f32 %v366, %v889
    %891 = vmatprep.mubr.bf16.mxu0 %v262
    %892 = vmatmul.mubr.bf16.gmra.mrb[0].mxu0 %v261
    %v893 = vpop.f32.mrb[0].mxu0
    %v894 = vadd.f32 %v362, %v893
    %v895 = vpop.f32.mrb[0].mxu0
    %v896 = vadd.f32 %v366, %v895
    %v897 = vpop.f32.mrb[0].mxu0
    %v898 = vadd.f32 %v362, %v897
    %v899 = vpop.f32.mrb[0].mxu0
    %v900 = vadd.f32 %v366, %v899
    %901 = vmatprep.mubr.bf16.mxu0 %v264
    %902 = vmatmul.mubr.bf16.gmra.mrb[0].mxu0 %v263
    %v903 = vpop.f32.mrb[0].mxu0
    %v904 = vadd.f32 %v362, %v903
    %v905 = vpop.f32.mrb[0].mxu0
    %v906 = vadd.f32 %v366, %v905
    %v907 = vpop.f32.mrb[0].mxu0
    %v908 = vadd.f32 %v362, %v907
    %v909 = vpop.f32.mrb[0].mxu0
    %v910 = vadd.f32 %v366, %v909
    %911 = vmatprep.mubr.bf16.mxu0 %v266
    %912 = vmatmul.mubr.bf16.gmra.mrb[0].mxu0 %v265
    %v913 = vpop.f32.mrb[0].mxu0
    %v914 = vadd.f32 %v362, %v913
    %v915 = vpop.f32.mrb[0].mxu0
    %v916 = vadd.f32 %v366, %v915
    %v917 = vpop.f32.mrb[0].mxu0
    %v918 = vadd.f32 %v362, %v917
    %v919 = vpop.f32.mrb[0].mxu0
    %v920 = vadd.f32 %v366, %v919
    %921 = vmatprep.mubr.bf16.mxu0 %v268
    %922 = vmatmul.mubr.bf16.gmra.mrb[0].mxu0 %v267
    %v923 = vpop.f32.mrb[0].mxu0
    %v924 = vadd.f32 %v362, %v923
    %v925 = vpop.f32.mrb[0].mxu0
    %v926 = vadd.f32 %v366, %v925
    %v927 = vpop.f32.mrb[0].mxu0
    %v928 = vadd.f32 %v362, %v927
    %v929 = vpop.f32.mrb[0].mxu0
    %v930 = vadd.f32 %v366, %v929
    %931 = vmatprep.mubr.bf16.mxu0 %v270
    %932 = vmatmul.mubr.bf16.gmra.mrb[0].mxu0 %v269
    %v933 = vpop.f32.mrb[0].mxu0
    %v934 = vadd.f32 %v362, %v933
    %v935 = vpop.f32.mrb[0].mxu0
    %v936 = vadd.f32 %v366, %v935
    %v937 = vpop.f32.mrb[0].mxu0
    %v938 = vadd.f32 %v362, %v937
    %v939 = vpop.f32.mrb[0].mxu0
    %v940 = vadd.f32 %v366, %v939
    %941 = vmatprep.mubr.bf16.mxu0 %v272
    %942 = vmatmul.mubr.bf16.gmra.mrb[0].mxu0 %v271
    %v943 = vpop.f32.mrb[0].mxu0
    %v944 = vadd.f32 %v362, %v943
    %v945 = vpop.f32.mrb[0].mxu0
    %v946 = vadd.f32 %v366, %v945
    %v947 = vpop.f32.mrb[0].mxu0
    %v948 = vadd.f32 %v362, %v947
    %v949 = vpop.f32.mrb[0].mxu0
    %v950 = vadd.f32 %v366, %v949
    %951 = vmatprep.mubr.bf16.mxu0 %v274
    %952 = vmatmul.mubr.bf16.gmra.mrb[0].mxu0 %v273
    %v953 = vpop.f32.mrb[0].mxu0
    %v954 = vadd.f32 %v362, %v953
    %v955 = vpop.f32.mrb[0].mxu0
    %v956 = vadd.f32 %v366, %v955
    %v957 = vpop.f32.mrb[0].mxu0
    %v958 = vadd.f32 %v362, %v957
    %v959 = vpop.f32.mrb[0].mxu0
    %v960 = vadd.f32 %v366, %v959
    %961 = vmatprep.mubr.bf16.mxu0 %v276
    %962 = vmatmul.mubr.bf16.gmra.mrb[0].mxu0 %v275
    %v963 = vpop.f32.mrb[0].mxu0
    %v964 = vadd.f32 %v362, %v963
    %v965 = vpop.f32.mrb[0].mxu0
    %v966 = vadd.f32 %v366, %v965
    %v967 = vpop.f32.mrb[0].mxu0
    %v968 = vadd.f32 %v362, %v967
    %v969 = vpop.f32.mrb[0].mxu0
    %v970 = vadd.f32 %v366, %v969
    %971 = vmatprep.mubr.bf16.mxu0 %v278
    %972 = vmatmul.mubr.bf16.gmra.mrb[0].mxu0 %v277
    %v973 = vpop.f32.mrb[0].mxu0
    %v974 = vadd.f32 %v362, %v973
    %v975 = vpop.f32.mrb[0].mxu0
    %v976 = vadd.f32 %v366, %v975
    %v977 = vpop.f32.mrb[0].mxu0
    %v978 = vadd.f32 %v362, %v977
    %v979 = vpop.f32.mrb[0].mxu0
    %v980 = vadd.f32 %v366, %v979
    %981 = vmatprep.mubr.bf16.mxu0 %v280
    %982 = vmatmul.mubr.bf16.gmra.mrb[0].mxu0 %v279
    %v983 = vpop.f32.mrb[0].mxu0
    %v984 = vadd.f32 %v362, %v983
    %v985 = vpop.f32.mrb[0].mxu0
    %v986 = vadd.f32 %v366, %v985
    %v987 = vpop.f32.mrb[0].mxu0
    %v988 = vadd.f32 %v362, %v987
    %v989 = vpop.f32.mrb[0].mxu0
    %v990 = vadd.f32 %v366, %v989
    %991 = vmatprep.mubr.bf16.mxu0 %v282
    %992 = vmatmul.mubr.bf16.gmra.mrb[0].mxu0 %v281
    %v993 = vpop.f32.mrb[0].mxu0
    %v994 = vadd.f32 %v362, %v993
    %v995 = vpop.f32.mrb[0].mxu0
    %v996 = vadd.f32 %v366, %v995
    %v997 = vpop.f32.mrb[0].mxu0
    %v998 = vadd.f32 %v362, %v997
    %v999 = vpop.f32.mrb[0].mxu0
    %v1000 = vadd.f32 %v366, %v999
    %1001 = vmatprep.mubr.bf16.mxu0 %v284
    %1002 = vmatmul.mubr.bf16.gmra.mrb[0].mxu0 %v283
    %v1003 = vpop.f32.mrb[0].mxu0
    %v1004 = vadd.f32 %v362, %v1003
    %v1005 = vpop.f32.mrb[0].mxu0
    %v1006 = vadd.f32 %v366, %v1005
    %v1007 = vpop.f32.mrb[0].mxu0
    %v1008 = vadd.f32 %v362, %v1007
    %v1009 = vpop.f32.mrb[0].mxu0
    %v1010 = vadd.f32 %v366, %v1009
    %1011 = vmatprep.mubr.bf16.mxu0 %v286
    %1012 = vmatmul.mubr.bf16.gmra.mrb[0].mxu0 %v285
    %v1013 = vpop.f32.mrb[0].mxu0
    %v1014 = vadd.f32 %v362, %v1013
    %v1015 = vpop.f32.mrb[0].mxu0
    %v1016 = vadd.f32 %v366, %v1015
    %v1017 = vpop.f32.mrb[0].mxu0
    %v1018 = vadd.f32 %v362, %v1017
    %v1019 = vpop.f32.mrb[0].mxu0
    %v1020 = vadd.f32 %v366, %v1019
    %1021 = vmatprep.mubr.bf16.mxu0 %v288
    %1022 = vmatmul.mubr.bf16.gmra.mrb[0].mxu0 %v287
    %v1023 = vpop.f32.mrb[0].mxu0
    %v1024 = vadd.f32 %v362, %v1023
    %v1025 = vpop.f32.mrb[0].mxu0
    %v1026 = vadd.f32 %v366, %v1025
    %v1027 = vpop.f32.mrb[0].mxu0
    %v1028 = vadd.f32 %v362, %v1027
    %v1029 = vpop.f32.mrb[0].mxu0
    %v1030 = vadd.f32 %v366, %v1029
    %1031 = vmatprep.mubr.bf16.mxu0 %v290
    %1032 = vmatmul.mubr.bf16.gmra.mrb[0].mxu0 %v289
    %v1033 = vpop.f32.mrb[0].mxu0
    %v1034 = vadd.f32 %v362, %v1033
    %v1035 = vpop.f32.mrb[0].mxu0
    %v1036 = vadd.f32 %v366, %v1035
    %v1037 = vpop.f32.mrb[0].mxu0
    %v1038 = vadd.f32 %v362, %v1037
    %v1039 = vpop.f32.mrb[0].mxu0
    %v1040 = vadd.f32 %v366, %v1039
    %1041 = vmatprep.mubr.bf16.mxu0 %v292
    %1042 = vmatmul.mubr.bf16.gmra.mrb[0].mxu0 %v291
    %v1043 = vpop.f32.mrb[0].mxu0
    %v1044 = vadd.f32 %v362, %v1043
    %v1045 = vpop.f32.mrb[0].mxu0
    %v1046 = vadd.f32 %v366, %v1045
    %v1047 = vpop.f32.mrb[0].mxu0
    %v1048 = vadd.f32 %v362, %v1047
    %v1049 = vpop.f32.mrb[0].mxu0
    %v1050 = vadd.f32 %v366, %v1049
    %1051 = vdwg.mxu0
    %1052 = vmatprep.subr.bf16.mxu0 %v574
    %1053 = vmatpush1.bf16.msra.mxu0 %v573
    %1054 = vmatprep.subr.bf16.mxu0 %v578
    %1055 = vmatpush1.bf16.msra.mxu0 %v577
    %1056 = vmatprep.subr.bf16.mxu0 %v582
    %1057 = vmatpush1.bf16.msra.mxu0 %v581
    %1058 = vmatprep.subr.bf16.mxu0 %v586
    %1059 = vmatpush1.bf16.msra.mxu0 %v585
    %1060 = vmatprep.subr.bf16.mxu0 %v590
    %1061 = vmatpush1.bf16.msra.mxu0 %v589
    %1062 = vmatprep.subr.bf16.mxu0 %v594
    %1063 = vmatpush1.bf16.msra.mxu0 %v593
    %1064 = vmatprep.subr.bf16.mxu0 %v598
    %1065 = vmatpush1.bf16.msra.mxu0 %v597
    %1066 = vmatprep.subr.bf16.mxu0 %v602
    %1067 = vmatpush1.bf16.msra.mxu0 %v601
    %1068 = vmatprep.subr.bf16.mxu0 %v606
    %1069 = vmatpush1.bf16.msra.mxu0 %v605
    %1070 = vmatprep.subr.bf16.mxu0 %v610
    %1071 = vmatpush1.bf16.msra.mxu0 %v609
    %1072 = vmatprep.subr.bf16.mxu0 %v614
    %1073 = vmatpush1.bf16.msra.mxu0 %v613
    %1074 = vmatprep.subr.bf16.mxu0 %v618
    %1075 = vmatpush1.bf16.msra.mxu0 %v617
    %1076 = vmatprep.subr.bf16.mxu0 %v622
    %1077 = vmatpush1.bf16.msra.mxu0 %v621
    %1078 = vmatprep.subr.bf16.mxu0 %v626
    %1079 = vmatpush1.bf16.msra.mxu0 %v625
    %1080 = vmatprep.subr.bf16.mxu0 %v630
    %1081 = vmatpush1.bf16.msra.mxu0 %v629
    %1082 = vmatprep.subr.bf16.mxu0 %v634
    %1083 = vmatpush1.bf16.msra.mxu0 %v633
    %1084 = vmatprep.mubr.bf16.mxu0 %v230
    %1085 = vmatmul.mubr.bf16.gmra.mrb[0].mxu0 %v229
    %v1086 = vpop.f32.mrb[0].mxu0
    %v1087 = vadd.f32 %v370, %v1086
    %v1088 = vpop.f32.mrb[0].mxu0
    %v1089 = vadd.f32 %v374, %v1088
    %v1090 = vpop.f32.mrb[0].mxu0
    %v1091 = vadd.f32 %v370, %v1090
    %v1092 = vpop.f32.mrb[0].mxu0
    %v1093 = vadd.f32 %v374, %v1092
    %1094 = vmatprep.mubr.bf16.mxu0 %v232
    %1095 = vmatmul.mubr.bf16.gmra.mrb[0].mxu0 %v231
    %v1096 = vpop.f32.mrb[0].mxu0
    %v1097 = vadd.f32 %v370, %v1096
    %v1098 = vpop.f32.mrb[0].mxu0
    %v1099 = vadd.f32 %v374, %v1098
    %v1100 = vpop.f32.mrb[0].mxu0
    %v1101 = vadd.f32 %v370, %v1100
    %v1102 = vpop.f32.mrb[0].mxu0
    %v1103 = vadd.f32 %v374, %v1102
    %1104 = vmatprep.mubr.bf16.mxu0 %v234
    %1105 = vmatmul.mubr.bf16.gmra.mrb[0].mxu0 %v233
    %v1106 = vpop.f32.mrb[0].mxu0
    %v1107 = vadd.f32 %v370, %v1106
    %v1108 = vpop.f32.mrb[0].mxu0
    %v1109 = vadd.f32 %v374, %v1108
    %v1110 = vpop.f32.mrb[0].mxu0
    %v1111 = vadd.f32 %v370, %v1110
    %v1112 = vpop.f32.mrb[0].mxu0
    %v1113 = vadd.f32 %v374, %v1112
    %1114 = vmatprep.mubr.bf16.mxu0 %v236
    %1115 = vmatmul.mubr.bf16.gmra.mrb[0].mxu0 %v235
    %v1116 = vpop.f32.mrb[0].mxu0
    %v1117 = vadd.f32 %v370, %v1116
    %v1118 = vpop.f32.mrb[0].mxu0
    %v1119 = vadd.f32 %v374, %v1118
    %v1120 = vpop.f32.mrb[0].mxu0
    %v1121 = vadd.f32 %v370, %v1120
    %v1122 = vpop.f32.mrb[0].mxu0
    %v1123 = vadd.f32 %v374, %v1122
    %1124 = vmatprep.mubr.bf16.mxu0 %v238
    %1125 = vmatmul.mubr.bf16.gmra.mrb[0].mxu0 %v237
    %v1126 = vpop.f32.mrb[0].mxu0
    %v1127 = vadd.f32 %v370, %v1126
    %v1128 = vpop.f32.mrb[0].mxu0
    %v1129 = vadd.f32 %v374, %v1128
    %v1130 = vpop.f32.mrb[0].mxu0
    %v1131 = vadd.f32 %v370, %v1130
    %v1132 = vpop.f32.mrb[0].mxu0
    %v1133 = vadd.f32 %v374, %v1132
    %1134 = vmatprep.mubr.bf16.mxu0 %v240
    %1135 = vmatmul.mubr.bf16.gmra.mrb[0].mxu0 %v239
    %v1136 = vpop.f32.mrb[0].mxu0
    %v1137 = vadd.f32 %v370, %v1136
    %v1138 = vpop.f32.mrb[0].mxu0
    %v1139 = vadd.f32 %v374, %v1138
    %v1140 = vpop.f32.mrb[0].mxu0
    %v1141 = vadd.f32 %v370, %v1140
    %v1142 = vpop.f32.mrb[0].mxu0
    %v1143 = vadd.f32 %v374, %v1142
    %1144 = vmatprep.mubr.bf16.mxu0 %v242
    %1145 = vmatmul.mubr.bf16.gmra.mrb[0].mxu0 %v241
    %v1146 = vpop.f32.mrb[0].mxu0
    %v1147 = vadd.f32 %v370, %v1146
    %v1148 = vpop.f32.mrb[0].mxu0
    %v1149 = vadd.f32 %v374, %v1148
    %v1150 = vpop.f32.mrb[0].mxu0
    %v1151 = vadd.f32 %v370, %v1150
    %v1152 = vpop.f32.mrb[0].mxu0
    %v1153 = vadd.f32 %v374, %v1152
    %1154 = vmatprep.mubr.bf16.mxu0 %v244
    %1155 = vmatmul.mubr.bf16.gmra.mrb[0].mxu0 %v243
    %v1156 = vpop.f32.mrb[0].mxu0
    %v1157 = vadd.f32 %v370, %v1156
    %v1158 = vpop.f32.mrb[0].mxu0
    %v1159 = vadd.f32 %v374, %v1158
    %v1160 = vpop.f32.mrb[0].mxu0
    %v1161 = vadd.f32 %v370, %v1160
    %v1162 = vpop.f32.mrb[0].mxu0
    %v1163 = vadd.f32 %v374, %v1162
    %1164 = vmatprep.mubr.bf16.mxu0 %v246
    %1165 = vmatmul.mubr.bf16.gmra.mrb[0].mxu0 %v245
    %v1166 = vpop.f32.mrb[0].mxu0
    %v1167 = vadd.f32 %v370, %v1166
    %v1168 = vpop.f32.mrb[0].mxu0
    %v1169 = vadd.f32 %v374, %v1168
    %v1170 = vpop.f32.mrb[0].mxu0
    %v1171 = vadd.f32 %v370, %v1170
    %v1172 = vpop.f32.mrb[0].mxu0
    %v1173 = vadd.f32 %v374, %v1172
    %1174 = vmatprep.mubr.bf16.mxu0 %v248
    %1175 = vmatmul.mubr.bf16.gmra.mrb[0].mxu0 %v247
    %v1176 = vpop.f32.mrb[0].mxu0
    %v1177 = vadd.f32 %v370, %v1176
    %v1178 = vpop.f32.mrb[0].mxu0
    %v1179 = vadd.f32 %v374, %v1178
    %v1180 = vpop.f32.mrb[0].mxu0
    %v1181 = vadd.f32 %v370, %v1180
    %v1182 = vpop.f32.mrb[0].mxu0
    %v1183 = vadd.f32 %v374, %v1182
    %1184 = vmatprep.mubr.bf16.mxu0 %v250
    %1185 = vmatmul.mubr.bf16.gmra.mrb[0].mxu0 %v249
    %v1186 = vpop.f32.mrb[0].mxu0
    %v1187 = vadd.f32 %v370, %v1186
    %v1188 = vpop.f32.mrb[0].mxu0
    %v1189 = vadd.f32 %v374, %v1188
    %v1190 = vpop.f32.mrb[0].mxu0
    %v1191 = vadd.f32 %v370, %v1190
    %v1192 = vpop.f32.mrb[0].mxu0
    %v1193 = vadd.f32 %v374, %v1192
    %1194 = vmatprep.mubr.bf16.mxu0 %v252
    %1195 = vmatmul.mubr.bf16.gmra.mrb[0].mxu0 %v251
    %v1196 = vpop.f32.mrb[0].mxu0
    %v1197 = vadd.f32 %v370, %v1196
    %v1198 = vpop.f32.mrb[0].mxu0
    %v1199 = vadd.f32 %v374, %v1198
    %v1200 = vpop.f32.mrb[0].mxu0
    %v1201 = vadd.f32 %v370, %v1200
    %v1202 = vpop.f32.mrb[0].mxu0
    %v1203 = vadd.f32 %v374, %v1202
    %1204 = vmatprep.mubr.bf16.mxu0 %v254
    %1205 = vmatmul.mubr.bf16.gmra.mrb[0].mxu0 %v253
    %v1206 = vpop.f32.mrb[0].mxu0
    %v1207 = vadd.f32 %v370, %v1206
    %v1208 = vpop.f32.mrb[0].mxu0
    %v1209 = vadd.f32 %v374, %v1208
    %v1210 = vpop.f32.mrb[0].mxu0
    %v1211 = vadd.f32 %v370, %v1210
    %v1212 = vpop.f32.mrb[0].mxu0
    %v1213 = vadd.f32 %v374, %v1212
    %1214 = vmatprep.mubr.bf16.mxu0 %v256
    %1215 = vmatmul.mubr.bf16.gmra.mrb[0].mxu0 %v255
    %v1216 = vpop.f32.mrb[0].mxu0
    %v1217 = vadd.f32 %v370, %v1216
    %v1218 = vpop.f32.mrb[0].mxu0
    %v1219 = vadd.f32 %v374, %v1218
    %v1220 = vpop.f32.mrb[0].mxu0
    %v1221 = vadd.f32 %v370, %v1220
    %v1222 = vpop.f32.mrb[0].mxu0
    %v1223 = vadd.f32 %v374, %v1222
    %1224 = vmatprep.mubr.bf16.mxu0 %v258
    %1225 = vmatmul.mubr.bf16.gmra.mrb[0].mxu0 %v257
    %v1226 = vpop.f32.mrb[0].mxu0
    %v1227 = vadd.f32 %v370, %v1226
    %v1228 = vpop.f32.mrb[0].mxu0
    %v1229 = vadd.f32 %v374, %v1228
    %v1230 = vpop.f32.mrb[0].mxu0
    %v1231 = vadd.f32 %v370, %v1230
    %v1232 = vpop.f32.mrb[0].mxu0
    %v1233 = vadd.f32 %v374, %v1232
    %1234 = vmatprep.mubr.bf16.mxu0 %v260
    %1235 = vmatmul.mubr.bf16.gmra.mrb[0].mxu0 %v259
    %v1236 = vpop.f32.mrb[0].mxu0
    %v1237 = vadd.f32 %v370, %v1236
    %v1238 = vpop.f32.mrb[0].mxu0
    %v1239 = vadd.f32 %v374, %v1238
    %v1240 = vpop.f32.mrb[0].mxu0
    %v1241 = vadd.f32 %v370, %v1240
    %v1242 = vpop.f32.mrb[0].mxu0
    %v1243 = vadd.f32 %v374, %v1242
    %1244 = vmatprep.mubr.bf16.mxu0 %v262
    %1245 = vmatmul.mubr.bf16.gmra.mrb[0].mxu0 %v261
    %v1246 = vpop.f32.mrb[0].mxu0
    %v1247 = vadd.f32 %v370, %v1246
    %v1248 = vpop.f32.mrb[0].mxu0
    %v1249 = vadd.f32 %v374, %v1248
    %v1250 = vpop.f32.mrb[0].mxu0
    %v1251 = vadd.f32 %v370, %v1250
    %v1252 = vpop.f32.mrb[0].mxu0
    %v1253 = vadd.f32 %v374, %v1252
    %1254 = vmatprep.mubr.bf16.mxu0 %v264
    %1255 = vmatmul.mubr.bf16.gmra.mrb[0].mxu0 %v263
    %v1256 = vpop.f32.mrb[0].mxu0
    %v1257 = vadd.f32 %v370, %v1256
    %v1258 = vpop.f32.mrb[0].mxu0
    %v1259 = vadd.f32 %v374, %v1258
    %v1260 = vpop.f32.mrb[0].mxu0
    %v1261 = vadd.f32 %v370, %v1260
    %v1262 = vpop.f32.mrb[0].mxu0
    %v1263 = vadd.f32 %v374, %v1262
    %1264 = vmatprep.mubr.bf16.mxu0 %v266
    %1265 = vmatmul.mubr.bf16.gmra.mrb[0].mxu0 %v265
    %v1266 = vpop.f32.mrb[0].mxu0
    %v1267 = vadd.f32 %v370, %v1266
    %v1268 = vpop.f32.mrb[0].mxu0
    %v1269 = vadd.f32 %v374, %v1268
    %v1270 = vpop.f32.mrb[0].mxu0
    %v1271 = vadd.f32 %v370, %v1270
    %v1272 = vpop.f32.mrb[0].mxu0
    %v1273 = vadd.f32 %v374, %v1272
    %1274 = vmatprep.mubr.bf16.mxu0 %v268
    %1275 = vmatmul.mubr.bf16.gmra.mrb[0].mxu0 %v267
    %v1276 = vpop.f32.mrb[0].mxu0
    %v1277 = vadd.f32 %v370, %v1276
    %v1278 = vpop.f32.mrb[0].mxu0
    %v1279 = vadd.f32 %v374, %v1278
    %v1280 = vpop.f32.mrb[0].mxu0
    %v1281 = vadd.f32 %v370, %v1280
    %v1282 = vpop.f32.mrb[0].mxu0
    %v1283 = vadd.f32 %v374, %v1282
    %1284 = vmatprep.mubr.bf16.mxu0 %v270
    %1285 = vmatmul.mubr.bf16.gmra.mrb[0].mxu0 %v269
    %v1286 = vpop.f32.mrb[0].mxu0
    %v1287 = vadd.f32 %v370, %v1286
    %v1288 = vpop.f32.mrb[0].mxu0
    %v1289 = vadd.f32 %v374, %v1288
    %v1290 = vpop.f32.mrb[0].mxu0
    %v1291 = vadd.f32 %v370, %v1290
    %v1292 = vpop.f32.mrb[0].mxu0
    %v1293 = vadd.f32 %v374, %v1292
    %1294 = vmatprep.mubr.bf16.mxu0 %v272
    %1295 = vmatmul.mubr.bf16.gmra.mrb[0].mxu0 %v271
    %v1296 = vpop.f32.mrb[0].mxu0
    %v1297 = vadd.f32 %v370, %v1296
    %v1298 = vpop.f32.mrb[0].mxu0
    %v1299 = vadd.f32 %v374, %v1298
    %v1300 = vpop.f32.mrb[0].mxu0
    %v1301 = vadd.f32 %v370, %v1300
    %v1302 = vpop.f32.mrb[0].mxu0
    %v1303 = vadd.f32 %v374, %v1302
    %1304 = vmatprep.mubr.bf16.mxu0 %v274
    %1305 = vmatmul.mubr.bf16.gmra.mrb[0].mxu0 %v273
    %v1306 = vpop.f32.mrb[0].mxu0
    %v1307 = vadd.f32 %v370, %v1306
    %v1308 = vpop.f32.mrb[0].mxu0
    %v1309 = vadd.f32 %v374, %v1308
    %v1310 = vpop.f32.mrb[0].mxu0
    %v1311 = vadd.f32 %v370, %v1310
    %v1312 = vpop.f32.mrb[0].mxu0
    %v1313 = vadd.f32 %v374, %v1312
    %1314 = vmatprep.mubr.bf16.mxu0 %v276
    %1315 = vmatmul.mubr.bf16.gmra.mrb[0].mxu0 %v275
    %v1316 = vpop.f32.mrb[0].mxu0
    %v1317 = vadd.f32 %v370, %v1316
    %v1318 = vpop.f32.mrb[0].mxu0
    %v1319 = vadd.f32 %v374, %v1318
    %v1320 = vpop.f32.mrb[0].mxu0
    %v1321 = vadd.f32 %v370, %v1320
    %v1322 = vpop.f32.mrb[0].mxu0
    %v1323 = vadd.f32 %v374, %v1322
    %1324 = vmatprep.mubr.bf16.mxu0 %v278
    %1325 = vmatmul.mubr.bf16.gmra.mrb[0].mxu0 %v277
    %v1326 = vpop.f32.mrb[0].mxu0
    %v1327 = vadd.f32 %v370, %v1326
    %v1328 = vpop.f32.mrb[0].mxu0
    %v1329 = vadd.f32 %v374, %v1328
    %v1330 = vpop.f32.mrb[0].mxu0
    %v1331 = vadd.f32 %v370, %v1330
    %v1332 = vpop.f32.mrb[0].mxu0
    %v1333 = vadd.f32 %v374, %v1332
    %1334 = vmatprep.mubr.bf16.mxu0 %v280
    %1335 = vmatmul.mubr.bf16.gmra.mrb[0].mxu0 %v279
    %v1336 = vpop.f32.mrb[0].mxu0
    %v1337 = vadd.f32 %v370, %v1336
    %v1338 = vpop.f32.mrb[0].mxu0
    %v1339 = vadd.f32 %v374, %v1338
    %v1340 = vpop.f32.mrb[0].mxu0
    %v1341 = vadd.f32 %v370, %v1340
    %v1342 = vpop.f32.mrb[0].mxu0
    %v1343 = vadd.f32 %v374, %v1342
    %1344 = vmatprep.mubr.bf16.mxu0 %v282
    %1345 = vmatmul.mubr.bf16.gmra.mrb[0].mxu0 %v281
    %v1346 = vpop.f32.mrb[0].mxu0
    %v1347 = vadd.f32 %v370, %v1346
    %v1348 = vpop.f32.mrb[0].mxu0
    %v1349 = vadd.f32 %v374, %v1348
    %v1350 = vpop.f32.mrb[0].mxu0
    %v1351 = vadd.f32 %v370, %v1350
    %v1352 = vpop.f32.mrb[0].mxu0
    %v1353 = vadd.f32 %v374, %v1352
    %1354 = vmatprep.mubr.bf16.mxu0 %v284
    %1355 = vmatmul.mubr.bf16.gmra.mrb[0].mxu0 %v283
    %v1356 = vpop.f32.mrb[0].mxu0
    %v1357 = vadd.f32 %v370, %v1356
    %v1358 = vpop.f32.mrb[0].mxu0
    %v1359 = vadd.f32 %v374, %v1358
    %v1360 = vpop.f32.mrb[0].mxu0
    %v1361 = vadd.f32 %v370, %v1360
    %v1362 = vpop.f32.mrb[0].mxu0
    %v1363 = vadd.f32 %v374, %v1362
    %1364 = vmatprep.mubr.bf16.mxu0 %v286
    %1365 = vmatmul.mubr.bf16.gmra.mrb[0].mxu0 %v285
    %v1366 = vpop.f32.mrb[0].mxu0
    %v1367 = vadd.f32 %v370, %v1366
    %v1368 = vpop.f32.mrb[0].mxu0
    %v1369 = vadd.f32 %v374, %v1368
    %v1370 = vpop.f32.mrb[0].mxu0
    %v1371 = vadd.f32 %v370, %v1370
    %v1372 = vpop.f32.mrb[0].mxu0
    %v1373 = vadd.f32 %v374, %v1372
    %1374 = vmatprep.mubr.bf16.mxu0 %v288
    %1375 = vmatmul.mubr.bf16.gmra.mrb[0].mxu0 %v287
    %v1376 = vpop.f32.mrb[0].mxu0
    %v1377 = vadd.f32 %v370, %v1376
    %v1378 = vpop.f32.mrb[0].mxu0
    %v1379 = vadd.f32 %v374, %v1378
    %v1380 = vpop.f32.mrb[0].mxu0
    %v1381 = vadd.f32 %v370, %v1380
    %v1382 = vpop.f32.mrb[0].mxu0
    %v1383 = vadd.f32 %v374, %v1382
    %1384 = vmatprep.mubr.bf16.mxu0 %v290
    %1385 = vmatmul.mubr.bf16.gmra.mrb[0].mxu0 %v289
    %v1386 = vpop.f32.mrb[0].mxu0
    %v1387 = vadd.f32 %v370, %v1386
    %v1388 = vpop.f32.mrb[0].mxu0
    %v1389 = vadd.f32 %v374, %v1388
    %v1390 = vpop.f32.mrb[0].mxu0
    %v1391 = vadd.f32 %v370, %v1390
    %v1392 = vpop.f32.mrb[0].mxu0
    %v1393 = vadd.f32 %v374, %v1392
    %1394 = vmatprep.mubr.bf16.mxu0 %v292
    %1395 = vmatmul.mubr.bf16.gmra.mrb[0].mxu0 %v291
    %v1396 = vpop.f32.mrb[0].mxu0
    %v1397 = vadd.f32 %v370, %v1396
    %v1398 = vpop.f32.mrb[0].mxu0
    %v1399 = vadd.f32 %v374, %v1398
    %v1400 = vpop.f32.mrb[0].mxu0
    %v1401 = vadd.f32 %v370, %v1400
    %v1402 = vpop.f32.mrb[0].mxu0
    %v1403 = vadd.f32 %v374, %v1402
    %1404 = vdwg.mxu0
    %v1405 = vmax.f32 %v734, 0.0
    %v1406 = vmax.f32 %v736, 0.0
    %v1407 = vmax.f32 %v1087, 0.0
    %v1408 = vmax.f32 %v1089, 0.0
    %v1409 = vmax.f32 %v738, 0.0
    %v1410 = vmax.f32 %v740, 0.0
    %v1411 = vmax.f32 %v1091, 0.0
    %v1412 = vmax.f32 %v1093, 0.0
    %v1413 = vmax.f32 %v744, 0.0
    %v1414 = vmax.f32 %v746, 0.0
    %v1415 = vmax.f32 %v1097, 0.0
    %v1416 = vmax.f32 %v1099, 0.0
    %v1417 = vmax.f32 %v748, 0.0
    %v1418 = vmax.f32 %v750, 0.0
    %v1419 = vmax.f32 %v1101, 0.0
    %v1420 = vmax.f32 %v1103, 0.0
    %v1421 = vmax.f32 %v754, 0.0
    %v1422 = vmax.f32 %v756, 0.0
    %v1423 = vmax.f32 %v1107, 0.0
    %v1424 = vmax.f32 %v1109, 0.0
    %v1425 = vmax.f32 %v758, 0.0
    %v1426 = vmax.f32 %v760, 0.0
    %v1427 = vmax.f32 %v1111, 0.0
    %v1428 = vmax.f32 %v1113, 0.0
    %v1429 = vmax.f32 %v764, 0.0
    %v1430 = vmax.f32 %v766, 0.0
    %v1431 = vmax.f32 %v1117, 0.0
    %v1432 = vmax.f32 %v1119, 0.0
    %v1433 = vmax.f32 %v768, 0.0
    %v1434 = vmax.f32 %v770, 0.0
    %v1435 = vmax.f32 %v1121, 0.0
    %v1436 = vmax.f32 %v1123, 0.0
    %v1437 = vmax.f32 %v774, 0.0
    %v1438 = vmax.f32 %v776, 0.0
    %v1439 = vmax.f32 %v1127, 0.0
    %v1440 = vmax.f32 %v1129, 0.0
    %v1441 = vmax.f32 %v778, 0.0
    %v1442 = vmax.f32 %v780, 0.0
    %v1443 = vmax.f32 %v1131, 0.0
    %v1444 = vmax.f32 %v1133, 0.0
    %v1445 = vmax.f32 %v784, 0.0
    %v1446 = vmax.f32 %v786, 0.0
    %v1447 = vmax.f32 %v1137, 0.0
    %v1448 = vmax.f32 %v1139, 0.0
    %v1449 = vmax.f32 %v788, 0.0
    %v1450 = vmax.f32 %v790, 0.0
    %v1451 = vmax.f32 %v1141, 0.0
    %v1452 = vmax.f32 %v1143, 0.0
    %v1453 = vmax.f32 %v794, 0.0
    %v1454 = vmax.f32 %v796, 0.0
    %v1455 = vmax.f32 %v1147, 0.0
    %v1456 = vmax.f32 %v1149, 0.0
    %v1457 = vmax.f32 %v798, 0.0
    %v1458 = vmax.f32 %v800, 0.0
    %v1459 = vmax.f32 %v1151, 0.0
    %v1460 = vmax.f32 %v1153, 0.0
    %v1461 = vmax.f32 %v804, 0.0
    %v1462 = vmax.f32 %v806, 0.0
    %v1463 = vmax.f32 %v1157, 0.0
    %v1464 = vmax.f32 %v1159, 0.0
    %v1465 = vmax.f32 %v808, 0.0
    %v1466 = vmax.f32 %v810, 0.0
    %v1467 = vmax.f32 %v1161, 0.0
    %v1468 = vmax.f32 %v1163, 0.0
    %v1469 = vmax.f32 %v814, 0.0
    %v1470 = vmax.f32 %v816, 0.0
    %v1471 = vmax.f32 %v1167, 0.0
    %v1472 = vmax.f32 %v1169, 0.0
    %v1473 = vmax.f32 %v818, 0.0
    %v1474 = vmax.f32 %v820, 0.0
    %v1475 = vmax.f32 %v1171, 0.0
    %v1476 = vmax.f32 %v1173, 0.0
    %v1477 = vmax.f32 %v824, 0.0
    %v1478 = vmax.f32 %v826, 0.0
    %v1479 = vmax.f32 %v1177, 0.0
    %v1480 = vmax.f32 %v1179, 0.0
    %v1481 = vmax.f32 %v828, 0.0
    %v1482 = vmax.f32 %v830, 0.0
    %v1483 = vmax.f32 %v1181, 0.0
    %v1484 = vmax.f32 %v1183, 0.0
    %v1485 = vmax.f32 %v834, 0.0
    %v1486 = vmax.f32 %v836, 0.0
    %v1487 = vmax.f32 %v1187, 0.0
    %v1488 = vmax.f32 %v1189, 0.0
    %v1489 = vmax.f32 %v838, 0.0
    %v1490 = vmax.f32 %v840, 0.0
    %v1491 = vmax.f32 %v1191, 0.0
    %v1492 = vmax.f32 %v1193, 0.0
    %v1493 = vmax.f32 %v844, 0.0
    %v1494 = vmax.f32 %v846, 0.0
    %v1495 = vmax.f32 %v1197, 0.0
    %v1496 = vmax.f32 %v1199, 0.0
    %v1497 = vmax.f32 %v848, 0.0
    %v1498 = vmax.f32 %v850, 0.0
    %v1499 = vmax.f32 %v1201, 0.0
    %v1500 = vmax.f32 %v1203, 0.0
    %v1501 = vmax.f32 %v854, 0.0
    %v1502 = vmax.f32 %v856, 0.0
    %v1503 = vmax.f32 %v1207, 0.0
    %v1504 = vmax.f32 %v1209, 0.0
    %v1505 = vmax.f32 %v858, 0.0
    %v1506 = vmax.f32 %v860, 0.0
    %v1507 = vmax.f32 %v1211, 0.0
    %v1508 = vmax.f32 %v1213, 0.0
    %v1509 = vmax.f32 %v864, 0.0
    %v1510 = vmax.f32 %v866, 0.0
    %v1511 = vmax.f32 %v1217, 0.0
    %v1512 = vmax.f32 %v1219, 0.0
    %v1513 = vmax.f32 %v868, 0.0
    %v1514 = vmax.f32 %v870, 0.0
    %v1515 = vmax.f32 %v1221, 0.0
    %v1516 = vmax.f32 %v1223, 0.0
    %v1517 = vmax.f32 %v874, 0.0
    %v1518 = vmax.f32 %v876, 0.0
    %v1519 = vmax.f32 %v1227, 0.0
    %v1520 = vmax.f32 %v1229, 0.0
    %v1521 = vmax.f32 %v878, 0.0
    %v1522 = vmax.f32 %v880, 0.0
    %v1523 = vmax.f32 %v1231, 0.0
    %v1524 = vmax.f32 %v1233, 0.0
    %v1525 = vmax.f32 %v884, 0.0
    %v1526 = vmax.f32 %v886, 0.0
    %v1527 = vmax.f32 %v1237, 0.0
    %v1528 = vmax.f32 %v1239, 0.0
    %v1529 = vmax.f32 %v888, 0.0
    %v1530 = vmax.f32 %v890, 0.0
    %v1531 = vmax.f32 %v1241, 0.0
    %v1532 = vmax.f32 %v1243, 0.0
    %v1533 = vmax.f32 %v894, 0.0
    %v1534 = vmax.f32 %v896, 0.0
    %v1535 = vmax.f32 %v1247, 0.0
    %v1536 = vmax.f32 %v1249, 0.0
    %v1537 = vmax.f32 %v898, 0.0
    %v1538 = vmax.f32 %v900, 0.0
    %v1539 = vmax.f32 %v1251, 0.0
    %v1540 = vmax.f32 %v1253, 0.0
    %v1541 = vmax.f32 %v904, 0.0
    %v1542 = vmax.f32 %v906, 0.0
    %v1543 = vmax.f32 %v1257, 0.0
    %v1544 = vmax.f32 %v1259, 0.0
    %v1545 = vmax.f32 %v908, 0.0
    %v1546 = vmax.f32 %v910, 0.0
    %v1547 = vmax.f32 %v1261, 0.0
    %v1548 = vmax.f32 %v1263, 0.0
    %v1549 = vmax.f32 %v914, 0.0
    %v1550 = vmax.f32 %v916, 0.0
    %v1551 = vmax.f32 %v1267, 0.0
    %v1552 = vmax.f32 %v1269, 0.0
    %v1553 = vmax.f32 %v918, 0.0
    %v1554 = vmax.f32 %v920, 0.0
    %v1555 = vmax.f32 %v1271, 0.0
    %v1556 = vmax.f32 %v1273, 0.0
    %v1557 = vmax.f32 %v924, 0.0
    %v1558 = vmax.f32 %v926, 0.0
    %v1559 = vmax.f32 %v1277, 0.0
    %v1560 = vmax.f32 %v1279, 0.0
    %v1561 = vmax.f32 %v928, 0.0
    %v1562 = vmax.f32 %v930, 0.0
    %v1563 = vmax.f32 %v1281, 0.0
    %v1564 = vmax.f32 %v1283, 0.0
    %v1565 = vmax.f32 %v934, 0.0
    %v1566 = vmax.f32 %v936, 0.0
    %v1567 = vmax.f32 %v1287, 0.0
    %v1568 = vmax.f32 %v1289, 0.0
    %v1569 = vmax.f32 %v938, 0.0
    %v1570 = vmax.f32 %v940, 0.0
    %v1571 = vmax.f32 %v1291, 0.0
    %v1572 = vmax.f32 %v1293, 0.0
    %v1573 = vmax.f32 %v944, 0.0
    %v1574 = vmax.f32 %v946, 0.0
    %v1575 = vmax.f32 %v1297, 0.0
    %v1576 = vmax.f32 %v1299, 0.0
    %v1577 = vmax.f32 %v948, 0.0
    %v1578 = vmax.f32 %v950, 0.0
    %v1579 = vmax.f32 %v1301, 0.0
    %v1580 = vmax.f32 %v1303, 0.0
    %v1581 = vmax.f32 %v954, 0.0
    %v1582 = vmax.f32 %v956, 0.0
    %v1583 = vmax.f32 %v1307, 0.0
    %v1584 = vmax.f32 %v1309, 0.0
    %v1585 = vmax.f32 %v958, 0.0
    %v1586 = vmax.f32 %v960, 0.0
    %v1587 = vmax.f32 %v1311, 0.0
    %v1588 = vmax.f32 %v1313, 0.0
    %v1589 = vmax.f32 %v964, 0.0
    %v1590 = vmax.f32 %v966, 0.0
    %v1591 = vmax.f32 %v1317, 0.0
    %v1592 = vmax.f32 %v1319, 0.0
    %v1593 = vmax.f32 %v968, 0.0
    %v1594 = vmax.f32 %v970, 0.0
    %v1595 = vmax.f32 %v1321, 0.0
    %v1596 = vmax.f32 %v1323, 0.0
    %v1597 = vmax.f32 %v974, 0.0
    %v1598 = vmax.f32 %v976, 0.0
    %v1599 = vmax.f32 %v1327, 0.0
    %v1600 = vmax.f32 %v1329, 0.0
    %v1601 = vmax.f32 %v978, 0.0
    %v1602 = vmax.f32 %v980, 0.0
    %v1603 = vmax.f32 %v1331, 0.0
    %v1604 = vmax.f32 %v1333, 0.0
    %v1605 = vmax.f32 %v984, 0.0
    %v1606 = vmax.f32 %v986, 0.0
    %v1607 = vmax.f32 %v1337, 0.0
    %v1608 = vmax.f32 %v1339, 0.0
    %v1609 = vmax.f32 %v988, 0.0
    %v1610 = vmax.f32 %v990, 0.0
    %v1611 = vmax.f32 %v1341, 0.0
    %v1612 = vmax.f32 %v1343, 0.0
    %v1613 = vmax.f32 %v994, 0.0
    %v1614 = vmax.f32 %v996, 0.0
    %v1615 = vmax.f32 %v1347, 0.0
    %v1616 = vmax.f32 %v1349, 0.0
    %v1617 = vmax.f32 %v998, 0.0
    %v1618 = vmax.f32 %v1000, 0.0
    %v1619 = vmax.f32 %v1351, 0.0
    %v1620 = vmax.f32 %v1353, 0.0
    %v1621 = vmax.f32 %v1004, 0.0
    %v1622 = vmax.f32 %v1006, 0.0
    %v1623 = vmax.f32 %v1357, 0.0
    %v1624 = vmax.f32 %v1359, 0.0
    %v1625 = vmax.f32 %v1008, 0.0
    %v1626 = vmax.f32 %v1010, 0.0
    %v1627 = vmax.f32 %v1361, 0.0
    %v1628 = vmax.f32 %v1363, 0.0
    %v1629 = vmax.f32 %v1014, 0.0
    %v1630 = vmax.f32 %v1016, 0.0
    %v1631 = vmax.f32 %v1367, 0.0
    %v1632 = vmax.f32 %v1369, 0.0
    %v1633 = vmax.f32 %v1018, 0.0
    %v1634 = vmax.f32 %v1020, 0.0
    %v1635 = vmax.f32 %v1371, 0.0
    %v1636 = vmax.f32 %v1373, 0.0
    %v1637 = vmax.f32 %v1024, 0.0
    %v1638 = vmax.f32 %v1026, 0.0
    %v1639 = vmax.f32 %v1377, 0.0
    %v1640 = vmax.f32 %v1379, 0.0
    %v1641 = vmax.f32 %v1028, 0.0
    %v1642 = vmax.f32 %v1030, 0.0
    %v1643 = vmax.f32 %v1381, 0.0
    %v1644 = vmax.f32 %v1383, 0.0
    %v1645 = vmax.f32 %v1034, 0.0
    %v1646 = vmax.f32 %v1036, 0.0
    %v1647 = vmax.f32 %v1387, 0.0
    %v1648 = vmax.f32 %v1389, 0.0
    %v1649 = vmax.f32 %v1038, 0.0
    %v1650 = vmax.f32 %v1040, 0.0
    %v1651 = vmax.f32 %v1391, 0.0
    %v1652 = vmax.f32 %v1393, 0.0
    %v1653 = vmax.f32 %v1044, 0.0
    %v1654 = vmax.f32 %v1046, 0.0
    %v1655 = vmax.f32 %v1397, 0.0
    %v1656 = vmax.f32 %v1399, 0.0
    %v1657 = vmax.f32 %v1048, 0.0
    %v1658 = vmax.f32 %v1050, 0.0
    %v1659 = vmax.f32 %v1401, 0.0
    %v1660 = vmax.f32 %v1403, 0.0
    %v1661 = vpack.c.bf16 %v1409, %v1405
    %v1662 = vpack.c.bf16 %v1410, %v1406
    %v1663 = vpack.c.bf16 %v1411, %v1407
    %v1664 = vpack.c.bf16 %v1412, %v1408
    %v1665 = vpack.c.bf16 %v1417, %v1413
    %v1666 = vpack.c.bf16 %v1418, %v1414
    %v1667 = vpack.c.bf16 %v1419, %v1415
    %v1668 = vpack.c.bf16 %v1420, %v1416
    %v1669 = vpack.c.bf16 %v1425, %v1421
    %v1670 = vpack.c.bf16 %v1426, %v1422
    %v1671 = vpack.c.bf16 %v1427, %v1423
    %v1672 = vpack.c.bf16 %v1428, %v1424
    %v1673 = vpack.c.bf16 %v1433, %v1429
    %v1674 = vpack.c.bf16 %v1434, %v1430
    %v1675 = vpack.c.bf16 %v1435, %v1431
    %v1676 = vpack.c.bf16 %v1436, %v1432
    %v1677 = vpack.c.bf16 %v1441, %v1437
    %v1678 = vpack.c.bf16 %v1442, %v1438
    %v1679 = vpack.c.bf16 %v1443, %v1439
    %v1680 = vpack.c.bf16 %v1444, %v1440
    %v1681 = vpack.c.bf16 %v1449, %v1445
    %v1682 = vpack.c.bf16 %v1450, %v1446
    %v1683 = vpack.c.bf16 %v1451, %v1447
    %v1684 = vpack.c.bf16 %v1452, %v1448
    %v1685 = vpack.c.bf16 %v1457, %v1453
    %v1686 = vpack.c.bf16 %v1458, %v1454
    %v1687 = vpack.c.bf16 %v1459, %v1455
    %v1688 = vpack.c.bf16 %v1460, %v1456
    %v1689 = vpack.c.bf16 %v1465, %v1461
    %v1690 = vpack.c.bf16 %v1466, %v1462
    %v1691 = vpack.c.bf16 %v1467, %v1463
    %v1692 = vpack.c.bf16 %v1468, %v1464
    %v1693 = vpack.c.bf16 %v1473, %v1469
    %v1694 = vpack.c.bf16 %v1474, %v1470
    %v1695 = vpack.c.bf16 %v1475, %v1471
    %v1696 = vpack.c.bf16 %v1476, %v1472
    %v1697 = vpack.c.bf16 %v1481, %v1477
    %v1698 = vpack.c.bf16 %v1482, %v1478
    %v1699 = vpack.c.bf16 %v1483, %v1479
    %v1700 = vpack.c.bf16 %v1484, %v1480
    %v1701 = vpack.c.bf16 %v1489, %v1485
    %v1702 = vpack.c.bf16 %v1490, %v1486
    %v1703 = vpack.c.bf16 %v1491, %v1487
    %v1704 = vpack.c.bf16 %v1492, %v1488
    %v1705 = vpack.c.bf16 %v1497, %v1493
    %v1706 = vpack.c.bf16 %v1498, %v1494
    %v1707 = vpack.c.bf16 %v1499, %v1495
    %v1708 = vpack.c.bf16 %v1500, %v1496
    %v1709 = vpack.c.bf16 %v1505, %v1501
    %v1710 = vpack.c.bf16 %v1506, %v1502
    %v1711 = vpack.c.bf16 %v1507, %v1503
    %v1712 = vpack.c.bf16 %v1508, %v1504
    %v1713 = vpack.c.bf16 %v1513, %v1509
    %v1714 = vpack.c.bf16 %v1514, %v1510
    %v1715 = vpack.c.bf16 %v1515, %v1511
    %v1716 = vpack.c.bf16 %v1516, %v1512
    %v1717 = vpack.c.bf16 %v1521, %v1517
    %v1718 = vpack.c.bf16 %v1522, %v1518
    %v1719 = vpack.c.bf16 %v1523, %v1519
    %v1720 = vpack.c.bf16 %v1524, %v1520
    %v1721 = vpack.c.bf16 %v1529, %v1525
    %v1722 = vpack.c.bf16 %v1530, %v1526
    %v1723 = vpack.c.bf16 %v1531, %v1527
    %v1724 = vpack.c.bf16 %v1532, %v1528
    %v1725 = vpack.c.bf16 %v1537, %v1533
    %v1726 = vpack.c.bf16 %v1538, %v1534
    %v1727 = vpack.c.bf16 %v1539, %v1535
    %v1728 = vpack.c.bf16 %v1540, %v1536
    %v1729 = vpack.c.bf16 %v1545, %v1541
    %v1730 = vpack.c.bf16 %v1546, %v1542
    %v1731 = vpack.c.bf16 %v1547, %v1543
    %v1732 = vpack.c.bf16 %v1548, %v1544
    %v1733 = vpack.c.bf16 %v1553, %v1549
    %v1734 = vpack.c.bf16 %v1554, %v1550
    %v1735 = vpack.c.bf16 %v1555, %v1551
    %v1736 = vpack.c.bf16 %v1556, %v1552
    %v1737 = vpack.c.bf16 %v1561, %v1557
    %v1738 = vpack.c.bf16 %v1562, %v1558
    %v1739 = vpack.c.bf16 %v1563, %v1559
    %v1740 = vpack.c.bf16 %v1564, %v1560
    %v1741 = vpack.c.bf16 %v1569, %v1565
    %v1742 = vpack.c.bf16 %v1570, %v1566
    %v1743 = vpack.c.bf16 %v1571, %v1567
    %v1744 = vpack.c.bf16 %v1572, %v1568
    %v1745 = vpack.c.bf16 %v1577, %v1573
    %v1746 = vpack.c.bf16 %v1578, %v1574
    %v1747 = vpack.c.bf16 %v1579, %v1575
    %v1748 = vpack.c.bf16 %v1580, %v1576
    %v1749 = vpack.c.bf16 %v1585, %v1581
    %v1750 = vpack.c.bf16 %v1586, %v1582
    %v1751 = vpack.c.bf16 %v1587, %v1583
    %v1752 = vpack.c.bf16 %v1588, %v1584
    %v1753 = vpack.c.bf16 %v1593, %v1589
    %v1754 = vpack.c.bf16 %v1594, %v1590
    %v1755 = vpack.c.bf16 %v1595, %v1591
    %v1756 = vpack.c.bf16 %v1596, %v1592
    %v1757 = vpack.c.bf16 %v1601, %v1597
    %v1758 = vpack.c.bf16 %v1602, %v1598
    %v1759 = vpack.c.bf16 %v1603, %v1599
    %v1760 = vpack.c.bf16 %v1604, %v1600
    %v1761 = vpack.c.bf16 %v1609, %v1605
    %v1762 = vpack.c.bf16 %v1610, %v1606
    %v1763 = vpack.c.bf16 %v1611, %v1607
    %v1764 = vpack.c.bf16 %v1612, %v1608
    %v1765 = vpack.c.bf16 %v1617, %v1613
    %v1766 = vpack.c.bf16 %v1618, %v1614
    %v1767 = vpack.c.bf16 %v1619, %v1615
    %v1768 = vpack.c.bf16 %v1620, %v1616
    %v1769 = vpack.c.bf16 %v1625, %v1621
    %v1770 = vpack.c.bf16 %v1626, %v1622
    %v1771 = vpack.c.bf16 %v1627, %v1623
    %v1772 = vpack.c.bf16 %v1628, %v1624
    %v1773 = vpack.c.bf16 %v1633, %v1629
    %v1774 = vpack.c.bf16 %v1634, %v1630
    %v1775 = vpack.c.bf16 %v1635, %v1631
    %v1776 = vpack.c.bf16 %v1636, %v1632
    %v1777 = vpack.c.bf16 %v1641, %v1637
    %v1778 = vpack.c.bf16 %v1642, %v1638
    %v1779 = vpack.c.bf16 %v1643, %v1639
    %v1780 = vpack.c.bf16 %v1644, %v1640
    %v1781 = vpack.c.bf16 %v1649, %v1645
    %v1782 = vpack.c.bf16 %v1650, %v1646
    %v1783 = vpack.c.bf16 %v1651, %v1647
    %v1784 = vpack.c.bf16 %v1652, %v1648
    %v1785 = vpack.c.bf16 %v1657, %v1653
    %v1786 = vpack.c.bf16 %v1658, %v1654
    %v1787 = vpack.c.bf16 %v1659, %v1655
    %v1788 = vpack.c.bf16 %v1660, %v1656
    %v1789 = vld [vmem:[#allocation7] sm:$0xff]
    %v1790 = vld [vmem:[#allocation7 + $0x8] sm:$0xff]
    %v1791 = vld [vmem:[#allocation7 + $0x10] sm:$0xff]
    %v1792 = vld [vmem:[#allocation7 + $0x18] sm:$0xff]
    %v1793 = vld [vmem:[#allocation7 + $0x20] sm:$0xff]
    %v1794 = vld [vmem:[#allocation7 + $0x28] sm:$0xff]
    %v1795 = vld [vmem:[#allocation7 + $0x30] sm:$0xff]
    %v1796 = vld [vmem:[#allocation7 + $0x38] sm:$0xff]
    %v1797 = vld [vmem:[#allocation7 + $0x40] sm:$0xff]
    %v1798 = vld [vmem:[#allocation7 + $0x48] sm:$0xff]
    %v1799 = vld [vmem:[#allocation7 + $0x50] sm:$0xff]
    %v1800 = vld [vmem:[#allocation7 + $0x58] sm:$0xff]
    %v1801 = vld [vmem:[#allocation7 + $0x60] sm:$0xff]
    %v1802 = vld [vmem:[#allocation7 + $0x68] sm:$0xff]
    %v1803 = vld [vmem:[#allocation7 + $0x70] sm:$0xff]
    %v1804 = vld [vmem:[#allocation7 + $0x78] sm:$0xff]
    %v1805 = vld [vmem:[#allocation7 + $0x80] sm:$0xff]
    %v1806 = vld [vmem:[#allocation7 + $0x88] sm:$0xff]
    %v1807 = vld [vmem:[#allocation7 + $0x90] sm:$0xff]
    %v1808 = vld [vmem:[#allocation7 + $0x98] sm:$0xff]
    %v1809 = vld [vmem:[#allocation7 + $0xa0] sm:$0xff]
    %v1810 = vld [vmem:[#allocation7 + $0xa8] sm:$0xff]
    %v1811 = vld [vmem:[#allocation7 + $0xb0] sm:$0xff]
    %v1812 = vld [vmem:[#allocation7 + $0xb8] sm:$0xff]
    %v1813 = vld [vmem:[#allocation7 + $0xc0] sm:$0xff]
    %v1814 = vld [vmem:[#allocation7 + $0xc8] sm:$0xff]
    %v1815 = vld [vmem:[#allocation7 + $0xd0] sm:$0xff]
    %v1816 = vld [vmem:[#allocation7 + $0xd8] sm:$0xff]
    %v1817 = vld [vmem:[#allocation7 + $0xe0] sm:$0xff]
    %v1818 = vld [vmem:[#allocation7 + $0xe8] sm:$0xff]
    %v1819 = vld [vmem:[#allocation7 + $0xf0] sm:$0xff]
    %v1820 = vld [vmem:[#allocation7 + $0xf8] sm:$0xff]
    %v1821 = vld [vmem:[#allocation7 + $0x100] sm:$0xff]
    %v1822 = vld [vmem:[#allocation7 + $0x108] sm:$0xff]
    %v1823 = vld [vmem:[#allocation7 + $0x110] sm:$0xff]
    %v1824 = vld [vmem:[#allocation7 + $0x118] sm:$0xff]
    %v1825 = vld [vmem:[#allocation7 + $0x120] sm:$0xff]
    %v1826 = vld [vmem:[#allocation7 + $0x128] sm:$0xff]
    %v1827 = vld [vmem:[#allocation7 + $0x130] sm:$0xff]
    %v1828 = vld [vmem:[#allocation7 + $0x138] sm:$0xff]
    %v1829 = vld [vmem:[#allocation7 + $0x140] sm:$0xff]
    %v1830 = vld [vmem:[#allocation7 + $0x148] sm:$0xff]
    %v1831 = vld [vmem:[#allocation7 + $0x150] sm:$0xff]
    %v1832 = vld [vmem:[#allocation7 + $0x158] sm:$0xff]
    %v1833 = vld [vmem:[#allocation7 + $0x160] sm:$0xff]
    %v1834 = vld [vmem:[#allocation7 + $0x168] sm:$0xff]
    %v1835 = vld [vmem:[#allocation7 + $0x170] sm:$0xff]
    %v1836 = vld [vmem:[#allocation7 + $0x178] sm:$0xff]
    %v1837 = vld [vmem:[#allocation7 + $0x180] sm:$0xff]
    %v1838 = vld [vmem:[#allocation7 + $0x188] sm:$0xff]
    %v1839 = vld [vmem:[#allocation7 + $0x190] sm:$0xff]
    %v1840 = vld [vmem:[#allocation7 + $0x198] sm:$0xff]
    %v1841 = vld [vmem:[#allocation7 + $0x1a0] sm:$0xff]
    %v1842 = vld [vmem:[#allocation7 + $0x1a8] sm:$0xff]
    %v1843 = vld [vmem:[#allocation7 + $0x1b0] sm:$0xff]
    %v1844 = vld [vmem:[#allocation7 + $0x1b8] sm:$0xff]
    %v1845 = vld [vmem:[#allocation7 + $0x1c0] sm:$0xff]
    %v1846 = vld [vmem:[#allocation7 + $0x1c8] sm:$0xff]
    %v1847 = vld [vmem:[#allocation7 + $0x1d0] sm:$0xff]
    %v1848 = vld [vmem:[#allocation7 + $0x1d8] sm:$0xff]
    %v1849 = vld [vmem:[#allocation7 + $0x1e0] sm:$0xff]
    %v1850 = vld [vmem:[#allocation7 + $0x1e8] sm:$0xff]
    %v1851 = vld [vmem:[#allocation7 + $0x1f0] sm:$0xff]
    %v1852 = vld [vmem:[#allocation7 + $0x1f8] sm:$0xff]
    %v1853 = vld [vmem:[%s4] sm:$0x3]
    %v1855 = vlaneseq
    %v1856 = vshrl.u32 %v1855, 7
    %v1857 = vsub.s32 0, %v1856
    %v1858 = vrot.slane %v1853, %v1857
    %v1859 = vlaneseq
    %v1860 = vshrl.u32 %v1859, 7
    %v1861 = vsub.s32 1, %v1860
    %v1862 = vrot.slane %v1853, %v1861
    %v1929 = vunpack.c.l.b16 %v1789
    %v1930 = vunpack.c.h.b16 %v1789
    %v1931 = vunpack.c.l.b16 %v1790
    %v1932 = vunpack.c.h.b16 %v1790
    %v1933 = vunpack.c.l.b16 %v1791
    %v1934 = vunpack.c.h.b16 %v1791
    %v1935 = vunpack.c.l.b16 %v1792
    %v1936 = vunpack.c.h.b16 %v1792
    %v1937 = vunpack.c.l.b16 %v1793
    %v1938 = vunpack.c.h.b16 %v1793
    %v1939 = vunpack.c.l.b16 %v1794
    %v1940 = vunpack.c.h.b16 %v1794
    %v1941 = vunpack.c.l.b16 %v1795
    %v1942 = vunpack.c.h.b16 %v1795
    %v1943 = vunpack.c.l.b16 %v1796
    %v1944 = vunpack.c.h.b16 %v1796
    %v1945 = vunpack.c.l.b16 %v1797
    %v1946 = vunpack.c.h.b16 %v1797
    %v1947 = vunpack.c.l.b16 %v1798
    %v1948 = vunpack.c.h.b16 %v1798
    %v1949 = vunpack.c.l.b16 %v1799
    %v1950 = vunpack.c.h.b16 %v1799
    %v1951 = vunpack.c.l.b16 %v1800
    %v1952 = vunpack.c.h.b16 %v1800
    %v1953 = vunpack.c.l.b16 %v1801
    %v1954 = vunpack.c.h.b16 %v1801
    %v1955 = vunpack.c.l.b16 %v1802
    %v1956 = vunpack.c.h.b16 %v1802
    %v1957 = vunpack.c.l.b16 %v1803
    %v1958 = vunpack.c.h.b16 %v1803
    %v1959 = vunpack.c.l.b16 %v1804
    %v1960 = vunpack.c.h.b16 %v1804
    %v1961 = vunpack.c.l.b16 %v1805
    %v1962 = vunpack.c.h.b16 %v1805
    %v1963 = vunpack.c.l.b16 %v1806
    %v1964 = vunpack.c.h.b16 %v1806
    %v1965 = vunpack.c.l.b16 %v1807
    %v1966 = vunpack.c.h.b16 %v1807
    %v1967 = vunpack.c.l.b16 %v1808
    %v1968 = vunpack.c.h.b16 %v1808
    %v1969 = vunpack.c.l.b16 %v1809
    %v1970 = vunpack.c.h.b16 %v1809
    %v1971 = vunpack.c.l.b16 %v1810
    %v1972 = vunpack.c.h.b16 %v1810
    %v1973 = vunpack.c.l.b16 %v1811
    %v1974 = vunpack.c.h.b16 %v1811
    %v1975 = vunpack.c.l.b16 %v1812
    %v1976 = vunpack.c.h.b16 %v1812
    %v1977 = vunpack.c.l.b16 %v1813
    %v1978 = vunpack.c.h.b16 %v1813
    %v1979 = vunpack.c.l.b16 %v1814
    %v1980 = vunpack.c.h.b16 %v1814
    %v1981 = vunpack.c.l.b16 %v1815
    %v1982 = vunpack.c.h.b16 %v1815
    %v1983 = vunpack.c.l.b16 %v1816
    %v1984 = vunpack.c.h.b16 %v1816
    %v1985 = vunpack.c.l.b16 %v1817
    %v1986 = vunpack.c.h.b16 %v1817
    %v1987 = vunpack.c.l.b16 %v1818
    %v1988 = vunpack.c.h.b16 %v1818
    %v1989 = vunpack.c.l.b16 %v1819
    %v1990 = vunpack.c.h.b16 %v1819
    %v1991 = vunpack.c.l.b16 %v1820
    %v1992 = vunpack.c.h.b16 %v1820
    %v1993 = vunpack.c.l.b16 %v1821
    %v1994 = vunpack.c.h.b16 %v1821
    %v1995 = vunpack.c.l.b16 %v1822
    %v1996 = vunpack.c.h.b16 %v1822
    %v1997 = vunpack.c.l.b16 %v1823
    %v1998 = vunpack.c.h.b16 %v1823
    %v1999 = vunpack.c.l.b16 %v1824
    %v2000 = vunpack.c.h.b16 %v1824
    %v2001 = vunpack.c.l.b16 %v1825
    %v2002 = vunpack.c.h.b16 %v1825
    %v2003 = vunpack.c.l.b16 %v1826
    %v2004 = vunpack.c.h.b16 %v1826
    %v2005 = vunpack.c.l.b16 %v1827
    %v2006 = vunpack.c.h.b16 %v1827
    %v2007 = vunpack.c.l.b16 %v1828
    %v2008 = vunpack.c.h.b16 %v1828
    %v2009 = vunpack.c.l.b16 %v1829
    %v2010 = vunpack.c.h.b16 %v1829
    %v2011 = vunpack.c.l.b16 %v1830
    %v2012 = vunpack.c.h.b16 %v1830
    %v2013 = vunpack.c.l.b16 %v1831
    %v2014 = vunpack.c.h.b16 %v1831
    %v2015 = vunpack.c.l.b16 %v1832
    %v2016 = vunpack.c.h.b16 %v1832
    %v2017 = vunpack.c.l.b16 %v1833
    %v2018 = vunpack.c.h.b16 %v1833
    %v2019 = vunpack.c.l.b16 %v1834
    %v2020 = vunpack.c.h.b16 %v1834
    %v2021 = vunpack.c.l.b16 %v1835
    %v2022 = vunpack.c.h.b16 %v1835
    %v2023 = vunpack.c.l.b16 %v1836
    %v2024 = vunpack.c.h.b16 %v1836
    %v2025 = vunpack.c.l.b16 %v1837
    %v2026 = vunpack.c.h.b16 %v1837
    %v2027 = vunpack.c.l.b16 %v1838
    %v2028 = vunpack.c.h.b16 %v1838
    %v2029 = vunpack.c.l.b16 %v1839
    %v2030 = vunpack.c.h.b16 %v1839
    %v2031 = vunpack.c.l.b16 %v1840
    %v2032 = vunpack.c.h.b16 %v1840
    %v2033 = vunpack.c.l.b16 %v1841
    %v2034 = vunpack.c.h.b16 %v1841
    %v2035 = vunpack.c.l.b16 %v1842
    %v2036 = vunpack.c.h.b16 %v1842
    %v2037 = vunpack.c.l.b16 %v1843
    %v2038 = vunpack.c.h.b16 %v1843
    %v2039 = vunpack.c.l.b16 %v1844
    %v2040 = vunpack.c.h.b16 %v1844
    %v2041 = vunpack.c.l.b16 %v1845
    %v2042 = vunpack.c.h.b16 %v1845
    %v2043 = vunpack.c.l.b16 %v1846
    %v2044 = vunpack.c.h.b16 %v1846
    %v2045 = vunpack.c.l.b16 %v1847
    %v2046 = vunpack.c.h.b16 %v1847
    %v2047 = vunpack.c.l.b16 %v1848
    %v2048 = vunpack.c.h.b16 %v1848
    %v2049 = vunpack.c.l.b16 %v1849
    %v2050 = vunpack.c.h.b16 %v1849
    %v2051 = vunpack.c.l.b16 %v1850
    %v2052 = vunpack.c.h.b16 %v1850
    %v2053 = vunpack.c.l.b16 %v1851
    %v2054 = vunpack.c.h.b16 %v1851
    %v2055 = vunpack.c.l.b16 %v1852
    %v2056 = vunpack.c.h.b16 %v1852
    %v2057 = vpack.c.b16 %v1931, %v1929
    %v2058 = vpack.c.b16 %v1932, %v1930
    %v2059 = vpack.c.b16 %v1935, %v1933
    %v2060 = vpack.c.b16 %v1936, %v1934
    %v2061 = vpack.c.b16 %v1939, %v1937
    %v2062 = vpack.c.b16 %v1940, %v1938
    %v2063 = vpack.c.b16 %v1943, %v1941
    %v2064 = vpack.c.b16 %v1944, %v1942
    %v2065 = vpack.c.b16 %v1947, %v1945
    %v2066 = vpack.c.b16 %v1948, %v1946
    %v2067 = vpack.c.b16 %v1951, %v1949
    %v2068 = vpack.c.b16 %v1952, %v1950
    %v2069 = vpack.c.b16 %v1955, %v1953
    %v2070 = vpack.c.b16 %v1956, %v1954
    %v2071 = vpack.c.b16 %v1959, %v1957
    %v2072 = vpack.c.b16 %v1960, %v1958
    %v2073 = vpack.c.b16 %v1963, %v1961
    %v2074 = vpack.c.b16 %v1964, %v1962
    %v2075 = vpack.c.b16 %v1967, %v1965
    %v2076 = vpack.c.b16 %v1968, %v1966
    %v2077 = vpack.c.b16 %v1971, %v1969
    %v2078 = vpack.c.b16 %v1972, %v1970
    %v2079 = vpack.c.b16 %v1975, %v1973
    %v2080 = vpack.c.b16 %v1976, %v1974
    %v2081 = vpack.c.b16 %v1979, %v1977
    %v2082 = vpack.c.b16 %v1980, %v1978
    %v2083 = vpack.c.b16 %v1983, %v1981
    %v2084 = vpack.c.b16 %v1984, %v1982
    %v2085 = vpack.c.b16 %v1987, %v1985
    %v2086 = vpack.c.b16 %v1988, %v1986
    %v2087 = vpack.c.b16 %v1991, %v1989
    %v2088 = vpack.c.b16 %v1992, %v1990
    %v2089 = vpack.c.b16 %v1995, %v1993
    %v2090 = vpack.c.b16 %v1996, %v1994
    %v2091 = vpack.c.b16 %v1999, %v1997
    %v2092 = vpack.c.b16 %v2000, %v1998
    %v2093 = vpack.c.b16 %v2003, %v2001
    %v2094 = vpack.c.b16 %v2004, %v2002
    %v2095 = vpack.c.b16 %v2007, %v2005
    %v2096 = vpack.c.b16 %v2008, %v2006
    %v2097 = vpack.c.b16 %v2011, %v2009
    %v2098 = vpack.c.b16 %v2012, %v2010
    %v2099 = vpack.c.b16 %v2015, %v2013
    %v2100 = vpack.c.b16 %v2016, %v2014
    %v2101 = vpack.c.b16 %v2019, %v2017
    %v2102 = vpack.c.b16 %v2020, %v2018
    %v2103 = vpack.c.b16 %v2023, %v2021
    %v2104 = vpack.c.b16 %v2024, %v2022
    %v2105 = vpack.c.b16 %v2027, %v2025
    %v2106 = vpack.c.b16 %v2028, %v2026
    %v2107 = vpack.c.b16 %v2031, %v2029
    %v2108 = vpack.c.b16 %v2032, %v2030
    %v2109 = vpack.c.b16 %v2035, %v2033
    %v2110 = vpack.c.b16 %v2036, %v2034
    %v2111 = vpack.c.b16 %v2039, %v2037
    %v2112 = vpack.c.b16 %v2040, %v2038
    %v2113 = vpack.c.b16 %v2043, %v2041
    %v2114 = vpack.c.b16 %v2044, %v2042
    %v2115 = vpack.c.b16 %v2047, %v2045
    %v2116 = vpack.c.b16 %v2048, %v2046
    %v2117 = vpack.c.b16 %v2051, %v2049
    %v2118 = vpack.c.b16 %v2052, %v2050
    %v2119 = vpack.c.b16 %v2055, %v2053
    %v2120 = vpack.c.b16 %v2056, %v2054
    %2185 = vmatprep.subr.bf16.mxu0 %v2058
    %2186 = vmatpush1.bf16.msra.mxu0 %v2057
    %2187 = vmatprep.subr.bf16.mxu0 %v2060
    %2188 = vmatpush1.bf16.msra.mxu0 %v2059
    %2189 = vmatprep.subr.bf16.mxu0 %v2062
    %2190 = vmatpush1.bf16.msra.mxu0 %v2061
    %2191 = vmatprep.subr.bf16.mxu0 %v2064
    %2192 = vmatpush1.bf16.msra.mxu0 %v2063
    %2193 = vmatprep.subr.bf16.mxu0 %v2066
    %2194 = vmatpush1.bf16.msra.mxu0 %v2065
    %2195 = vmatprep.subr.bf16.mxu0 %v2068
    %2196 = vmatpush1.bf16.msra.mxu0 %v2067
    %2197 = vmatprep.subr.bf16.mxu0 %v2070
    %2198 = vmatpush1.bf16.msra.mxu0 %v2069
    %2199 = vmatprep.subr.bf16.mxu0 %v2072
    %2200 = vmatpush1.bf16.msra.mxu0 %v2071
    %2201 = vmatprep.subr.bf16.mxu0 %v2074
    %2202 = vmatpush1.bf16.msra.mxu0 %v2073
    %2203 = vmatprep.subr.bf16.mxu0 %v2076
    %2204 = vmatpush1.bf16.msra.mxu0 %v2075
    %2205 = vmatprep.subr.bf16.mxu0 %v2078
    %2206 = vmatpush1.bf16.msra.mxu0 %v2077
    %2207 = vmatprep.subr.bf16.mxu0 %v2080
    %2208 = vmatpush1.bf16.msra.mxu0 %v2079
    %2209 = vmatprep.subr.bf16.mxu0 %v2082
    %2210 = vmatpush1.bf16.msra.mxu0 %v2081
    %2211 = vmatprep.subr.bf16.mxu0 %v2084
    %2212 = vmatpush1.bf16.msra.mxu0 %v2083
    %2213 = vmatprep.subr.bf16.mxu0 %v2086
    %2214 = vmatpush1.bf16.msra.mxu0 %v2085
    %2215 = vmatprep.subr.bf16.mxu0 %v2088
    %2216 = vmatpush1.bf16.msra.mxu0 %v2087
    %2217 = vmatprep.mubr.bf16.mxu0 %v1662
    %2218 = vmatmul.mubr.bf16.gmra.mrb[0].mxu0 %v1661
    %v2219 = vpop.f32.mrb[0].mxu0
    %v2220 = vadd.f32 %v1858, %v2219
    %v2221 = vpop.f32.mrb[0].mxu0
    %v2222 = vadd.f32 %v1862, %v2221
    %v2223 = vpop.f32.mrb[0].mxu0
    %v2224 = vadd.f32 %v1858, %v2223
    %v2225 = vpop.f32.mrb[0].mxu0
    %v2226 = vadd.f32 %v1862, %v2225
    %2227 = vmatprep.mubr.bf16.mxu0 %v1666
    %2228 = vmatmul.mubr.bf16.gmra.mrb[0].mxu0 %v1665
    %v2229 = vpop.f32.mrb[0].mxu0
    %v2230 = vadd.f32 %v1858, %v2229
    %v2231 = vpop.f32.mrb[0].mxu0
    %v2232 = vadd.f32 %v1862, %v2231
    %v2233 = vpop.f32.mrb[0].mxu0
    %v2234 = vadd.f32 %v1858, %v2233
    %v2235 = vpop.f32.mrb[0].mxu0
    %v2236 = vadd.f32 %v1862, %v2235
    %2237 = vmatprep.mubr.bf16.mxu0 %v1670
    %2238 = vmatmul.mubr.bf16.gmra.mrb[0].mxu0 %v1669
    %v2239 = vpop.f32.mrb[0].mxu0
    %v2240 = vadd.f32 %v1858, %v2239
    %v2241 = vpop.f32.mrb[0].mxu0
    %v2242 = vadd.f32 %v1862, %v2241
    %v2243 = vpop.f32.mrb[0].mxu0
    %v2244 = vadd.f32 %v1858, %v2243
    %v2245 = vpop.f32.mrb[0].mxu0
    %v2246 = vadd.f32 %v1862, %v2245
    %2247 = vmatprep.mubr.bf16.mxu0 %v1674
    %2248 = vmatmul.mubr.bf16.gmra.mrb[0].mxu0 %v1673
    %v2249 = vpop.f32.mrb[0].mxu0
    %v2250 = vadd.f32 %v1858, %v2249
    %v2251 = vpop.f32.mrb[0].mxu0
    %v2252 = vadd.f32 %v1862, %v2251
    %v2253 = vpop.f32.mrb[0].mxu0
    %v2254 = vadd.f32 %v1858, %v2253
    %v2255 = vpop.f32.mrb[0].mxu0
    %v2256 = vadd.f32 %v1862, %v2255
    %2257 = vmatprep.mubr.bf16.mxu0 %v1678
    %2258 = vmatmul.mubr.bf16.gmra.mrb[0].mxu0 %v1677
    %v2259 = vpop.f32.mrb[0].mxu0
    %v2260 = vadd.f32 %v1858, %v2259
    %v2261 = vpop.f32.mrb[0].mxu0
    %v2262 = vadd.f32 %v1862, %v2261
    %v2263 = vpop.f32.mrb[0].mxu0
    %v2264 = vadd.f32 %v1858, %v2263
    %v2265 = vpop.f32.mrb[0].mxu0
    %v2266 = vadd.f32 %v1862, %v2265
    %2267 = vmatprep.mubr.bf16.mxu0 %v1682
    %2268 = vmatmul.mubr.bf16.gmra.mrb[0].mxu0 %v1681
    %v2269 = vpop.f32.mrb[0].mxu0
    %v2270 = vadd.f32 %v1858, %v2269
    %v2271 = vpop.f32.mrb[0].mxu0
    %v2272 = vadd.f32 %v1862, %v2271
    %v2273 = vpop.f32.mrb[0].mxu0
    %v2274 = vadd.f32 %v1858, %v2273
    %v2275 = vpop.f32.mrb[0].mxu0
    %v2276 = vadd.f32 %v1862, %v2275
    %2277 = vmatprep.mubr.bf16.mxu0 %v1686
    %2278 = vmatmul.mubr.bf16.gmra.mrb[0].mxu0 %v1685
    %v2279 = vpop.f32.mrb[0].mxu0
    %v2280 = vadd.f32 %v1858, %v2279
    %v2281 = vpop.f32.mrb[0].mxu0
    %v2282 = vadd.f32 %v1862, %v2281
    %v2283 = vpop.f32.mrb[0].mxu0
    %v2284 = vadd.f32 %v1858, %v2283
    %v2285 = vpop.f32.mrb[0].mxu0
    %v2286 = vadd.f32 %v1862, %v2285
    %2287 = vmatprep.mubr.bf16.mxu0 %v1690
    %2288 = vmatmul.mubr.bf16.gmra.mrb[0].mxu0 %v1689
    %v2289 = vpop.f32.mrb[0].mxu0
    %v2290 = vadd.f32 %v1858, %v2289
    %v2291 = vpop.f32.mrb[0].mxu0
    %v2292 = vadd.f32 %v1862, %v2291
    %v2293 = vpop.f32.mrb[0].mxu0
    %v2294 = vadd.f32 %v1858, %v2293
    %v2295 = vpop.f32.mrb[0].mxu0
    %v2296 = vadd.f32 %v1862, %v2295
    %2297 = vmatprep.mubr.bf16.mxu0 %v1694
    %2298 = vmatmul.mubr.bf16.gmra.mrb[0].mxu0 %v1693
    %v2299 = vpop.f32.mrb[0].mxu0
    %v2300 = vadd.f32 %v1858, %v2299
    %v2301 = vpop.f32.mrb[0].mxu0
    %v2302 = vadd.f32 %v1862, %v2301
    %v2303 = vpop.f32.mrb[0].mxu0
    %v2304 = vadd.f32 %v1858, %v2303
    %v2305 = vpop.f32.mrb[0].mxu0
    %v2306 = vadd.f32 %v1862, %v2305
    %2307 = vmatprep.mubr.bf16.mxu0 %v1698
    %2308 = vmatmul.mubr.bf16.gmra.mrb[0].mxu0 %v1697
    %v2309 = vpop.f32.mrb[0].mxu0
    %v2310 = vadd.f32 %v1858, %v2309
    %v2311 = vpop.f32.mrb[0].mxu0
    %v2312 = vadd.f32 %v1862, %v2311
    %v2313 = vpop.f32.mrb[0].mxu0
    %v2314 = vadd.f32 %v1858, %v2313
    %v2315 = vpop.f32.mrb[0].mxu0
    %v2316 = vadd.f32 %v1862, %v2315
    %2317 = vmatprep.mubr.bf16.mxu0 %v1702
    %2318 = vmatmul.mubr.bf16.gmra.mrb[0].mxu0 %v1701
    %v2319 = vpop.f32.mrb[0].mxu0
    %v2320 = vadd.f32 %v1858, %v2319
    %v2321 = vpop.f32.mrb[0].mxu0
    %v2322 = vadd.f32 %v1862, %v2321
    %v2323 = vpop.f32.mrb[0].mxu0
    %v2324 = vadd.f32 %v1858, %v2323
    %v2325 = vpop.f32.mrb[0].mxu0
    %v2326 = vadd.f32 %v1862, %v2325
    %2327 = vmatprep.mubr.bf16.mxu0 %v1706
    %2328 = vmatmul.mubr.bf16.gmra.mrb[0].mxu0 %v1705
    %v2329 = vpop.f32.mrb[0].mxu0
    %v2330 = vadd.f32 %v1858, %v2329
    %v2331 = vpop.f32.mrb[0].mxu0
    %v2332 = vadd.f32 %v1862, %v2331
    %v2333 = vpop.f32.mrb[0].mxu0
    %v2334 = vadd.f32 %v1858, %v2333
    %v2335 = vpop.f32.mrb[0].mxu0
    %v2336 = vadd.f32 %v1862, %v2335
    %2337 = vmatprep.mubr.bf16.mxu0 %v1710
    %2338 = vmatmul.mubr.bf16.gmra.mrb[0].mxu0 %v1709
    %v2339 = vpop.f32.mrb[0].mxu0
    %v2340 = vadd.f32 %v1858, %v2339
    %v2341 = vpop.f32.mrb[0].mxu0
    %v2342 = vadd.f32 %v1862, %v2341
    %v2343 = vpop.f32.mrb[0].mxu0
    %v2344 = vadd.f32 %v1858, %v2343
    %v2345 = vpop.f32.mrb[0].mxu0
    %v2346 = vadd.f32 %v1862, %v2345
    %2347 = vmatprep.mubr.bf16.mxu0 %v1714
    %2348 = vmatmul.mubr.bf16.gmra.mrb[0].mxu0 %v1713
    %v2349 = vpop.f32.mrb[0].mxu0
    %v2350 = vadd.f32 %v1858, %v2349
    %v2351 = vpop.f32.mrb[0].mxu0
    %v2352 = vadd.f32 %v1862, %v2351
    %v2353 = vpop.f32.mrb[0].mxu0
    %v2354 = vadd.f32 %v1858, %v2353
    %v2355 = vpop.f32.mrb[0].mxu0
    %v2356 = vadd.f32 %v1862, %v2355
    %2357 = vmatprep.mubr.bf16.mxu0 %v1718
    %2358 = vmatmul.mubr.bf16.gmra.mrb[0].mxu0 %v1717
    %v2359 = vpop.f32.mrb[0].mxu0
    %v2360 = vadd.f32 %v1858, %v2359
    %v2361 = vpop.f32.mrb[0].mxu0
    %v2362 = vadd.f32 %v1862, %v2361
    %v2363 = vpop.f32.mrb[0].mxu0
    %v2364 = vadd.f32 %v1858, %v2363
    %v2365 = vpop.f32.mrb[0].mxu0
    %v2366 = vadd.f32 %v1862, %v2365
    %2367 = vmatprep.mubr.bf16.mxu0 %v1722
    %2368 = vmatmul.mubr.bf16.gmra.mrb[0].mxu0 %v1721
    %v2369 = vpop.f32.mrb[0].mxu0
    %v2370 = vadd.f32 %v1858, %v2369
    %v2371 = vpop.f32.mrb[0].mxu0
    %v2372 = vadd.f32 %v1862, %v2371
    %v2373 = vpop.f32.mrb[0].mxu0
    %v2374 = vadd.f32 %v1858, %v2373
    %v2375 = vpop.f32.mrb[0].mxu0
    %v2376 = vadd.f32 %v1862, %v2375
    %2377 = vmatprep.mubr.bf16.mxu0 %v1726
    %2378 = vmatmul.mubr.bf16.gmra.mrb[0].mxu0 %v1725
    %v2379 = vpop.f32.mrb[0].mxu0
    %v2380 = vadd.f32 %v1858, %v2379
    %v2381 = vpop.f32.mrb[0].mxu0
    %v2382 = vadd.f32 %v1862, %v2381
    %v2383 = vpop.f32.mrb[0].mxu0
    %v2384 = vadd.f32 %v1858, %v2383
    %v2385 = vpop.f32.mrb[0].mxu0
    %v2386 = vadd.f32 %v1862, %v2385
    %2387 = vmatprep.mubr.bf16.mxu0 %v1730
    %2388 = vmatmul.mubr.bf16.gmra.mrb[0].mxu0 %v1729
    %v2389 = vpop.f32.mrb[0].mxu0
    %v2390 = vadd.f32 %v1858, %v2389
    %v2391 = vpop.f32.mrb[0].mxu0
    %v2392 = vadd.f32 %v1862, %v2391
    %v2393 = vpop.f32.mrb[0].mxu0
    %v2394 = vadd.f32 %v1858, %v2393
    %v2395 = vpop.f32.mrb[0].mxu0
    %v2396 = vadd.f32 %v1862, %v2395
    %2397 = vmatprep.mubr.bf16.mxu0 %v1734
    %2398 = vmatmul.mubr.bf16.gmra.mrb[0].mxu0 %v1733
    %v2399 = vpop.f32.mrb[0].mxu0
    %v2400 = vadd.f32 %v1858, %v2399
    %v2401 = vpop.f32.mrb[0].mxu0
    %v2402 = vadd.f32 %v1862, %v2401
    %v2403 = vpop.f32.mrb[0].mxu0
    %v2404 = vadd.f32 %v1858, %v2403
    %v2405 = vpop.f32.mrb[0].mxu0
    %v2406 = vadd.f32 %v1862, %v2405
    %2407 = vmatprep.mubr.bf16.mxu0 %v1738
    %2408 = vmatmul.mubr.bf16.gmra.mrb[0].mxu0 %v1737
    %v2409 = vpop.f32.mrb[0].mxu0
    %v2410 = vadd.f32 %v1858, %v2409
    %v2411 = vpop.f32.mrb[0].mxu0
    %v2412 = vadd.f32 %v1862, %v2411
    %v2413 = vpop.f32.mrb[0].mxu0
    %v2414 = vadd.f32 %v1858, %v2413
    %v2415 = vpop.f32.mrb[0].mxu0
    %v2416 = vadd.f32 %v1862, %v2415
    %2417 = vmatprep.mubr.bf16.mxu0 %v1742
    %2418 = vmatmul.mubr.bf16.gmra.mrb[0].mxu0 %v1741
    %v2419 = vpop.f32.mrb[0].mxu0
    %v2420 = vadd.f32 %v1858, %v2419
    %v2421 = vpop.f32.mrb[0].mxu0
    %v2422 = vadd.f32 %v1862, %v2421
    %v2423 = vpop.f32.mrb[0].mxu0
    %v2424 = vadd.f32 %v1858, %v2423
    %v2425 = vpop.f32.mrb[0].mxu0
    %v2426 = vadd.f32 %v1862, %v2425
    %2427 = vmatprep.mubr.bf16.mxu0 %v1746
    %2428 = vmatmul.mubr.bf16.gmra.mrb[0].mxu0 %v1745
    %v2429 = vpop.f32.mrb[0].mxu0
    %v2430 = vadd.f32 %v1858, %v2429
    %v2431 = vpop.f32.mrb[0].mxu0
    %v2432 = vadd.f32 %v1862, %v2431
    %v2433 = vpop.f32.mrb[0].mxu0
    %v2434 = vadd.f32 %v1858, %v2433
    %v2435 = vpop.f32.mrb[0].mxu0
    %v2436 = vadd.f32 %v1862, %v2435
    %2437 = vmatprep.mubr.bf16.mxu0 %v1750
    %2438 = vmatmul.mubr.bf16.gmra.mrb[0].mxu0 %v1749
    %v2439 = vpop.f32.mrb[0].mxu0
    %v2440 = vadd.f32 %v1858, %v2439
    %v2441 = vpop.f32.mrb[0].mxu0
    %v2442 = vadd.f32 %v1862, %v2441
    %v2443 = vpop.f32.mrb[0].mxu0
    %v2444 = vadd.f32 %v1858, %v2443
    %v2445 = vpop.f32.mrb[0].mxu0
    %v2446 = vadd.f32 %v1862, %v2445
    %2447 = vmatprep.mubr.bf16.mxu0 %v1754
    %2448 = vmatmul.mubr.bf16.gmra.mrb[0].mxu0 %v1753
    %v2449 = vpop.f32.mrb[0].mxu0
    %v2450 = vadd.f32 %v1858, %v2449
    %v2451 = vpop.f32.mrb[0].mxu0
    %v2452 = vadd.f32 %v1862, %v2451
    %v2453 = vpop.f32.mrb[0].mxu0
    %v2454 = vadd.f32 %v1858, %v2453
    %v2455 = vpop.f32.mrb[0].mxu0
    %v2456 = vadd.f32 %v1862, %v2455
    %2457 = vmatprep.mubr.bf16.mxu0 %v1758
    %2458 = vmatmul.mubr.bf16.gmra.mrb[0].mxu0 %v1757
    %v2459 = vpop.f32.mrb[0].mxu0
    %v2460 = vadd.f32 %v1858, %v2459
    %v2461 = vpop.f32.mrb[0].mxu0
    %v2462 = vadd.f32 %v1862, %v2461
    %v2463 = vpop.f32.mrb[0].mxu0
    %v2464 = vadd.f32 %v1858, %v2463
    %v2465 = vpop.f32.mrb[0].mxu0
    %v2466 = vadd.f32 %v1862, %v2465
    %2467 = vmatprep.mubr.bf16.mxu0 %v1762
    %2468 = vmatmul.mubr.bf16.gmra.mrb[0].mxu0 %v1761
    %v2469 = vpop.f32.mrb[0].mxu0
    %v2470 = vadd.f32 %v1858, %v2469
    %v2471 = vpop.f32.mrb[0].mxu0
    %v2472 = vadd.f32 %v1862, %v2471
    %v2473 = vpop.f32.mrb[0].mxu0
    %v2474 = vadd.f32 %v1858, %v2473
    %v2475 = vpop.f32.mrb[0].mxu0
    %v2476 = vadd.f32 %v1862, %v2475
    %2477 = vmatprep.mubr.bf16.mxu0 %v1766
    %2478 = vmatmul.mubr.bf16.gmra.mrb[0].mxu0 %v1765
    %v2479 = vpop.f32.mrb[0].mxu0
    %v2480 = vadd.f32 %v1858, %v2479
    %v2481 = vpop.f32.mrb[0].mxu0
    %v2482 = vadd.f32 %v1862, %v2481
    %v2483 = vpop.f32.mrb[0].mxu0
    %v2484 = vadd.f32 %v1858, %v2483
    %v2485 = vpop.f32.mrb[0].mxu0
    %v2486 = vadd.f32 %v1862, %v2485
    %2487 = vmatprep.mubr.bf16.mxu0 %v1770
    %2488 = vmatmul.mubr.bf16.gmra.mrb[0].mxu0 %v1769
    %v2489 = vpop.f32.mrb[0].mxu0
    %v2490 = vadd.f32 %v1858, %v2489
    %v2491 = vpop.f32.mrb[0].mxu0
    %v2492 = vadd.f32 %v1862, %v2491
    %v2493 = vpop.f32.mrb[0].mxu0
    %v2494 = vadd.f32 %v1858, %v2493
    %v2495 = vpop.f32.mrb[0].mxu0
    %v2496 = vadd.f32 %v1862, %v2495
    %2497 = vmatprep.mubr.bf16.mxu0 %v1774
    %2498 = vmatmul.mubr.bf16.gmra.mrb[0].mxu0 %v1773
    %v2499 = vpop.f32.mrb[0].mxu0
    %v2500 = vadd.f32 %v1858, %v2499
    %v2501 = vpop.f32.mrb[0].mxu0
    %v2502 = vadd.f32 %v1862, %v2501
    %v2503 = vpop.f32.mrb[0].mxu0
    %v2504 = vadd.f32 %v1858, %v2503
    %v2505 = vpop.f32.mrb[0].mxu0
    %v2506 = vadd.f32 %v1862, %v2505
    %2507 = vmatprep.mubr.bf16.mxu0 %v1778
    %2508 = vmatmul.mubr.bf16.gmra.mrb[0].mxu0 %v1777
    %v2509 = vpop.f32.mrb[0].mxu0
    %v2510 = vadd.f32 %v1858, %v2509
    %v2511 = vpop.f32.mrb[0].mxu0
    %v2512 = vadd.f32 %v1862, %v2511
    %v2513 = vpop.f32.mrb[0].mxu0
    %v2514 = vadd.f32 %v1858, %v2513
    %v2515 = vpop.f32.mrb[0].mxu0
    %v2516 = vadd.f32 %v1862, %v2515
    %2517 = vmatprep.mubr.bf16.mxu0 %v1782
    %2518 = vmatmul.mubr.bf16.gmra.mrb[0].mxu0 %v1781
    %v2519 = vpop.f32.mrb[0].mxu0
    %v2520 = vadd.f32 %v1858, %v2519
    %v2521 = vpop.f32.mrb[0].mxu0
    %v2522 = vadd.f32 %v1862, %v2521
    %v2523 = vpop.f32.mrb[0].mxu0
    %v2524 = vadd.f32 %v1858, %v2523
    %v2525 = vpop.f32.mrb[0].mxu0
    %v2526 = vadd.f32 %v1862, %v2525
    %2527 = vmatprep.mubr.bf16.mxu0 %v1786
    %2528 = vmatmul.mubr.bf16.gmra.mrb[0].mxu0 %v1785
    %v2529 = vpop.f32.mrb[0].mxu0
    %v2530 = vadd.f32 %v1858, %v2529
    %v2531 = vpop.f32.mrb[0].mxu0
    %v2532 = vadd.f32 %v1862, %v2531
    %v2533 = vpop.f32.mrb[0].mxu0
    %v2534 = vadd.f32 %v1858, %v2533
    %v2535 = vpop.f32.mrb[0].mxu0
    %v2536 = vadd.f32 %v1862, %v2535
    %2537 = vdwg.mxu0
    %2538 = vmatprep.subr.bf16.mxu0 %v2090
    %2539 = vmatpush1.bf16.msra.mxu0 %v2089
    %2540 = vmatprep.subr.bf16.mxu0 %v2092
    %2541 = vmatpush1.bf16.msra.mxu0 %v2091
    %2542 = vmatprep.subr.bf16.mxu0 %v2094
    %2543 = vmatpush1.bf16.msra.mxu0 %v2093
    %2544 = vmatprep.subr.bf16.mxu0 %v2096
    %2545 = vmatpush1.bf16.msra.mxu0 %v2095
    %2546 = vmatprep.subr.bf16.mxu0 %v2098
    %2547 = vmatpush1.bf16.msra.mxu0 %v2097
    %2548 = vmatprep.subr.bf16.mxu0 %v2100
    %2549 = vmatpush1.bf16.msra.mxu0 %v2099
    %2550 = vmatprep.subr.bf16.mxu0 %v2102
    %2551 = vmatpush1.bf16.msra.mxu0 %v2101
    %2552 = vmatprep.subr.bf16.mxu0 %v2104
    %2553 = vmatpush1.bf16.msra.mxu0 %v2103
    %2554 = vmatprep.subr.bf16.mxu0 %v2106
    %2555 = vmatpush1.bf16.msra.mxu0 %v2105
    %2556 = vmatprep.subr.bf16.mxu0 %v2108
    %2557 = vmatpush1.bf16.msra.mxu0 %v2107
    %2558 = vmatprep.subr.bf16.mxu0 %v2110
    %2559 = vmatpush1.bf16.msra.mxu0 %v2109
    %2560 = vmatprep.subr.bf16.mxu0 %v2112
    %2561 = vmatpush1.bf16.msra.mxu0 %v2111
    %2562 = vmatprep.subr.bf16.mxu0 %v2114
    %2563 = vmatpush1.bf16.msra.mxu0 %v2113
    %2564 = vmatprep.subr.bf16.mxu0 %v2116
    %2565 = vmatpush1.bf16.msra.mxu0 %v2115
    %2566 = vmatprep.subr.bf16.mxu0 %v2118
    %2567 = vmatpush1.bf16.msra.mxu0 %v2117
    %2568 = vmatprep.subr.bf16.mxu0 %v2120
    %2569 = vmatpush1.bf16.msra.mxu0 %v2119
    %2570 = vmatprep.mubr.bf16.mxu0 %v1664
    %2571 = vmatmul.mubr.bf16.gmra.mrb[0].mxu0 %v1663
    %v2572 = vpop.f32.mrb[0].mxu0
    %v2573 = vadd.f32 %v2220, %v2572
    %v2574 = vpop.f32.mrb[0].mxu0
    %v2575 = vadd.f32 %v2222, %v2574
    %v2576 = vpop.f32.mrb[0].mxu0
    %v2577 = vadd.f32 %v2224, %v2576
    %v2578 = vpop.f32.mrb[0].mxu0
    %v2579 = vadd.f32 %v2226, %v2578
    %2580 = vmatprep.mubr.bf16.mxu0 %v1668
    %2581 = vmatmul.mubr.bf16.gmra.mrb[0].mxu0 %v1667
    %v2582 = vpop.f32.mrb[0].mxu0
    %v2583 = vadd.f32 %v2230, %v2582
    %v2584 = vpop.f32.mrb[0].mxu0
    %v2585 = vadd.f32 %v2232, %v2584
    %v2586 = vpop.f32.mrb[0].mxu0
    %v2587 = vadd.f32 %v2234, %v2586
    %v2588 = vpop.f32.mrb[0].mxu0
    %v2589 = vadd.f32 %v2236, %v2588
    %2590 = vmatprep.mubr.bf16.mxu0 %v1672
    %2591 = vmatmul.mubr.bf16.gmra.mrb[0].mxu0 %v1671
    %v2592 = vpop.f32.mrb[0].mxu0
    %v2593 = vadd.f32 %v2240, %v2592
    %v2594 = vpop.f32.mrb[0].mxu0
    %v2595 = vadd.f32 %v2242, %v2594
    %v2596 = vpop.f32.mrb[0].mxu0
    %v2597 = vadd.f32 %v2244, %v2596
    %v2598 = vpop.f32.mrb[0].mxu0
    %v2599 = vadd.f32 %v2246, %v2598
    %2600 = vmatprep.mubr.bf16.mxu0 %v1676
    %2601 = vmatmul.mubr.bf16.gmra.mrb[0].mxu0 %v1675
    %v2602 = vpop.f32.mrb[0].mxu0
    %v2603 = vadd.f32 %v2250, %v2602
    %v2604 = vpop.f32.mrb[0].mxu0
    %v2605 = vadd.f32 %v2252, %v2604
    %v2606 = vpop.f32.mrb[0].mxu0
    %v2607 = vadd.f32 %v2254, %v2606
    %v2608 = vpop.f32.mrb[0].mxu0
    %v2609 = vadd.f32 %v2256, %v2608
    %2610 = vmatprep.mubr.bf16.mxu0 %v1680
    %2611 = vmatmul.mubr.bf16.gmra.mrb[0].mxu0 %v1679
    %v2612 = vpop.f32.mrb[0].mxu0
    %v2613 = vadd.f32 %v2260, %v2612
    %v2614 = vpop.f32.mrb[0].mxu0
    %v2615 = vadd.f32 %v2262, %v2614
    %v2616 = vpop.f32.mrb[0].mxu0
    %v2617 = vadd.f32 %v2264, %v2616
    %v2618 = vpop.f32.mrb[0].mxu0
    %v2619 = vadd.f32 %v2266, %v2618
    %2620 = vmatprep.mubr.bf16.mxu0 %v1684
    %2621 = vmatmul.mubr.bf16.gmra.mrb[0].mxu0 %v1683
    %v2622 = vpop.f32.mrb[0].mxu0
    %v2623 = vadd.f32 %v2270, %v2622
    %v2624 = vpop.f32.mrb[0].mxu0
    %v2625 = vadd.f32 %v2272, %v2624
    %v2626 = vpop.f32.mrb[0].mxu0
    %v2627 = vadd.f32 %v2274, %v2626
    %v2628 = vpop.f32.mrb[0].mxu0
    %v2629 = vadd.f32 %v2276, %v2628
    %2630 = vmatprep.mubr.bf16.mxu0 %v1688
    %2631 = vmatmul.mubr.bf16.gmra.mrb[0].mxu0 %v1687
    %v2632 = vpop.f32.mrb[0].mxu0
    %v2633 = vadd.f32 %v2280, %v2632
    %v2634 = vpop.f32.mrb[0].mxu0
    %v2635 = vadd.f32 %v2282, %v2634
    %v2636 = vpop.f32.mrb[0].mxu0
    %v2637 = vadd.f32 %v2284, %v2636
    %v2638 = vpop.f32.mrb[0].mxu0
    %v2639 = vadd.f32 %v2286, %v2638
    %2640 = vmatprep.mubr.bf16.mxu0 %v1692
    %2641 = vmatmul.mubr.bf16.gmra.mrb[0].mxu0 %v1691
    %v2642 = vpop.f32.mrb[0].mxu0
    %v2643 = vadd.f32 %v2290, %v2642
    %v2644 = vpop.f32.mrb[0].mxu0
    %v2645 = vadd.f32 %v2292, %v2644
    %v2646 = vpop.f32.mrb[0].mxu0
    %v2647 = vadd.f32 %v2294, %v2646
    %v2648 = vpop.f32.mrb[0].mxu0
    %v2649 = vadd.f32 %v2296, %v2648
    %2650 = vmatprep.mubr.bf16.mxu0 %v1696
    %2651 = vmatmul.mubr.bf16.gmra.mrb[0].mxu0 %v1695
    %v2652 = vpop.f32.mrb[0].mxu0
    %v2653 = vadd.f32 %v2300, %v2652
    %v2654 = vpop.f32.mrb[0].mxu0
    %v2655 = vadd.f32 %v2302, %v2654
    %v2656 = vpop.f32.mrb[0].mxu0
    %v2657 = vadd.f32 %v2304, %v2656
    %v2658 = vpop.f32.mrb[0].mxu0
    %v2659 = vadd.f32 %v2306, %v2658
    %2660 = vmatprep.mubr.bf16.mxu0 %v1700
    %2661 = vmatmul.mubr.bf16.gmra.mrb[0].mxu0 %v1699
    %v2662 = vpop.f32.mrb[0].mxu0
    %v2663 = vadd.f32 %v2310, %v2662
    %v2664 = vpop.f32.mrb[0].mxu0
    %v2665 = vadd.f32 %v2312, %v2664
    %v2666 = vpop.f32.mrb[0].mxu0
    %v2667 = vadd.f32 %v2314, %v2666
    %v2668 = vpop.f32.mrb[0].mxu0
    %v2669 = vadd.f32 %v2316, %v2668
    %2670 = vmatprep.mubr.bf16.mxu0 %v1704
    %2671 = vmatmul.mubr.bf16.gmra.mrb[0].mxu0 %v1703
    %v2672 = vpop.f32.mrb[0].mxu0
    %v2673 = vadd.f32 %v2320, %v2672
    %v2674 = vpop.f32.mrb[0].mxu0
    %v2675 = vadd.f32 %v2322, %v2674
    %v2676 = vpop.f32.mrb[0].mxu0
    %v2677 = vadd.f32 %v2324, %v2676
    %v2678 = vpop.f32.mrb[0].mxu0
    %v2679 = vadd.f32 %v2326, %v2678
    %2680 = vmatprep.mubr.bf16.mxu0 %v1708
    %2681 = vmatmul.mubr.bf16.gmra.mrb[0].mxu0 %v1707
    %v2682 = vpop.f32.mrb[0].mxu0
    %v2683 = vadd.f32 %v2330, %v2682
    %v2684 = vpop.f32.mrb[0].mxu0
    %v2685 = vadd.f32 %v2332, %v2684
    %v2686 = vpop.f32.mrb[0].mxu0
    %v2687 = vadd.f32 %v2334, %v2686
    %v2688 = vpop.f32.mrb[0].mxu0
    %v2689 = vadd.f32 %v2336, %v2688
    %2690 = vmatprep.mubr.bf16.mxu0 %v1712
    %2691 = vmatmul.mubr.bf16.gmra.mrb[0].mxu0 %v1711
    %v2692 = vpop.f32.mrb[0].mxu0
    %v2693 = vadd.f32 %v2340, %v2692
    %v2694 = vpop.f32.mrb[0].mxu0
    %v2695 = vadd.f32 %v2342, %v2694
    %v2696 = vpop.f32.mrb[0].mxu0
    %v2697 = vadd.f32 %v2344, %v2696
    %v2698 = vpop.f32.mrb[0].mxu0
    %v2699 = vadd.f32 %v2346, %v2698
    %2700 = vmatprep.mubr.bf16.mxu0 %v1716
    %2701 = vmatmul.mubr.bf16.gmra.mrb[0].mxu0 %v1715
    %v2702 = vpop.f32.mrb[0].mxu0
    %v2703 = vadd.f32 %v2350, %v2702
    %v2704 = vpop.f32.mrb[0].mxu0
    %v2705 = vadd.f32 %v2352, %v2704
    %v2706 = vpop.f32.mrb[0].mxu0
    %v2707 = vadd.f32 %v2354, %v2706
    %v2708 = vpop.f32.mrb[0].mxu0
    %v2709 = vadd.f32 %v2356, %v2708
    %2710 = vmatprep.mubr.bf16.mxu0 %v1720
    %2711 = vmatmul.mubr.bf16.gmra.mrb[0].mxu0 %v1719
    %v2712 = vpop.f32.mrb[0].mxu0
    %v2713 = vadd.f32 %v2360, %v2712
    %v2714 = vpop.f32.mrb[0].mxu0
    %v2715 = vadd.f32 %v2362, %v2714
    %v2716 = vpop.f32.mrb[0].mxu0
    %v2717 = vadd.f32 %v2364, %v2716
    %v2718 = vpop.f32.mrb[0].mxu0
    %v2719 = vadd.f32 %v2366, %v2718
    %2720 = vmatprep.mubr.bf16.mxu0 %v1724
    %2721 = vmatmul.mubr.bf16.gmra.mrb[0].mxu0 %v1723
    %v2722 = vpop.f32.mrb[0].mxu0
    %v2723 = vadd.f32 %v2370, %v2722
    %v2724 = vpop.f32.mrb[0].mxu0
    %v2725 = vadd.f32 %v2372, %v2724
    %v2726 = vpop.f32.mrb[0].mxu0
    %v2727 = vadd.f32 %v2374, %v2726
    %v2728 = vpop.f32.mrb[0].mxu0
    %v2729 = vadd.f32 %v2376, %v2728
    %2730 = vmatprep.mubr.bf16.mxu0 %v1728
    %2731 = vmatmul.mubr.bf16.gmra.mrb[0].mxu0 %v1727
    %v2732 = vpop.f32.mrb[0].mxu0
    %v2733 = vadd.f32 %v2380, %v2732
    %v2734 = vpop.f32.mrb[0].mxu0
    %v2735 = vadd.f32 %v2382, %v2734
    %v2736 = vpop.f32.mrb[0].mxu0
    %v2737 = vadd.f32 %v2384, %v2736
    %v2738 = vpop.f32.mrb[0].mxu0
    %v2739 = vadd.f32 %v2386, %v2738
    %2740 = vmatprep.mubr.bf16.mxu0 %v1732
    %2741 = vmatmul.mubr.bf16.gmra.mrb[0].mxu0 %v1731
    %v2742 = vpop.f32.mrb[0].mxu0
    %v2743 = vadd.f32 %v2390, %v2742
    %v2744 = vpop.f32.mrb[0].mxu0
    %v2745 = vadd.f32 %v2392, %v2744
    %v2746 = vpop.f32.mrb[0].mxu0
    %v2747 = vadd.f32 %v2394, %v2746
    %v2748 = vpop.f32.mrb[0].mxu0
    %v2749 = vadd.f32 %v2396, %v2748
    %2750 = vmatprep.mubr.bf16.mxu0 %v1736
    %2751 = vmatmul.mubr.bf16.gmra.mrb[0].mxu0 %v1735
    %v2752 = vpop.f32.mrb[0].mxu0
    %v2753 = vadd.f32 %v2400, %v2752
    %v2754 = vpop.f32.mrb[0].mxu0
    %v2755 = vadd.f32 %v2402, %v2754
    %v2756 = vpop.f32.mrb[0].mxu0
    %v2757 = vadd.f32 %v2404, %v2756
    %v2758 = vpop.f32.mrb[0].mxu0
    %v2759 = vadd.f32 %v2406, %v2758
    %2760 = vmatprep.mubr.bf16.mxu0 %v1740
    %2761 = vmatmul.mubr.bf16.gmra.mrb[0].mxu0 %v1739
    %v2762 = vpop.f32.mrb[0].mxu0
    %v2763 = vadd.f32 %v2410, %v2762
    %v2764 = vpop.f32.mrb[0].mxu0
    %v2765 = vadd.f32 %v2412, %v2764
    %v2766 = vpop.f32.mrb[0].mxu0
    %v2767 = vadd.f32 %v2414, %v2766
    %v2768 = vpop.f32.mrb[0].mxu0
    %v2769 = vadd.f32 %v2416, %v2768
    %2770 = vmatprep.mubr.bf16.mxu0 %v1744
    %2771 = vmatmul.mubr.bf16.gmra.mrb[0].mxu0 %v1743
    %v2772 = vpop.f32.mrb[0].mxu0
    %v2773 = vadd.f32 %v2420, %v2772
    %v2774 = vpop.f32.mrb[0].mxu0
    %v2775 = vadd.f32 %v2422, %v2774
    %v2776 = vpop.f32.mrb[0].mxu0
    %v2777 = vadd.f32 %v2424, %v2776
    %v2778 = vpop.f32.mrb[0].mxu0
    %v2779 = vadd.f32 %v2426, %v2778
    %2780 = vmatprep.mubr.bf16.mxu0 %v1748
    %2781 = vmatmul.mubr.bf16.gmra.mrb[0].mxu0 %v1747
    %v2782 = vpop.f32.mrb[0].mxu0
    %v2783 = vadd.f32 %v2430, %v2782
    %v2784 = vpop.f32.mrb[0].mxu0
    %v2785 = vadd.f32 %v2432, %v2784
    %v2786 = vpop.f32.mrb[0].mxu0
    %v2787 = vadd.f32 %v2434, %v2786
    %v2788 = vpop.f32.mrb[0].mxu0
    %v2789 = vadd.f32 %v2436, %v2788
    %2790 = vmatprep.mubr.bf16.mxu0 %v1752
    %2791 = vmatmul.mubr.bf16.gmra.mrb[0].mxu0 %v1751
    %v2792 = vpop.f32.mrb[0].mxu0
    %v2793 = vadd.f32 %v2440, %v2792
    %v2794 = vpop.f32.mrb[0].mxu0
    %v2795 = vadd.f32 %v2442, %v2794
    %v2796 = vpop.f32.mrb[0].mxu0
    %v2797 = vadd.f32 %v2444, %v2796
    %v2798 = vpop.f32.mrb[0].mxu0
    %v2799 = vadd.f32 %v2446, %v2798
    %2800 = vmatprep.mubr.bf16.mxu0 %v1756
    %2801 = vmatmul.mubr.bf16.gmra.mrb[0].mxu0 %v1755
    %v2802 = vpop.f32.mrb[0].mxu0
    %v2803 = vadd.f32 %v2450, %v2802
    %v2804 = vpop.f32.mrb[0].mxu0
    %v2805 = vadd.f32 %v2452, %v2804
    %v2806 = vpop.f32.mrb[0].mxu0
    %v2807 = vadd.f32 %v2454, %v2806
    %v2808 = vpop.f32.mrb[0].mxu0
    %v2809 = vadd.f32 %v2456, %v2808
    %2810 = vmatprep.mubr.bf16.mxu0 %v1760
    %2811 = vmatmul.mubr.bf16.gmra.mrb[0].mxu0 %v1759
    %v2812 = vpop.f32.mrb[0].mxu0
    %v2813 = vadd.f32 %v2460, %v2812
    %v2814 = vpop.f32.mrb[0].mxu0
    %v2815 = vadd.f32 %v2462, %v2814
    %v2816 = vpop.f32.mrb[0].mxu0
    %v2817 = vadd.f32 %v2464, %v2816
    %v2818 = vpop.f32.mrb[0].mxu0
    %v2819 = vadd.f32 %v2466, %v2818
    %2820 = vmatprep.mubr.bf16.mxu0 %v1764
    %2821 = vmatmul.mubr.bf16.gmra.mrb[0].mxu0 %v1763
    %v2822 = vpop.f32.mrb[0].mxu0
    %v2823 = vadd.f32 %v2470, %v2822
    %v2824 = vpop.f32.mrb[0].mxu0
    %v2825 = vadd.f32 %v2472, %v2824
    %v2826 = vpop.f32.mrb[0].mxu0
    %v2827 = vadd.f32 %v2474, %v2826
    %v2828 = vpop.f32.mrb[0].mxu0
    %v2829 = vadd.f32 %v2476, %v2828
    %2830 = vmatprep.mubr.bf16.mxu0 %v1768
    %2831 = vmatmul.mubr.bf16.gmra.mrb[0].mxu0 %v1767
    %v2832 = vpop.f32.mrb[0].mxu0
    %v2833 = vadd.f32 %v2480, %v2832
    %v2834 = vpop.f32.mrb[0].mxu0
    %v2835 = vadd.f32 %v2482, %v2834
    %v2836 = vpop.f32.mrb[0].mxu0
    %v2837 = vadd.f32 %v2484, %v2836
    %v2838 = vpop.f32.mrb[0].mxu0
    %v2839 = vadd.f32 %v2486, %v2838
    %2840 = vmatprep.mubr.bf16.mxu0 %v1772
    %2841 = vmatmul.mubr.bf16.gmra.mrb[0].mxu0 %v1771
    %v2842 = vpop.f32.mrb[0].mxu0
    %v2843 = vadd.f32 %v2490, %v2842
    %v2844 = vpop.f32.mrb[0].mxu0
    %v2845 = vadd.f32 %v2492, %v2844
    %v2846 = vpop.f32.mrb[0].mxu0
    %v2847 = vadd.f32 %v2494, %v2846
    %v2848 = vpop.f32.mrb[0].mxu0
    %v2849 = vadd.f32 %v2496, %v2848
    %2850 = vmatprep.mubr.bf16.mxu0 %v1776
    %2851 = vmatmul.mubr.bf16.gmra.mrb[0].mxu0 %v1775
    %v2852 = vpop.f32.mrb[0].mxu0
    %v2853 = vadd.f32 %v2500, %v2852
    %v2854 = vpop.f32.mrb[0].mxu0
    %v2855 = vadd.f32 %v2502, %v2854
    %v2856 = vpop.f32.mrb[0].mxu0
    %v2857 = vadd.f32 %v2504, %v2856
    %v2858 = vpop.f32.mrb[0].mxu0
    %v2859 = vadd.f32 %v2506, %v2858
    %2860 = vmatprep.mubr.bf16.mxu0 %v1780
    %2861 = vmatmul.mubr.bf16.gmra.mrb[0].mxu0 %v1779
    %v2862 = vpop.f32.mrb[0].mxu0
    %v2863 = vadd.f32 %v2510, %v2862
    %v2864 = vpop.f32.mrb[0].mxu0
    %v2865 = vadd.f32 %v2512, %v2864
    %v2866 = vpop.f32.mrb[0].mxu0
    %v2867 = vadd.f32 %v2514, %v2866
    %v2868 = vpop.f32.mrb[0].mxu0
    %v2869 = vadd.f32 %v2516, %v2868
    %2870 = vmatprep.mubr.bf16.mxu0 %v1784
    %2871 = vmatmul.mubr.bf16.gmra.mrb[0].mxu0 %v1783
    %v2872 = vpop.f32.mrb[0].mxu0
    %v2873 = vadd.f32 %v2520, %v2872
    %v2874 = vpop.f32.mrb[0].mxu0
    %v2875 = vadd.f32 %v2522, %v2874
    %v2876 = vpop.f32.mrb[0].mxu0
    %v2877 = vadd.f32 %v2524, %v2876
    %v2878 = vpop.f32.mrb[0].mxu0
    %v2879 = vadd.f32 %v2526, %v2878
    %2880 = vmatprep.mubr.bf16.mxu0 %v1788
    %2881 = vmatmul.mubr.bf16.gmra.mrb[0].mxu0 %v1787
    %v2882 = vpop.f32.mrb[0].mxu0
    %v2883 = vadd.f32 %v2530, %v2882
    %v2884 = vpop.f32.mrb[0].mxu0
    %v2885 = vadd.f32 %v2532, %v2884
    %v2886 = vpop.f32.mrb[0].mxu0
    %v2887 = vadd.f32 %v2534, %v2886
    %v2888 = vpop.f32.mrb[0].mxu0
    %v2889 = vadd.f32 %v2536, %v2888
    %2890 = vdwg.mxu0
    %v2891 = vmax.f32 %v2573, 0.0
    %v2892 = vmax.f32 %v2575, 0.0
    %v2893 = vmax.f32 %v2577, 0.0
    %v2894 = vmax.f32 %v2579, 0.0
    %v2895 = vmax.f32 %v2583, 0.0
    %v2896 = vmax.f32 %v2585, 0.0
    %v2897 = vmax.f32 %v2587, 0.0
    %v2898 = vmax.f32 %v2589, 0.0
    %v2899 = vmax.f32 %v2593, 0.0
    %v2900 = vmax.f32 %v2595, 0.0
    %v2901 = vmax.f32 %v2597, 0.0
    %v2902 = vmax.f32 %v2599, 0.0
    %v2903 = vmax.f32 %v2603, 0.0
    %v2904 = vmax.f32 %v2605, 0.0
    %v2905 = vmax.f32 %v2607, 0.0
    %v2906 = vmax.f32 %v2609, 0.0
    %v2907 = vmax.f32 %v2613, 0.0
    %v2908 = vmax.f32 %v2615, 0.0
    %v2909 = vmax.f32 %v2617, 0.0
    %v2910 = vmax.f32 %v2619, 0.0
    %v2911 = vmax.f32 %v2623, 0.0
    %v2912 = vmax.f32 %v2625, 0.0
    %v2913 = vmax.f32 %v2627, 0.0
    %v2914 = vmax.f32 %v2629, 0.0
    %v2915 = vmax.f32 %v2633, 0.0
    %v2916 = vmax.f32 %v2635, 0.0
    %v2917 = vmax.f32 %v2637, 0.0
    %v2918 = vmax.f32 %v2639, 0.0
    %v2919 = vmax.f32 %v2643, 0.0
    %v2920 = vmax.f32 %v2645, 0.0
    %v2921 = vmax.f32 %v2647, 0.0
    %v2922 = vmax.f32 %v2649, 0.0
    %v2923 = vmax.f32 %v2653, 0.0
    %v2924 = vmax.f32 %v2655, 0.0
    %v2925 = vmax.f32 %v2657, 0.0
    %v2926 = vmax.f32 %v2659, 0.0
    %v2927 = vmax.f32 %v2663, 0.0
    %v2928 = vmax.f32 %v2665, 0.0
    %v2929 = vmax.f32 %v2667, 0.0
    %v2930 = vmax.f32 %v2669, 0.0
    %v2931 = vmax.f32 %v2673, 0.0
    %v2932 = vmax.f32 %v2675, 0.0
    %v2933 = vmax.f32 %v2677, 0.0
    %v2934 = vmax.f32 %v2679, 0.0
    %v2935 = vmax.f32 %v2683, 0.0
    %v2936 = vmax.f32 %v2685, 0.0
    %v2937 = vmax.f32 %v2687, 0.0
    %v2938 = vmax.f32 %v2689, 0.0
    %v2939 = vmax.f32 %v2693, 0.0
    %v2940 = vmax.f32 %v2695, 0.0
    %v2941 = vmax.f32 %v2697, 0.0
    %v2942 = vmax.f32 %v2699, 0.0
    %v2943 = vmax.f32 %v2703, 0.0
    %v2944 = vmax.f32 %v2705, 0.0
    %v2945 = vmax.f32 %v2707, 0.0
    %v2946 = vmax.f32 %v2709, 0.0
    %v2947 = vmax.f32 %v2713, 0.0
    %v2948 = vmax.f32 %v2715, 0.0
    %v2949 = vmax.f32 %v2717, 0.0
    %v2950 = vmax.f32 %v2719, 0.0
    %v2951 = vmax.f32 %v2723, 0.0
    %v2952 = vmax.f32 %v2725, 0.0
    %v2953 = vmax.f32 %v2727, 0.0
    %v2954 = vmax.f32 %v2729, 0.0
    %v2955 = vmax.f32 %v2733, 0.0
    %v2956 = vmax.f32 %v2735, 0.0
    %v2957 = vmax.f32 %v2737, 0.0
    %v2958 = vmax.f32 %v2739, 0.0
    %v2959 = vmax.f32 %v2743, 0.0
    %v2960 = vmax.f32 %v2745, 0.0
    %v2961 = vmax.f32 %v2747, 0.0
    %v2962 = vmax.f32 %v2749, 0.0
    %v2963 = vmax.f32 %v2753, 0.0
    %v2964 = vmax.f32 %v2755, 0.0
    %v2965 = vmax.f32 %v2757, 0.0
    %v2966 = vmax.f32 %v2759, 0.0
    %v2967 = vmax.f32 %v2763, 0.0
    %v2968 = vmax.f32 %v2765, 0.0
    %v2969 = vmax.f32 %v2767, 0.0
    %v2970 = vmax.f32 %v2769, 0.0
    %v2971 = vmax.f32 %v2773, 0.0
    %v2972 = vmax.f32 %v2775, 0.0
    %v2973 = vmax.f32 %v2777, 0.0
    %v2974 = vmax.f32 %v2779, 0.0
    %v2975 = vmax.f32 %v2783, 0.0
    %v2976 = vmax.f32 %v2785, 0.0
    %v2977 = vmax.f32 %v2787, 0.0
    %v2978 = vmax.f32 %v2789, 0.0
    %v2979 = vmax.f32 %v2793, 0.0
    %v2980 = vmax.f32 %v2795, 0.0
    %v2981 = vmax.f32 %v2797, 0.0
    %v2982 = vmax.f32 %v2799, 0.0
    %v2983 = vmax.f32 %v2803, 0.0
    %v2984 = vmax.f32 %v2805, 0.0
    %v2985 = vmax.f32 %v2807, 0.0
    %v2986 = vmax.f32 %v2809, 0.0
    %v2987 = vmax.f32 %v2813, 0.0
    %v2988 = vmax.f32 %v2815, 0.0
    %v2989 = vmax.f32 %v2817, 0.0
    %v2990 = vmax.f32 %v2819, 0.0
    %v2991 = vmax.f32 %v2823, 0.0
    %v2992 = vmax.f32 %v2825, 0.0
    %v2993 = vmax.f32 %v2827, 0.0
    %v2994 = vmax.f32 %v2829, 0.0
    %v2995 = vmax.f32 %v2833, 0.0
    %v2996 = vmax.f32 %v2835, 0.0
    %v2997 = vmax.f32 %v2837, 0.0
    %v2998 = vmax.f32 %v2839, 0.0
    %v2999 = vmax.f32 %v2843, 0.0
    %v3000 = vmax.f32 %v2845, 0.0
    %v3001 = vmax.f32 %v2847, 0.0
    %v3002 = vmax.f32 %v2849, 0.0
    %v3003 = vmax.f32 %v2853, 0.0
    %v3004 = vmax.f32 %v2855, 0.0
    %v3005 = vmax.f32 %v2857, 0.0
    %v3006 = vmax.f32 %v2859, 0.0
    %v3007 = vmax.f32 %v2863, 0.0
    %v3008 = vmax.f32 %v2865, 0.0
    %v3009 = vmax.f32 %v2867, 0.0
    %v3010 = vmax.f32 %v2869, 0.0
    %v3011 = vmax.f32 %v2873, 0.0
    %v3012 = vmax.f32 %v2875, 0.0
    %v3013 = vmax.f32 %v2877, 0.0
    %v3014 = vmax.f32 %v2879, 0.0
    %v3015 = vmax.f32 %v2883, 0.0
    %v3016 = vmax.f32 %v2885, 0.0
    %v3017 = vmax.f32 %v2887, 0.0
    %v3018 = vmax.f32 %v2889, 0.0
    %v3019 = vpack.c.bf16 %v2893, %v2891
    %v3020 = vpack.c.bf16 %v2894, %v2892
    %v3021 = vpack.c.bf16 %v2897, %v2895
    %v3022 = vpack.c.bf16 %v2898, %v2896
    %v3023 = vpack.c.bf16 %v2901, %v2899
    %v3024 = vpack.c.bf16 %v2902, %v2900
    %v3025 = vpack.c.bf16 %v2905, %v2903
    %v3026 = vpack.c.bf16 %v2906, %v2904
    %v3027 = vpack.c.bf16 %v2909, %v2907
    %v3028 = vpack.c.bf16 %v2910, %v2908
    %v3029 = vpack.c.bf16 %v2913, %v2911
    %v3030 = vpack.c.bf16 %v2914, %v2912
    %v3031 = vpack.c.bf16 %v2917, %v2915
    %v3032 = vpack.c.bf16 %v2918, %v2916
    %v3033 = vpack.c.bf16 %v2921, %v2919
    %v3034 = vpack.c.bf16 %v2922, %v2920
    %v3035 = vpack.c.bf16 %v2925, %v2923
    %v3036 = vpack.c.bf16 %v2926, %v2924
    %v3037 = vpack.c.bf16 %v2929, %v2927
    %v3038 = vpack.c.bf16 %v2930, %v2928
    %v3039 = vpack.c.bf16 %v2933, %v2931
    %v3040 = vpack.c.bf16 %v2934, %v2932
    %v3041 = vpack.c.bf16 %v2937, %v2935
    %v3042 = vpack.c.bf16 %v2938, %v2936
    %v3043 = vpack.c.bf16 %v2941, %v2939
    %v3044 = vpack.c.bf16 %v2942, %v2940
    %v3045 = vpack.c.bf16 %v2945, %v2943
    %v3046 = vpack.c.bf16 %v2946, %v2944
    %v3047 = vpack.c.bf16 %v2949, %v2947
    %v3048 = vpack.c.bf16 %v2950, %v2948
    %v3049 = vpack.c.bf16 %v2953, %v2951
    %v3050 = vpack.c.bf16 %v2954, %v2952
    %v3051 = vpack.c.bf16 %v2957, %v2955
    %v3052 = vpack.c.bf16 %v2958, %v2956
    %v3053 = vpack.c.bf16 %v2961, %v2959
    %v3054 = vpack.c.bf16 %v2962, %v2960
    %v3055 = vpack.c.bf16 %v2965, %v2963
    %v3056 = vpack.c.bf16 %v2966, %v2964
    %v3057 = vpack.c.bf16 %v2969, %v2967
    %v3058 = vpack.c.bf16 %v2970, %v2968
    %v3059 = vpack.c.bf16 %v2973, %v2971
    %v3060 = vpack.c.bf16 %v2974, %v2972
    %v3061 = vpack.c.bf16 %v2977, %v2975
    %v3062 = vpack.c.bf16 %v2978, %v2976
    %v3063 = vpack.c.bf16 %v2981, %v2979
    %v3064 = vpack.c.bf16 %v2982, %v2980
    %v3065 = vpack.c.bf16 %v2985, %v2983
    %v3066 = vpack.c.bf16 %v2986, %v2984
    %v3067 = vpack.c.bf16 %v2989, %v2987
    %v3068 = vpack.c.bf16 %v2990, %v2988
    %v3069 = vpack.c.bf16 %v2993, %v2991
    %v3070 = vpack.c.bf16 %v2994, %v2992
    %v3071 = vpack.c.bf16 %v2997, %v2995
    %v3072 = vpack.c.bf16 %v2998, %v2996
    %v3073 = vpack.c.bf16 %v3001, %v2999
    %v3074 = vpack.c.bf16 %v3002, %v3000
    %v3075 = vpack.c.bf16 %v3005, %v3003
    %v3076 = vpack.c.bf16 %v3006, %v3004
    %v3077 = vpack.c.bf16 %v3009, %v3007
    %v3078 = vpack.c.bf16 %v3010, %v3008
    %v3079 = vpack.c.bf16 %v3013, %v3011
    %v3080 = vpack.c.bf16 %v3014, %v3012
    %v3081 = vpack.c.bf16 %v3017, %v3015
    %v3082 = vpack.c.bf16 %v3018, %v3016
    %v3083 = vld [vmem:[#allocation8] sm:$0xff]
    %v3084 = vld [vmem:[#allocation8 + $0x8] sm:$0xff]
    %v3085 = vld [vmem:[#allocation8 + $0x10] sm:$0xff]
    %v3086 = vld [vmem:[#allocation8 + $0x18] sm:$0xff]
    %v3087 = vld [vmem:[#allocation8 + $0x20] sm:$0xff]
    %v3088 = vld [vmem:[#allocation8 + $0x28] sm:$0xff]
    %v3089 = vld [vmem:[#allocation8 + $0x30] sm:$0xff]
    %v3090 = vld [vmem:[#allocation8 + $0x38] sm:$0xff]
    %v3091 = vld [vmem:[#allocation8 + $0x40] sm:$0xff]
    %v3092 = vld [vmem:[#allocation8 + $0x48] sm:$0xff]
    %v3093 = vld [vmem:[#allocation8 + $0x50] sm:$0xff]
    %v3094 = vld [vmem:[#allocation8 + $0x58] sm:$0xff]
    %v3095 = vld [vmem:[#allocation8 + $0x60] sm:$0xff]
    %v3096 = vld [vmem:[#allocation8 + $0x68] sm:$0xff]
    %v3097 = vld [vmem:[#allocation8 + $0x70] sm:$0xff]
    %v3098 = vld [vmem:[#allocation8 + $0x78] sm:$0xff]
    %v3099 = vld [vmem:[#allocation8 + $0x80] sm:$0xff]
    %v3100 = vld [vmem:[#allocation8 + $0x88] sm:$0xff]
    %v3101 = vld [vmem:[#allocation8 + $0x90] sm:$0xff]
    %v3102 = vld [vmem:[#allocation8 + $0x98] sm:$0xff]
    %v3103 = vld [vmem:[#allocation8 + $0xa0] sm:$0xff]
    %v3104 = vld [vmem:[#allocation8 + $0xa8] sm:$0xff]
    %v3105 = vld [vmem:[#allocation8 + $0xb0] sm:$0xff]
    %v3106 = vld [vmem:[#allocation8 + $0xb8] sm:$0xff]
    %v3107 = vld [vmem:[#allocation8 + $0xc0] sm:$0xff]
    %v3108 = vld [vmem:[#allocation8 + $0xc8] sm:$0xff]
    %v3109 = vld [vmem:[#allocation8 + $0xd0] sm:$0xff]
    %v3110 = vld [vmem:[#allocation8 + $0xd8] sm:$0xff]
    %v3111 = vld [vmem:[#allocation8 + $0xe0] sm:$0xff]
    %v3112 = vld [vmem:[#allocation8 + $0xe8] sm:$0xff]
    %v3113 = vld [vmem:[#allocation8 + $0xf0] sm:$0xff]
    %v3114 = vld [vmem:[#allocation8 + $0xf8] sm:$0xff]
    %v3115 = vld [vmem:[#allocation8 + $0x100] sm:$0xff]
    %v3116 = vld [vmem:[#allocation8 + $0x108] sm:$0xff]
    %v3117 = vld [vmem:[#allocation8 + $0x110] sm:$0xff]
    %v3118 = vld [vmem:[#allocation8 + $0x118] sm:$0xff]
    %v3119 = vld [vmem:[#allocation8 + $0x120] sm:$0xff]
    %v3120 = vld [vmem:[#allocation8 + $0x128] sm:$0xff]
    %v3121 = vld [vmem:[#allocation8 + $0x130] sm:$0xff]
    %v3122 = vld [vmem:[#allocation8 + $0x138] sm:$0xff]
    %v3123 = vld [vmem:[#allocation8 + $0x140] sm:$0xff]
    %v3124 = vld [vmem:[#allocation8 + $0x148] sm:$0xff]
    %v3125 = vld [vmem:[#allocation8 + $0x150] sm:$0xff]
    %v3126 = vld [vmem:[#allocation8 + $0x158] sm:$0xff]
    %v3127 = vld [vmem:[#allocation8 + $0x160] sm:$0xff]
    %v3128 = vld [vmem:[#allocation8 + $0x168] sm:$0xff]
    %v3129 = vld [vmem:[#allocation8 + $0x170] sm:$0xff]
    %v3130 = vld [vmem:[#allocation8 + $0x178] sm:$0xff]
    %v3131 = vld [vmem:[#allocation8 + $0x180] sm:$0xff]
    %v3132 = vld [vmem:[#allocation8 + $0x188] sm:$0xff]
    %v3133 = vld [vmem:[#allocation8 + $0x190] sm:$0xff]
    %v3134 = vld [vmem:[#allocation8 + $0x198] sm:$0xff]
    %v3135 = vld [vmem:[#allocation8 + $0x1a0] sm:$0xff]
    %v3136 = vld [vmem:[#allocation8 + $0x1a8] sm:$0xff]
    %v3137 = vld [vmem:[#allocation8 + $0x1b0] sm:$0xff]
    %v3138 = vld [vmem:[#allocation8 + $0x1b8] sm:$0xff]
    %v3139 = vld [vmem:[#allocation8 + $0x1c0] sm:$0xff]
    %v3140 = vld [vmem:[#allocation8 + $0x1c8] sm:$0xff]
    %v3141 = vld [vmem:[#allocation8 + $0x1d0] sm:$0xff]
    %v3142 = vld [vmem:[#allocation8 + $0x1d8] sm:$0xff]
    %v3143 = vld [vmem:[#allocation8 + $0x1e0] sm:$0xff]
    %v3144 = vld [vmem:[#allocation8 + $0x1e8] sm:$0xff]
    %v3145 = vld [vmem:[#allocation8 + $0x1f0] sm:$0xff]
    %v3146 = vld [vmem:[#allocation8 + $0x1f8] sm:$0xff]
    %v3147 = vld [vmem:[%s6] sm:$0xf]
    %v3149 = vlaneseq
    %v3150 = vshrl.u32 %v3149, 7
    %v3151 = vsub.s32 0, %v3150
    %v3152 = vrot.slane %v3147, %v3151
    %v3153 = vlaneseq
    %v3154 = vshrl.u32 %v3153, 7
    %v3155 = vsub.s32 1, %v3154
    %v3156 = vrot.slane %v3147, %v3155
    %v3157 = vlaneseq
    %v3158 = vshrl.u32 %v3157, 7
    %v3159 = vsub.s32 2, %v3158
    %v3160 = vrot.slane %v3147, %v3159
    %v3161 = vlaneseq
    %v3162 = vshrl.u32 %v3161, 7
    %v3163 = vsub.s32 3, %v3162
    %v3164 = vrot.slane %v3147, %v3163
    %v3233 = vunpack.c.l.b16 %v3083
    %v3234 = vunpack.c.h.b16 %v3083
    %v3235 = vunpack.c.l.b16 %v3084
    %v3236 = vunpack.c.h.b16 %v3084
    %v3237 = vunpack.c.l.b16 %v3085
    %v3238 = vunpack.c.h.b16 %v3085
    %v3239 = vunpack.c.l.b16 %v3086
    %v3240 = vunpack.c.h.b16 %v3086
    %v3241 = vunpack.c.l.b16 %v3087
    %v3242 = vunpack.c.h.b16 %v3087
    %v3243 = vunpack.c.l.b16 %v3088
    %v3244 = vunpack.c.h.b16 %v3088
    %v3245 = vunpack.c.l.b16 %v3089
    %v3246 = vunpack.c.h.b16 %v3089
    %v3247 = vunpack.c.l.b16 %v3090
    %v3248 = vunpack.c.h.b16 %v3090
    %v3249 = vunpack.c.l.b16 %v3091
    %v3250 = vunpack.c.h.b16 %v3091
    %v3251 = vunpack.c.l.b16 %v3092
    %v3252 = vunpack.c.h.b16 %v3092
    %v3253 = vunpack.c.l.b16 %v3093
    %v3254 = vunpack.c.h.b16 %v3093
    %v3255 = vunpack.c.l.b16 %v3094
    %v3256 = vunpack.c.h.b16 %v3094
    %v3257 = vunpack.c.l.b16 %v3095
    %v3258 = vunpack.c.h.b16 %v3095
    %v3259 = vunpack.c.l.b16 %v3096
    %v3260 = vunpack.c.h.b16 %v3096
    %v3261 = vunpack.c.l.b16 %v3097
    %v3262 = vunpack.c.h.b16 %v3097
    %v3263 = vunpack.c.l.b16 %v3098
    %v3264 = vunpack.c.h.b16 %v3098
    %v3265 = vunpack.c.l.b16 %v3099
    %v3266 = vunpack.c.h.b16 %v3099
    %v3267 = vunpack.c.l.b16 %v3100
    %v3268 = vunpack.c.h.b16 %v3100
    %v3269 = vunpack.c.l.b16 %v3101
    %v3270 = vunpack.c.h.b16 %v3101
    %v3271 = vunpack.c.l.b16 %v3102
    %v3272 = vunpack.c.h.b16 %v3102
    %v3273 = vunpack.c.l.b16 %v3103
    %v3274 = vunpack.c.h.b16 %v3103
    %v3275 = vunpack.c.l.b16 %v3104
    %v3276 = vunpack.c.h.b16 %v3104
    %v3277 = vunpack.c.l.b16 %v3105
    %v3278 = vunpack.c.h.b16 %v3105
    %v3279 = vunpack.c.l.b16 %v3106
    %v3280 = vunpack.c.h.b16 %v3106
    %v3281 = vunpack.c.l.b16 %v3107
    %v3282 = vunpack.c.h.b16 %v3107
    %v3283 = vunpack.c.l.b16 %v3108
    %v3284 = vunpack.c.h.b16 %v3108
    %v3285 = vunpack.c.l.b16 %v3109
    %v3286 = vunpack.c.h.b16 %v3109
    %v3287 = vunpack.c.l.b16 %v3110
    %v3288 = vunpack.c.h.b16 %v3110
    %v3289 = vunpack.c.l.b16 %v3111
    %v3290 = vunpack.c.h.b16 %v3111
    %v3291 = vunpack.c.l.b16 %v3112
    %v3292 = vunpack.c.h.b16 %v3112
    %v3293 = vunpack.c.l.b16 %v3113
    %v3294 = vunpack.c.h.b16 %v3113
    %v3295 = vunpack.c.l.b16 %v3114
    %v3296 = vunpack.c.h.b16 %v3114
    %v3297 = vunpack.c.l.b16 %v3115
    %v3298 = vunpack.c.h.b16 %v3115
    %v3299 = vunpack.c.l.b16 %v3116
    %v3300 = vunpack.c.h.b16 %v3116
    %v3301 = vunpack.c.l.b16 %v3117
    %v3302 = vunpack.c.h.b16 %v3117
    %v3303 = vunpack.c.l.b16 %v3118
    %v3304 = vunpack.c.h.b16 %v3118
    %v3305 = vunpack.c.l.b16 %v3119
    %v3306 = vunpack.c.h.b16 %v3119
    %v3307 = vunpack.c.l.b16 %v3120
    %v3308 = vunpack.c.h.b16 %v3120
    %v3309 = vunpack.c.l.b16 %v3121
    %v3310 = vunpack.c.h.b16 %v3121
    %v3311 = vunpack.c.l.b16 %v3122
    %v3312 = vunpack.c.h.b16 %v3122
    %v3313 = vunpack.c.l.b16 %v3123
    %v3314 = vunpack.c.h.b16 %v3123
    %v3315 = vunpack.c.l.b16 %v3124
    %v3316 = vunpack.c.h.b16 %v3124
    %v3317 = vunpack.c.l.b16 %v3125
    %v3318 = vunpack.c.h.b16 %v3125
    %v3319 = vunpack.c.l.b16 %v3126
    %v3320 = vunpack.c.h.b16 %v3126
    %v3321 = vunpack.c.l.b16 %v3127
    %v3322 = vunpack.c.h.b16 %v3127
    %v3323 = vunpack.c.l.b16 %v3128
    %v3324 = vunpack.c.h.b16 %v3128
    %v3325 = vunpack.c.l.b16 %v3129
    %v3326 = vunpack.c.h.b16 %v3129
    %v3327 = vunpack.c.l.b16 %v3130
    %v3328 = vunpack.c.h.b16 %v3130
    %v3329 = vunpack.c.l.b16 %v3131
    %v3330 = vunpack.c.h.b16 %v3131
    %v3331 = vunpack.c.l.b16 %v3132
    %v3332 = vunpack.c.h.b16 %v3132
    %v3333 = vunpack.c.l.b16 %v3133
    %v3334 = vunpack.c.h.b16 %v3133
    %v3335 = vunpack.c.l.b16 %v3134
    %v3336 = vunpack.c.h.b16 %v3134
    %v3337 = vunpack.c.l.b16 %v3135
    %v3338 = vunpack.c.h.b16 %v3135
    %v3339 = vunpack.c.l.b16 %v3136
    %v3340 = vunpack.c.h.b16 %v3136
    %v3341 = vunpack.c.l.b16 %v3137
    %v3342 = vunpack.c.h.b16 %v3137
    %v3343 = vunpack.c.l.b16 %v3138
    %v3344 = vunpack.c.h.b16 %v3138
    %v3345 = vunpack.c.l.b16 %v3139
    %v3346 = vunpack.c.h.b16 %v3139
    %v3347 = vunpack.c.l.b16 %v3140
    %v3348 = vunpack.c.h.b16 %v3140
    %v3349 = vunpack.c.l.b16 %v3141
    %v3350 = vunpack.c.h.b16 %v3141
    %v3351 = vunpack.c.l.b16 %v3142
    %v3352 = vunpack.c.h.b16 %v3142
    %v3353 = vunpack.c.l.b16 %v3143
    %v3354 = vunpack.c.h.b16 %v3143
    %v3355 = vunpack.c.l.b16 %v3144
    %v3356 = vunpack.c.h.b16 %v3144
    %v3357 = vunpack.c.l.b16 %v3145
    %v3358 = vunpack.c.h.b16 %v3145
    %v3359 = vunpack.c.l.b16 %v3146
    %v3360 = vunpack.c.h.b16 %v3146
    %v3361 = vpack.c.b16 %v3237, %v3233
    %v3362 = vpack.c.b16 %v3238, %v3234
    %v3363 = vpack.c.b16 %v3239, %v3235
    %v3364 = vpack.c.b16 %v3240, %v3236
    %v3365 = vpack.c.b16 %v3245, %v3241
    %v3366 = vpack.c.b16 %v3246, %v3242
    %v3367 = vpack.c.b16 %v3247, %v3243
    %v3368 = vpack.c.b16 %v3248, %v3244
    %v3369 = vpack.c.b16 %v3253, %v3249
    %v3370 = vpack.c.b16 %v3254, %v3250
    %v3371 = vpack.c.b16 %v3255, %v3251
    %v3372 = vpack.c.b16 %v3256, %v3252
    %v3373 = vpack.c.b16 %v3261, %v3257
    %v3374 = vpack.c.b16 %v3262, %v3258
    %v3375 = vpack.c.b16 %v3263, %v3259
    %v3376 = vpack.c.b16 %v3264, %v3260
    %v3377 = vpack.c.b16 %v3269, %v3265
    %v3378 = vpack.c.b16 %v3270, %v3266
    %v3379 = vpack.c.b16 %v3271, %v3267
    %v3380 = vpack.c.b16 %v3272, %v3268
    %v3381 = vpack.c.b16 %v3277, %v3273
    %v3382 = vpack.c.b16 %v3278, %v3274
    %v3383 = vpack.c.b16 %v3279, %v3275
    %v3384 = vpack.c.b16 %v3280, %v3276
    %v3385 = vpack.c.b16 %v3285, %v3281
    %v3386 = vpack.c.b16 %v3286, %v3282
    %v3387 = vpack.c.b16 %v3287, %v3283
    %v3388 = vpack.c.b16 %v3288, %v3284
    %v3389 = vpack.c.b16 %v3293, %v3289
    %v3390 = vpack.c.b16 %v3294, %v3290
    %v3391 = vpack.c.b16 %v3295, %v3291
    %v3392 = vpack.c.b16 %v3296, %v3292
    %v3393 = vpack.c.b16 %v3301, %v3297
    %v3394 = vpack.c.b16 %v3302, %v3298
    %v3395 = vpack.c.b16 %v3303, %v3299
    %v3396 = vpack.c.b16 %v3304, %v3300
    %v3397 = vpack.c.b16 %v3309, %v3305
    %v3398 = vpack.c.b16 %v3310, %v3306
    %v3399 = vpack.c.b16 %v3311, %v3307
    %v3400 = vpack.c.b16 %v3312, %v3308
    %v3401 = vpack.c.b16 %v3317, %v3313
    %v3402 = vpack.c.b16 %v3318, %v3314
    %v3403 = vpack.c.b16 %v3319, %v3315
    %v3404 = vpack.c.b16 %v3320, %v3316
    %v3405 = vpack.c.b16 %v3325, %v3321
    %v3406 = vpack.c.b16 %v3326, %v3322
    %v3407 = vpack.c.b16 %v3327, %v3323
    %v3408 = vpack.c.b16 %v3328, %v3324
    %v3409 = vpack.c.b16 %v3333, %v3329
    %v3410 = vpack.c.b16 %v3334, %v3330
    %v3411 = vpack.c.b16 %v3335, %v3331
    %v3412 = vpack.c.b16 %v3336, %v3332
    %v3413 = vpack.c.b16 %v3341, %v3337
    %v3414 = vpack.c.b16 %v3342, %v3338
    %v3415 = vpack.c.b16 %v3343, %v3339
    %v3416 = vpack.c.b16 %v3344, %v3340
    %v3417 = vpack.c.b16 %v3349, %v3345
    %v3418 = vpack.c.b16 %v3350, %v3346
    %v3419 = vpack.c.b16 %v3351, %v3347
    %v3420 = vpack.c.b16 %v3352, %v3348
    %v3421 = vpack.c.b16 %v3357, %v3353
    %v3422 = vpack.c.b16 %v3358, %v3354
    %v3423 = vpack.c.b16 %v3359, %v3355
    %v3424 = vpack.c.b16 %v3360, %v3356
    %3489 = vmatprep.subr.bf16.mxu0 %v3362
    %3490 = vmatpush1.bf16.msra.mxu0 %v3361
    %3491 = vmatprep.subr.bf16.mxu0 %v3366
    %3492 = vmatpush1.bf16.msra.mxu0 %v3365
    %3493 = vmatprep.subr.bf16.mxu0 %v3370
    %3494 = vmatpush1.bf16.msra.mxu0 %v3369
    %3495 = vmatprep.subr.bf16.mxu0 %v3374
    %3496 = vmatpush1.bf16.msra.mxu0 %v3373
    %3497 = vmatprep.subr.bf16.mxu0 %v3378
    %3498 = vmatpush1.bf16.msra.mxu0 %v3377
    %3499 = vmatprep.subr.bf16.mxu0 %v3382
    %3500 = vmatpush1.bf16.msra.mxu0 %v3381
    %3501 = vmatprep.subr.bf16.mxu0 %v3386
    %3502 = vmatpush1.bf16.msra.mxu0 %v3385
    %3503 = vmatprep.subr.bf16.mxu0 %v3390
    %3504 = vmatpush1.bf16.msra.mxu0 %v3389
    %3505 = vmatprep.subr.bf16.mxu0 %v3394
    %3506 = vmatpush1.bf16.msra.mxu0 %v3393
    %3507 = vmatprep.subr.bf16.mxu0 %v3398
    %3508 = vmatpush1.bf16.msra.mxu0 %v3397
    %3509 = vmatprep.subr.bf16.mxu0 %v3402
    %3510 = vmatpush1.bf16.msra.mxu0 %v3401
    %3511 = vmatprep.subr.bf16.mxu0 %v3406
    %3512 = vmatpush1.bf16.msra.mxu0 %v3405
    %3513 = vmatprep.subr.bf16.mxu0 %v3410
    %3514 = vmatpush1.bf16.msra.mxu0 %v3409
    %3515 = vmatprep.subr.bf16.mxu0 %v3414
    %3516 = vmatpush1.bf16.msra.mxu0 %v3413
    %3517 = vmatprep.subr.bf16.mxu0 %v3418
    %3518 = vmatpush1.bf16.msra.mxu0 %v3417
    %3519 = vmatprep.subr.bf16.mxu0 %v3422
    %3520 = vmatpush1.bf16.msra.mxu0 %v3421
    %3521 = vmatprep.mubr.bf16.mxu0 %v3020
    %3522 = vmatmul.mubr.bf16.gmra.mrb[0].mxu0 %v3019
    %v3523 = vpop.f32.mrb[0].mxu0
    %v3524 = vadd.f32 %v3152, %v3523
    %v3525 = vpop.f32.mrb[0].mxu0
    %v3526 = vadd.f32 %v3156, %v3525
    %v3527 = vpop.f32.mrb[0].mxu0
    %v3528 = vadd.f32 %v3152, %v3527
    %v3529 = vpop.f32.mrb[0].mxu0
    %v3530 = vadd.f32 %v3156, %v3529
    %3531 = vmatprep.mubr.bf16.mxu0 %v3022
    %3532 = vmatmul.mubr.bf16.gmra.mrb[0].mxu0 %v3021
    %v3533 = vpop.f32.mrb[0].mxu0
    %v3534 = vadd.f32 %v3152, %v3533
    %v3535 = vpop.f32.mrb[0].mxu0
    %v3536 = vadd.f32 %v3156, %v3535
    %v3537 = vpop.f32.mrb[0].mxu0
    %v3538 = vadd.f32 %v3152, %v3537
    %v3539 = vpop.f32.mrb[0].mxu0
    %v3540 = vadd.f32 %v3156, %v3539
    %3541 = vmatprep.mubr.bf16.mxu0 %v3024
    %3542 = vmatmul.mubr.bf16.gmra.mrb[0].mxu0 %v3023
    %v3543 = vpop.f32.mrb[0].mxu0
    %v3544 = vadd.f32 %v3152, %v3543
    %v3545 = vpop.f32.mrb[0].mxu0
    %v3546 = vadd.f32 %v3156, %v3545
    %v3547 = vpop.f32.mrb[0].mxu0
    %v3548 = vadd.f32 %v3152, %v3547
    %v3549 = vpop.f32.mrb[0].mxu0
    %v3550 = vadd.f32 %v3156, %v3549
    %3551 = vmatprep.mubr.bf16.mxu0 %v3026
    %3552 = vmatmul.mubr.bf16.gmra.mrb[0].mxu0 %v3025
    %v3553 = vpop.f32.mrb[0].mxu0
    %v3554 = vadd.f32 %v3152, %v3553
    %v3555 = vpop.f32.mrb[0].mxu0
    %v3556 = vadd.f32 %v3156, %v3555
    %v3557 = vpop.f32.mrb[0].mxu0
    %v3558 = vadd.f32 %v3152, %v3557
    %v3559 = vpop.f32.mrb[0].mxu0
    %v3560 = vadd.f32 %v3156, %v3559
    %3561 = vmatprep.mubr.bf16.mxu0 %v3028
    %3562 = vmatmul.mubr.bf16.gmra.mrb[0].mxu0 %v3027
    %v3563 = vpop.f32.mrb[0].mxu0
    %v3564 = vadd.f32 %v3152, %v3563
    %v3565 = vpop.f32.mrb[0].mxu0
    %v3566 = vadd.f32 %v3156, %v3565
    %v3567 = vpop.f32.mrb[0].mxu0
    %v3568 = vadd.f32 %v3152, %v3567
    %v3569 = vpop.f32.mrb[0].mxu0
    %v3570 = vadd.f32 %v3156, %v3569
    %3571 = vmatprep.mubr.bf16.mxu0 %v3030
    %3572 = vmatmul.mubr.bf16.gmra.mrb[0].mxu0 %v3029
    %v3573 = vpop.f32.mrb[0].mxu0
    %v3574 = vadd.f32 %v3152, %v3573
    %v3575 = vpop.f32.mrb[0].mxu0
    %v3576 = vadd.f32 %v3156, %v3575
    %v3577 = vpop.f32.mrb[0].mxu0
    %v3578 = vadd.f32 %v3152, %v3577
    %v3579 = vpop.f32.mrb[0].mxu0
    %v3580 = vadd.f32 %v3156, %v3579
    %3581 = vmatprep.mubr.bf16.mxu0 %v3032
    %3582 = vmatmul.mubr.bf16.gmra.mrb[0].mxu0 %v3031
    %v3583 = vpop.f32.mrb[0].mxu0
    %v3584 = vadd.f32 %v3152, %v3583
    %v3585 = vpop.f32.mrb[0].mxu0
    %v3586 = vadd.f32 %v3156, %v3585
    %v3587 = vpop.f32.mrb[0].mxu0
    %v3588 = vadd.f32 %v3152, %v3587
    %v3589 = vpop.f32.mrb[0].mxu0
    %v3590 = vadd.f32 %v3156, %v3589
    %3591 = vmatprep.mubr.bf16.mxu0 %v3034
    %3592 = vmatmul.mubr.bf16.gmra.mrb[0].mxu0 %v3033
    %v3593 = vpop.f32.mrb[0].mxu0
    %v3594 = vadd.f32 %v3152, %v3593
    %v3595 = vpop.f32.mrb[0].mxu0
    %v3596 = vadd.f32 %v3156, %v3595
    %v3597 = vpop.f32.mrb[0].mxu0
    %v3598 = vadd.f32 %v3152, %v3597
    %v3599 = vpop.f32.mrb[0].mxu0
    %v3600 = vadd.f32 %v3156, %v3599
    %3601 = vmatprep.mubr.bf16.mxu0 %v3036
    %3602 = vmatmul.mubr.bf16.gmra.mrb[0].mxu0 %v3035
    %v3603 = vpop.f32.mrb[0].mxu0
    %v3604 = vadd.f32 %v3152, %v3603
    %v3605 = vpop.f32.mrb[0].mxu0
    %v3606 = vadd.f32 %v3156, %v3605
    %v3607 = vpop.f32.mrb[0].mxu0
    %v3608 = vadd.f32 %v3152, %v3607
    %v3609 = vpop.f32.mrb[0].mxu0
    %v3610 = vadd.f32 %v3156, %v3609
    %3611 = vmatprep.mubr.bf16.mxu0 %v3038
    %3612 = vmatmul.mubr.bf16.gmra.mrb[0].mxu0 %v3037
    %v3613 = vpop.f32.mrb[0].mxu0
    %v3614 = vadd.f32 %v3152, %v3613
    %v3615 = vpop.f32.mrb[0].mxu0
    %v3616 = vadd.f32 %v3156, %v3615
    %v3617 = vpop.f32.mrb[0].mxu0
    %v3618 = vadd.f32 %v3152, %v3617
    %v3619 = vpop.f32.mrb[0].mxu0
    %v3620 = vadd.f32 %v3156, %v3619
    %3621 = vmatprep.mubr.bf16.mxu0 %v3040
    %3622 = vmatmul.mubr.bf16.gmra.mrb[0].mxu0 %v3039
    %v3623 = vpop.f32.mrb[0].mxu0
    %v3624 = vadd.f32 %v3152, %v3623
    %v3625 = vpop.f32.mrb[0].mxu0
    %v3626 = vadd.f32 %v3156, %v3625
    %v3627 = vpop.f32.mrb[0].mxu0
    %v3628 = vadd.f32 %v3152, %v3627
    %v3629 = vpop.f32.mrb[0].mxu0
    %v3630 = vadd.f32 %v3156, %v3629
    %3631 = vmatprep.mubr.bf16.mxu0 %v3042
    %3632 = vmatmul.mubr.bf16.gmra.mrb[0].mxu0 %v3041
    %v3633 = vpop.f32.mrb[0].mxu0
    %v3634 = vadd.f32 %v3152, %v3633
    %v3635 = vpop.f32.mrb[0].mxu0
    %v3636 = vadd.f32 %v3156, %v3635
    %v3637 = vpop.f32.mrb[0].mxu0
    %v3638 = vadd.f32 %v3152, %v3637
    %v3639 = vpop.f32.mrb[0].mxu0
    %v3640 = vadd.f32 %v3156, %v3639
    %3641 = vmatprep.mubr.bf16.mxu0 %v3044
    %3642 = vmatmul.mubr.bf16.gmra.mrb[0].mxu0 %v3043
    %v3643 = vpop.f32.mrb[0].mxu0
    %v3644 = vadd.f32 %v3152, %v3643
    %v3645 = vpop.f32.mrb[0].mxu0
    %v3646 = vadd.f32 %v3156, %v3645
    %v3647 = vpop.f32.mrb[0].mxu0
    %v3648 = vadd.f32 %v3152, %v3647
    %v3649 = vpop.f32.mrb[0].mxu0
    %v3650 = vadd.f32 %v3156, %v3649
    %3651 = vmatprep.mubr.bf16.mxu0 %v3046
    %3652 = vmatmul.mubr.bf16.gmra.mrb[0].mxu0 %v3045
    %v3653 = vpop.f32.mrb[0].mxu0
    %v3654 = vadd.f32 %v3152, %v3653
    %v3655 = vpop.f32.mrb[0].mxu0
    %v3656 = vadd.f32 %v3156, %v3655
    %v3657 = vpop.f32.mrb[0].mxu0
    %v3658 = vadd.f32 %v3152, %v3657
    %v3659 = vpop.f32.mrb[0].mxu0
    %v3660 = vadd.f32 %v3156, %v3659
    %3661 = vmatprep.mubr.bf16.mxu0 %v3048
    %3662 = vmatmul.mubr.bf16.gmra.mrb[0].mxu0 %v3047
    %v3663 = vpop.f32.mrb[0].mxu0
    %v3664 = vadd.f32 %v3152, %v3663
    %v3665 = vpop.f32.mrb[0].mxu0
    %v3666 = vadd.f32 %v3156, %v3665
    %v3667 = vpop.f32.mrb[0].mxu0
    %v3668 = vadd.f32 %v3152, %v3667
    %v3669 = vpop.f32.mrb[0].mxu0
    %v3670 = vadd.f32 %v3156, %v3669
    %3671 = vmatprep.mubr.bf16.mxu0 %v3050
    %3672 = vmatmul.mubr.bf16.gmra.mrb[0].mxu0 %v3049
    %v3673 = vpop.f32.mrb[0].mxu0
    %v3674 = vadd.f32 %v3152, %v3673
    %v3675 = vpop.f32.mrb[0].mxu0
    %v3676 = vadd.f32 %v3156, %v3675
    %v3677 = vpop.f32.mrb[0].mxu0
    %v3678 = vadd.f32 %v3152, %v3677
    %v3679 = vpop.f32.mrb[0].mxu0
    %v3680 = vadd.f32 %v3156, %v3679
    %3681 = vmatprep.mubr.bf16.mxu0 %v3052
    %3682 = vmatmul.mubr.bf16.gmra.mrb[0].mxu0 %v3051
    %v3683 = vpop.f32.mrb[0].mxu0
    %v3684 = vadd.f32 %v3152, %v3683
    %v3685 = vpop.f32.mrb[0].mxu0
    %v3686 = vadd.f32 %v3156, %v3685
    %v3687 = vpop.f32.mrb[0].mxu0
    %v3688 = vadd.f32 %v3152, %v3687
    %v3689 = vpop.f32.mrb[0].mxu0
    %v3690 = vadd.f32 %v3156, %v3689
    %3691 = vmatprep.mubr.bf16.mxu0 %v3054
    %3692 = vmatmul.mubr.bf16.gmra.mrb[0].mxu0 %v3053
    %v3693 = vpop.f32.mrb[0].mxu0
    %v3694 = vadd.f32 %v3152, %v3693
    %v3695 = vpop.f32.mrb[0].mxu0
    %v3696 = vadd.f32 %v3156, %v3695
    %v3697 = vpop.f32.mrb[0].mxu0
    %v3698 = vadd.f32 %v3152, %v3697
    %v3699 = vpop.f32.mrb[0].mxu0
    %v3700 = vadd.f32 %v3156, %v3699
    %3701 = vmatprep.mubr.bf16.mxu0 %v3056
    %3702 = vmatmul.mubr.bf16.gmra.mrb[0].mxu0 %v3055
    %v3703 = vpop.f32.mrb[0].mxu0
    %v3704 = vadd.f32 %v3152, %v3703
    %v3705 = vpop.f32.mrb[0].mxu0
    %v3706 = vadd.f32 %v3156, %v3705
    %v3707 = vpop.f32.mrb[0].mxu0
    %v3708 = vadd.f32 %v3152, %v3707
    %v3709 = vpop.f32.mrb[0].mxu0
    %v3710 = vadd.f32 %v3156, %v3709
    %3711 = vmatprep.mubr.bf16.mxu0 %v3058
    %3712 = vmatmul.mubr.bf16.gmra.mrb[0].mxu0 %v3057
    %v3713 = vpop.f32.mrb[0].mxu0
    %v3714 = vadd.f32 %v3152, %v3713
    %v3715 = vpop.f32.mrb[0].mxu0
    %v3716 = vadd.f32 %v3156, %v3715
    %v3717 = vpop.f32.mrb[0].mxu0
    %v3718 = vadd.f32 %v3152, %v3717
    %v3719 = vpop.f32.mrb[0].mxu0
    %v3720 = vadd.f32 %v3156, %v3719
    %3721 = vmatprep.mubr.bf16.mxu0 %v3060
    %3722 = vmatmul.mubr.bf16.gmra.mrb[0].mxu0 %v3059
    %v3723 = vpop.f32.mrb[0].mxu0
    %v3724 = vadd.f32 %v3152, %v3723
    %v3725 = vpop.f32.mrb[0].mxu0
    %v3726 = vadd.f32 %v3156, %v3725
    %v3727 = vpop.f32.mrb[0].mxu0
    %v3728 = vadd.f32 %v3152, %v3727
    %v3729 = vpop.f32.mrb[0].mxu0
    %v3730 = vadd.f32 %v3156, %v3729
    %3731 = vmatprep.mubr.bf16.mxu0 %v3062
    %3732 = vmatmul.mubr.bf16.gmra.mrb[0].mxu0 %v3061
    %v3733 = vpop.f32.mrb[0].mxu0
    %v3734 = vadd.f32 %v3152, %v3733
    %v3735 = vpop.f32.mrb[0].mxu0
    %v3736 = vadd.f32 %v3156, %v3735
    %v3737 = vpop.f32.mrb[0].mxu0
    %v3738 = vadd.f32 %v3152, %v3737
    %v3739 = vpop.f32.mrb[0].mxu0
    %v3740 = vadd.f32 %v3156, %v3739
    %3741 = vmatprep.mubr.bf16.mxu0 %v3064
    %3742 = vmatmul.mubr.bf16.gmra.mrb[0].mxu0 %v3063
    %v3743 = vpop.f32.mrb[0].mxu0
    %v3744 = vadd.f32 %v3152, %v3743
    %v3745 = vpop.f32.mrb[0].mxu0
    %v3746 = vadd.f32 %v3156, %v3745
    %v3747 = vpop.f32.mrb[0].mxu0
    %v3748 = vadd.f32 %v3152, %v3747
    %v3749 = vpop.f32.mrb[0].mxu0
    %v3750 = vadd.f32 %v3156, %v3749
    %3751 = vmatprep.mubr.bf16.mxu0 %v3066
    %3752 = vmatmul.mubr.bf16.gmra.mrb[0].mxu0 %v3065
    %v3753 = vpop.f32.mrb[0].mxu0
    %v3754 = vadd.f32 %v3152, %v3753
    %v3755 = vpop.f32.mrb[0].mxu0
    %v3756 = vadd.f32 %v3156, %v3755
    %v3757 = vpop.f32.mrb[0].mxu0
    %v3758 = vadd.f32 %v3152, %v3757
    %v3759 = vpop.f32.mrb[0].mxu0
    %v3760 = vadd.f32 %v3156, %v3759
    %3761 = vmatprep.mubr.bf16.mxu0 %v3068
    %3762 = vmatmul.mubr.bf16.gmra.mrb[0].mxu0 %v3067
    %v3763 = vpop.f32.mrb[0].mxu0
    %v3764 = vadd.f32 %v3152, %v3763
    %v3765 = vpop.f32.mrb[0].mxu0
    %v3766 = vadd.f32 %v3156, %v3765
    %v3767 = vpop.f32.mrb[0].mxu0
    %v3768 = vadd.f32 %v3152, %v3767
    %v3769 = vpop.f32.mrb[0].mxu0
    %v3770 = vadd.f32 %v3156, %v3769
    %3771 = vmatprep.mubr.bf16.mxu0 %v3070
    %3772 = vmatmul.mubr.bf16.gmra.mrb[0].mxu0 %v3069
    %v3773 = vpop.f32.mrb[0].mxu0
    %v3774 = vadd.f32 %v3152, %v3773
    %v3775 = vpop.f32.mrb[0].mxu0
    %v3776 = vadd.f32 %v3156, %v3775
    %v3777 = vpop.f32.mrb[0].mxu0
    %v3778 = vadd.f32 %v3152, %v3777
    %v3779 = vpop.f32.mrb[0].mxu0
    %v3780 = vadd.f32 %v3156, %v3779
    %3781 = vmatprep.mubr.bf16.mxu0 %v3072
    %3782 = vmatmul.mubr.bf16.gmra.mrb[0].mxu0 %v3071
    %v3783 = vpop.f32.mrb[0].mxu0
    %v3784 = vadd.f32 %v3152, %v3783
    %v3785 = vpop.f32.mrb[0].mxu0
    %v3786 = vadd.f32 %v3156, %v3785
    %v3787 = vpop.f32.mrb[0].mxu0
    %v3788 = vadd.f32 %v3152, %v3787
    %v3789 = vpop.f32.mrb[0].mxu0
    %v3790 = vadd.f32 %v3156, %v3789
    %3791 = vmatprep.mubr.bf16.mxu0 %v3074
    %3792 = vmatmul.mubr.bf16.gmra.mrb[0].mxu0 %v3073
    %v3793 = vpop.f32.mrb[0].mxu0
    %v3794 = vadd.f32 %v3152, %v3793
    %v3795 = vpop.f32.mrb[0].mxu0
    %v3796 = vadd.f32 %v3156, %v3795
    %v3797 = vpop.f32.mrb[0].mxu0
    %v3798 = vadd.f32 %v3152, %v3797
    %v3799 = vpop.f32.mrb[0].mxu0
    %v3800 = vadd.f32 %v3156, %v3799
    %3801 = vmatprep.mubr.bf16.mxu0 %v3076
    %3802 = vmatmul.mubr.bf16.gmra.mrb[0].mxu0 %v3075
    %v3803 = vpop.f32.mrb[0].mxu0
    %v3804 = vadd.f32 %v3152, %v3803
    %v3805 = vpop.f32.mrb[0].mxu0
    %v3806 = vadd.f32 %v3156, %v3805
    %v3807 = vpop.f32.mrb[0].mxu0
    %v3808 = vadd.f32 %v3152, %v3807
    %v3809 = vpop.f32.mrb[0].mxu0
    %v3810 = vadd.f32 %v3156, %v3809
    %3811 = vmatprep.mubr.bf16.mxu0 %v3078
    %3812 = vmatmul.mubr.bf16.gmra.mrb[0].mxu0 %v3077
    %v3813 = vpop.f32.mrb[0].mxu0
    %v3814 = vadd.f32 %v3152, %v3813
    %v3815 = vpop.f32.mrb[0].mxu0
    %v3816 = vadd.f32 %v3156, %v3815
    %v3817 = vpop.f32.mrb[0].mxu0
    %v3818 = vadd.f32 %v3152, %v3817
    %v3819 = vpop.f32.mrb[0].mxu0
    %v3820 = vadd.f32 %v3156, %v3819
    %3821 = vmatprep.mubr.bf16.mxu0 %v3080
    %3822 = vmatmul.mubr.bf16.gmra.mrb[0].mxu0 %v3079
    %v3823 = vpop.f32.mrb[0].mxu0
    %v3824 = vadd.f32 %v3152, %v3823
    %v3825 = vpop.f32.mrb[0].mxu0
    %v3826 = vadd.f32 %v3156, %v3825
    %v3827 = vpop.f32.mrb[0].mxu0
    %v3828 = vadd.f32 %v3152, %v3827
    %v3829 = vpop.f32.mrb[0].mxu0
    %v3830 = vadd.f32 %v3156, %v3829
    %3831 = vmatprep.mubr.bf16.mxu0 %v3082
    %3832 = vmatmul.mubr.bf16.gmra.mrb[0].mxu0 %v3081
    %v3833 = vpop.f32.mrb[0].mxu0
    %v3834 = vadd.f32 %v3152, %v3833
    %v3835 = vpop.f32.mrb[0].mxu0
    %v3836 = vadd.f32 %v3156, %v3835
    %v3837 = vpop.f32.mrb[0].mxu0
    %v3838 = vadd.f32 %v3152, %v3837
    %v3839 = vpop.f32.mrb[0].mxu0
    %v3840 = vadd.f32 %v3156, %v3839
    %3841 = vdwg.mxu0
    %3842 = vmatprep.subr.bf16.mxu0 %v3364
    %3843 = vmatpush1.bf16.msra.mxu0 %v3363
    %3844 = vmatprep.subr.bf16.mxu0 %v3368
    %3845 = vmatpush1.bf16.msra.mxu0 %v3367
    %3846 = vmatprep.subr.bf16.mxu0 %v3372
    %3847 = vmatpush1.bf16.msra.mxu0 %v3371
    %3848 = vmatprep.subr.bf16.mxu0 %v3376
    %3849 = vmatpush1.bf16.msra.mxu0 %v3375
    %3850 = vmatprep.subr.bf16.mxu0 %v3380
    %3851 = vmatpush1.bf16.msra.mxu0 %v3379
    %3852 = vmatprep.subr.bf16.mxu0 %v3384
    %3853 = vmatpush1.bf16.msra.mxu0 %v3383
    %3854 = vmatprep.subr.bf16.mxu0 %v3388
    %3855 = vmatpush1.bf16.msra.mxu0 %v3387
    %3856 = vmatprep.subr.bf16.mxu0 %v3392
    %3857 = vmatpush1.bf16.msra.mxu0 %v3391
    %3858 = vmatprep.subr.bf16.mxu0 %v3396
    %3859 = vmatpush1.bf16.msra.mxu0 %v3395
    %3860 = vmatprep.subr.bf16.mxu0 %v3400
    %3861 = vmatpush1.bf16.msra.mxu0 %v3399
    %3862 = vmatprep.subr.bf16.mxu0 %v3404
    %3863 = vmatpush1.bf16.msra.mxu0 %v3403
    %3864 = vmatprep.subr.bf16.mxu0 %v3408
    %3865 = vmatpush1.bf16.msra.mxu0 %v3407
    %3866 = vmatprep.subr.bf16.mxu0 %v3412
    %3867 = vmatpush1.bf16.msra.mxu0 %v3411
    %3868 = vmatprep.subr.bf16.mxu0 %v3416
    %3869 = vmatpush1.bf16.msra.mxu0 %v3415
    %3870 = vmatprep.subr.bf16.mxu0 %v3420
    %3871 = vmatpush1.bf16.msra.mxu0 %v3419
    %3872 = vmatprep.subr.bf16.mxu0 %v3424
    %3873 = vmatpush1.bf16.msra.mxu0 %v3423
    %3874 = vmatprep.mubr.bf16.mxu0 %v3020
    %3875 = vmatmul.mubr.bf16.gmra.mrb[0].mxu0 %v3019
    %v3876 = vpop.f32.mrb[0].mxu0
    %v3877 = vadd.f32 %v3160, %v3876
    %v3878 = vpop.f32.mrb[0].mxu0
    %v3879 = vadd.f32 %v3164, %v3878
    %v3880 = vpop.f32.mrb[0].mxu0
    %v3881 = vadd.f32 %v3160, %v3880
    %v3882 = vpop.f32.mrb[0].mxu0
    %v3883 = vadd.f32 %v3164, %v3882
    %3884 = vmatprep.mubr.bf16.mxu0 %v3022
    %3885 = vmatmul.mubr.bf16.gmra.mrb[0].mxu0 %v3021
    %v3886 = vpop.f32.mrb[0].mxu0
    %v3887 = vadd.f32 %v3160, %v3886
    %v3888 = vpop.f32.mrb[0].mxu0
    %v3889 = vadd.f32 %v3164, %v3888
    %v3890 = vpop.f32.mrb[0].mxu0
    %v3891 = vadd.f32 %v3160, %v3890
    %v3892 = vpop.f32.mrb[0].mxu0
    %v3893 = vadd.f32 %v3164, %v3892
    %3894 = vmatprep.mubr.bf16.mxu0 %v3024
    %3895 = vmatmul.mubr.bf16.gmra.mrb[0].mxu0 %v3023
    %v3896 = vpop.f32.mrb[0].mxu0
    %v3897 = vadd.f32 %v3160, %v3896
    %v3898 = vpop.f32.mrb[0].mxu0
    %v3899 = vadd.f32 %v3164, %v3898
    %v3900 = vpop.f32.mrb[0].mxu0
    %v3901 = vadd.f32 %v3160, %v3900
    %v3902 = vpop.f32.mrb[0].mxu0
    %v3903 = vadd.f32 %v3164, %v3902
    %3904 = vmatprep.mubr.bf16.mxu0 %v3026
    %3905 = vmatmul.mubr.bf16.gmra.mrb[0].mxu0 %v3025
    %v3906 = vpop.f32.mrb[0].mxu0
    %v3907 = vadd.f32 %v3160, %v3906
    %v3908 = vpop.f32.mrb[0].mxu0
    %v3909 = vadd.f32 %v3164, %v3908
    %v3910 = vpop.f32.mrb[0].mxu0
    %v3911 = vadd.f32 %v3160, %v3910
    %v3912 = vpop.f32.mrb[0].mxu0
    %v3913 = vadd.f32 %v3164, %v3912
    %3914 = vmatprep.mubr.bf16.mxu0 %v3028
    %3915 = vmatmul.mubr.bf16.gmra.mrb[0].mxu0 %v3027
    %v3916 = vpop.f32.mrb[0].mxu0
    %v3917 = vadd.f32 %v3160, %v3916
    %v3918 = vpop.f32.mrb[0].mxu0
    %v3919 = vadd.f32 %v3164, %v3918
    %v3920 = vpop.f32.mrb[0].mxu0
    %v3921 = vadd.f32 %v3160, %v3920
    %v3922 = vpop.f32.mrb[0].mxu0
    %v3923 = vadd.f32 %v3164, %v3922
    %3924 = vmatprep.mubr.bf16.mxu0 %v3030
    %3925 = vmatmul.mubr.bf16.gmra.mrb[0].mxu0 %v3029
    %v3926 = vpop.f32.mrb[0].mxu0
    %v3927 = vadd.f32 %v3160, %v3926
    %v3928 = vpop.f32.mrb[0].mxu0
    %v3929 = vadd.f32 %v3164, %v3928
    %v3930 = vpop.f32.mrb[0].mxu0
    %v3931 = vadd.f32 %v3160, %v3930
    %v3932 = vpop.f32.mrb[0].mxu0
    %v3933 = vadd.f32 %v3164, %v3932
    %3934 = vmatprep.mubr.bf16.mxu0 %v3032
    %3935 = vmatmul.mubr.bf16.gmra.mrb[0].mxu0 %v3031
    %v3936 = vpop.f32.mrb[0].mxu0
    %v3937 = vadd.f32 %v3160, %v3936
    %v3938 = vpop.f32.mrb[0].mxu0
    %v3939 = vadd.f32 %v3164, %v3938
    %v3940 = vpop.f32.mrb[0].mxu0
    %v3941 = vadd.f32 %v3160, %v3940
    %v3942 = vpop.f32.mrb[0].mxu0
    %v3943 = vadd.f32 %v3164, %v3942
    %3944 = vmatprep.mubr.bf16.mxu0 %v3034
    %3945 = vmatmul.mubr.bf16.gmra.mrb[0].mxu0 %v3033
    %v3946 = vpop.f32.mrb[0].mxu0
    %v3947 = vadd.f32 %v3160, %v3946
    %v3948 = vpop.f32.mrb[0].mxu0
    %v3949 = vadd.f32 %v3164, %v3948
    %v3950 = vpop.f32.mrb[0].mxu0
    %v3951 = vadd.f32 %v3160, %v3950
    %v3952 = vpop.f32.mrb[0].mxu0
    %v3953 = vadd.f32 %v3164, %v3952
    %3954 = vmatprep.mubr.bf16.mxu0 %v3036
    %3955 = vmatmul.mubr.bf16.gmra.mrb[0].mxu0 %v3035
    %v3956 = vpop.f32.mrb[0].mxu0
    %v3957 = vadd.f32 %v3160, %v3956
    %v3958 = vpop.f32.mrb[0].mxu0
    %v3959 = vadd.f32 %v3164, %v3958
    %v3960 = vpop.f32.mrb[0].mxu0
    %v3961 = vadd.f32 %v3160, %v3960
    %v3962 = vpop.f32.mrb[0].mxu0
    %v3963 = vadd.f32 %v3164, %v3962
    %3964 = vmatprep.mubr.bf16.mxu0 %v3038
    %3965 = vmatmul.mubr.bf16.gmra.mrb[0].mxu0 %v3037
    %v3966 = vpop.f32.mrb[0].mxu0
    %v3967 = vadd.f32 %v3160, %v3966
    %v3968 = vpop.f32.mrb[0].mxu0
    %v3969 = vadd.f32 %v3164, %v3968
    %v3970 = vpop.f32.mrb[0].mxu0
    %v3971 = vadd.f32 %v3160, %v3970
    %v3972 = vpop.f32.mrb[0].mxu0
    %v3973 = vadd.f32 %v3164, %v3972
    %3974 = vmatprep.mubr.bf16.mxu0 %v3040
    %3975 = vmatmul.mubr.bf16.gmra.mrb[0].mxu0 %v3039
    %v3976 = vpop.f32.mrb[0].mxu0
    %v3977 = vadd.f32 %v3160, %v3976
    %v3978 = vpop.f32.mrb[0].mxu0
    %v3979 = vadd.f32 %v3164, %v3978
    %v3980 = vpop.f32.mrb[0].mxu0
    %v3981 = vadd.f32 %v3160, %v3980
    %v3982 = vpop.f32.mrb[0].mxu0
    %v3983 = vadd.f32 %v3164, %v3982
    %3984 = vmatprep.mubr.bf16.mxu0 %v3042
    %3985 = vmatmul.mubr.bf16.gmra.mrb[0].mxu0 %v3041
    %v3986 = vpop.f32.mrb[0].mxu0
    %v3987 = vadd.f32 %v3160, %v3986
    %v3988 = vpop.f32.mrb[0].mxu0
    %v3989 = vadd.f32 %v3164, %v3988
    %v3990 = vpop.f32.mrb[0].mxu0
    %v3991 = vadd.f32 %v3160, %v3990
    %v3992 = vpop.f32.mrb[0].mxu0
    %v3993 = vadd.f32 %v3164, %v3992
    %3994 = vmatprep.mubr.bf16.mxu0 %v3044
    %3995 = vmatmul.mubr.bf16.gmra.mrb[0].mxu0 %v3043
    %v3996 = vpop.f32.mrb[0].mxu0
    %v3997 = vadd.f32 %v3160, %v3996
    %v3998 = vpop.f32.mrb[0].mxu0
    %v3999 = vadd.f32 %v3164, %v3998
    %v4000 = vpop.f32.mrb[0].mxu0
    %v4001 = vadd.f32 %v3160, %v4000
    %v4002 = vpop.f32.mrb[0].mxu0
    %v4003 = vadd.f32 %v3164, %v4002
    %4004 = vmatprep.mubr.bf16.mxu0 %v3046
    %4005 = vmatmul.mubr.bf16.gmra.mrb[0].mxu0 %v3045
    %v4006 = vpop.f32.mrb[0].mxu0
    %v4007 = vadd.f32 %v3160, %v4006
    %v4008 = vpop.f32.mrb[0].mxu0
    %v4009 = vadd.f32 %v3164, %v4008
    %v4010 = vpop.f32.mrb[0].mxu0
    %v4011 = vadd.f32 %v3160, %v4010
    %v4012 = vpop.f32.mrb[0].mxu0
    %v4013 = vadd.f32 %v3164, %v4012
    %4014 = vmatprep.mubr.bf16.mxu0 %v3048
    %4015 = vmatmul.mubr.bf16.gmra.mrb[0].mxu0 %v3047
    %v4016 = vpop.f32.mrb[0].mxu0
    %v4017 = vadd.f32 %v3160, %v4016
    %v4018 = vpop.f32.mrb[0].mxu0
    %v4019 = vadd.f32 %v3164, %v4018
    %v4020 = vpop.f32.mrb[0].mxu0
    %v4021 = vadd.f32 %v3160, %v4020
    %v4022 = vpop.f32.mrb[0].mxu0
    %v4023 = vadd.f32 %v3164, %v4022
    %4024 = vmatprep.mubr.bf16.mxu0 %v3050
    %4025 = vmatmul.mubr.bf16.gmra.mrb[0].mxu0 %v3049
    %v4026 = vpop.f32.mrb[0].mxu0
    %v4027 = vadd.f32 %v3160, %v4026
    %v4028 = vpop.f32.mrb[0].mxu0
    %v4029 = vadd.f32 %v3164, %v4028
    %v4030 = vpop.f32.mrb[0].mxu0
    %v4031 = vadd.f32 %v3160, %v4030
    %v4032 = vpop.f32.mrb[0].mxu0
    %v4033 = vadd.f32 %v3164, %v4032
    %4034 = vmatprep.mubr.bf16.mxu0 %v3052
    %4035 = vmatmul.mubr.bf16.gmra.mrb[0].mxu0 %v3051
    %v4036 = vpop.f32.mrb[0].mxu0
    %v4037 = vadd.f32 %v3160, %v4036
    %v4038 = vpop.f32.mrb[0].mxu0
    %v4039 = vadd.f32 %v3164, %v4038
    %v4040 = vpop.f32.mrb[0].mxu0
    %v4041 = vadd.f32 %v3160, %v4040
    %v4042 = vpop.f32.mrb[0].mxu0
    %v4043 = vadd.f32 %v3164, %v4042
    %4044 = vmatprep.mubr.bf16.mxu0 %v3054
    %4045 = vmatmul.mubr.bf16.gmra.mrb[0].mxu0 %v3053
    %v4046 = vpop.f32.mrb[0].mxu0
    %v4047 = vadd.f32 %v3160, %v4046
    %v4048 = vpop.f32.mrb[0].mxu0
    %v4049 = vadd.f32 %v3164, %v4048
    %v4050 = vpop.f32.mrb[0].mxu0
    %v4051 = vadd.f32 %v3160, %v4050
    %v4052 = vpop.f32.mrb[0].mxu0
    %v4053 = vadd.f32 %v3164, %v4052
    %4054 = vmatprep.mubr.bf16.mxu0 %v3056
    %4055 = vmatmul.mubr.bf16.gmra.mrb[0].mxu0 %v3055
    %v4056 = vpop.f32.mrb[0].mxu0
    %v4057 = vadd.f32 %v3160, %v4056
    %v4058 = vpop.f32.mrb[0].mxu0
    %v4059 = vadd.f32 %v3164, %v4058
    %v4060 = vpop.f32.mrb[0].mxu0
    %v4061 = vadd.f32 %v3160, %v4060
    %v4062 = vpop.f32.mrb[0].mxu0
    %v4063 = vadd.f32 %v3164, %v4062
    %4064 = vmatprep.mubr.bf16.mxu0 %v3058
    %4065 = vmatmul.mubr.bf16.gmra.mrb[0].mxu0 %v3057
    %v4066 = vpop.f32.mrb[0].mxu0
    %v4067 = vadd.f32 %v3160, %v4066
    %v4068 = vpop.f32.mrb[0].mxu0
    %v4069 = vadd.f32 %v3164, %v4068
    %v4070 = vpop.f32.mrb[0].mxu0
    %v4071 = vadd.f32 %v3160, %v4070
    %v4072 = vpop.f32.mrb[0].mxu0
    %v4073 = vadd.f32 %v3164, %v4072
    %4074 = vmatprep.mubr.bf16.mxu0 %v3060
    %4075 = vmatmul.mubr.bf16.gmra.mrb[0].mxu0 %v3059
    %v4076 = vpop.f32.mrb[0].mxu0
    %v4077 = vadd.f32 %v3160, %v4076
    %v4078 = vpop.f32.mrb[0].mxu0
    %v4079 = vadd.f32 %v3164, %v4078
    %v4080 = vpop.f32.mrb[0].mxu0
    %v4081 = vadd.f32 %v3160, %v4080
    %v4082 = vpop.f32.mrb[0].mxu0
    %v4083 = vadd.f32 %v3164, %v4082
    %4084 = vmatprep.mubr.bf16.mxu0 %v3062
    %4085 = vmatmul.mubr.bf16.gmra.mrb[0].mxu0 %v3061
    %v4086 = vpop.f32.mrb[0].mxu0
    %v4087 = vadd.f32 %v3160, %v4086
    %v4088 = vpop.f32.mrb[0].mxu0
    %v4089 = vadd.f32 %v3164, %v4088
    %v4090 = vpop.f32.mrb[0].mxu0
    %v4091 = vadd.f32 %v3160, %v4090
    %v4092 = vpop.f32.mrb[0].mxu0
    %v4093 = vadd.f32 %v3164, %v4092
    %4094 = vmatprep.mubr.bf16.mxu0 %v3064
    %4095 = vmatmul.mubr.bf16.gmra.mrb[0].mxu0 %v3063
    %v4096 = vpop.f32.mrb[0].mxu0
    %v4097 = vadd.f32 %v3160, %v4096
    %v4098 = vpop.f32.mrb[0].mxu0
    %v4099 = vadd.f32 %v3164, %v4098
    %v4100 = vpop.f32.mrb[0].mxu0
    %v4101 = vadd.f32 %v3160, %v4100
    %v4102 = vpop.f32.mrb[0].mxu0
    %v4103 = vadd.f32 %v3164, %v4102
    %4104 = vmatprep.mubr.bf16.mxu0 %v3066
    %4105 = vmatmul.mubr.bf16.gmra.mrb[0].mxu0 %v3065
    %v4106 = vpop.f32.mrb[0].mxu0
    %v4107 = vadd.f32 %v3160, %v4106
    %v4108 = vpop.f32.mrb[0].mxu0
    %v4109 = vadd.f32 %v3164, %v4108
    %v4110 = vpop.f32.mrb[0].mxu0
    %v4111 = vadd.f32 %v3160, %v4110
    %v4112 = vpop.f32.mrb[0].mxu0
    %v4113 = vadd.f32 %v3164, %v4112
    %4114 = vmatprep.mubr.bf16.mxu0 %v3068
    %4115 = vmatmul.mubr.bf16.gmra.mrb[0].mxu0 %v3067
    %v4116 = vpop.f32.mrb[0].mxu0
    %v4117 = vadd.f32 %v3160, %v4116
    %v4118 = vpop.f32.mrb[0].mxu0
    %v4119 = vadd.f32 %v3164, %v4118
    %v4120 = vpop.f32.mrb[0].mxu0
    %v4121 = vadd.f32 %v3160, %v4120
    %v4122 = vpop.f32.mrb[0].mxu0
    %v4123 = vadd.f32 %v3164, %v4122
    %4124 = vmatprep.mubr.bf16.mxu0 %v3070
    %4125 = vmatmul.mubr.bf16.gmra.mrb[0].mxu0 %v3069
    %v4126 = vpop.f32.mrb[0].mxu0
    %v4127 = vadd.f32 %v3160, %v4126
    %v4128 = vpop.f32.mrb[0].mxu0
    %v4129 = vadd.f32 %v3164, %v4128
    %v4130 = vpop.f32.mrb[0].mxu0
    %v4131 = vadd.f32 %v3160, %v4130
    %v4132 = vpop.f32.mrb[0].mxu0
    %v4133 = vadd.f32 %v3164, %v4132
    %4134 = vmatprep.mubr.bf16.mxu0 %v3072
    %4135 = vmatmul.mubr.bf16.gmra.mrb[0].mxu0 %v3071
    %v4136 = vpop.f32.mrb[0].mxu0
    %v4137 = vadd.f32 %v3160, %v4136
    %v4138 = vpop.f32.mrb[0].mxu0
    %v4139 = vadd.f32 %v3164, %v4138
    %v4140 = vpop.f32.mrb[0].mxu0
    %v4141 = vadd.f32 %v3160, %v4140
    %v4142 = vpop.f32.mrb[0].mxu0
    %v4143 = vadd.f32 %v3164, %v4142
    %4144 = vmatprep.mubr.bf16.mxu0 %v3074
    %4145 = vmatmul.mubr.bf16.gmra.mrb[0].mxu0 %v3073
    %v4146 = vpop.f32.mrb[0].mxu0
    %v4147 = vadd.f32 %v3160, %v4146
    %v4148 = vpop.f32.mrb[0].mxu0
    %v4149 = vadd.f32 %v3164, %v4148
    %v4150 = vpop.f32.mrb[0].mxu0
    %v4151 = vadd.f32 %v3160, %v4150
    %v4152 = vpop.f32.mrb[0].mxu0
    %v4153 = vadd.f32 %v3164, %v4152
    %4154 = vmatprep.mubr.bf16.mxu0 %v3076
    %4155 = vmatmul.mubr.bf16.gmra.mrb[0].mxu0 %v3075
    %v4156 = vpop.f32.mrb[0].mxu0
    %v4157 = vadd.f32 %v3160, %v4156
    %v4158 = vpop.f32.mrb[0].mxu0
    %v4159 = vadd.f32 %v3164, %v4158
    %v4160 = vpop.f32.mrb[0].mxu0
    %v4161 = vadd.f32 %v3160, %v4160
    %v4162 = vpop.f32.mrb[0].mxu0
    %v4163 = vadd.f32 %v3164, %v4162
    %4164 = vmatprep.mubr.bf16.mxu0 %v3078
    %4165 = vmatmul.mubr.bf16.gmra.mrb[0].mxu0 %v3077
    %v4166 = vpop.f32.mrb[0].mxu0
    %v4167 = vadd.f32 %v3160, %v4166
    %v4168 = vpop.f32.mrb[0].mxu0
    %v4169 = vadd.f32 %v3164, %v4168
    %v4170 = vpop.f32.mrb[0].mxu0
    %v4171 = vadd.f32 %v3160, %v4170
    %v4172 = vpop.f32.mrb[0].mxu0
    %v4173 = vadd.f32 %v3164, %v4172
    %4174 = vmatprep.mubr.bf16.mxu0 %v3080
    %4175 = vmatmul.mubr.bf16.gmra.mrb[0].mxu0 %v3079
    %v4176 = vpop.f32.mrb[0].mxu0
    %v4177 = vadd.f32 %v3160, %v4176
    %v4178 = vpop.f32.mrb[0].mxu0
    %v4179 = vadd.f32 %v3164, %v4178
    %v4180 = vpop.f32.mrb[0].mxu0
    %v4181 = vadd.f32 %v3160, %v4180
    %v4182 = vpop.f32.mrb[0].mxu0
    %v4183 = vadd.f32 %v3164, %v4182
    %4184 = vmatprep.mubr.bf16.mxu0 %v3082
    %4185 = vmatmul.mubr.bf16.gmra.mrb[0].mxu0 %v3081
    %v4186 = vpop.f32.mrb[0].mxu0
    %v4187 = vadd.f32 %v3160, %v4186
    %v4188 = vpop.f32.mrb[0].mxu0
    %v4189 = vadd.f32 %v3164, %v4188
    %v4190 = vpop.f32.mrb[0].mxu0
    %v4191 = vadd.f32 %v3160, %v4190
    %v4192 = vpop.f32.mrb[0].mxu0
    %v4193 = vadd.f32 %v3164, %v4192
    %4194 = vdwg.mxu0
    %v4195 = vmax.f32 %v3524, 0.0
    %v4196 = vmax.f32 %v3526, 0.0
    %v4197 = vmax.f32 %v3877, 0.0
    %v4198 = vmax.f32 %v3879, 0.0
    %v4199 = vmax.f32 %v3528, 0.0
    %v4200 = vmax.f32 %v3530, 0.0
    %v4201 = vmax.f32 %v3881, 0.0
    %v4202 = vmax.f32 %v3883, 0.0
    %v4203 = vmax.f32 %v3534, 0.0
    %v4204 = vmax.f32 %v3536, 0.0
    %v4205 = vmax.f32 %v3887, 0.0
    %v4206 = vmax.f32 %v3889, 0.0
    %v4207 = vmax.f32 %v3538, 0.0
    %v4208 = vmax.f32 %v3540, 0.0
    %v4209 = vmax.f32 %v3891, 0.0
    %v4210 = vmax.f32 %v3893, 0.0
    %v4211 = vmax.f32 %v3544, 0.0
    %v4212 = vmax.f32 %v3546, 0.0
    %v4213 = vmax.f32 %v3897, 0.0
    %v4214 = vmax.f32 %v3899, 0.0
    %v4215 = vmax.f32 %v3548, 0.0
    %v4216 = vmax.f32 %v3550, 0.0
    %v4217 = vmax.f32 %v3901, 0.0
    %v4218 = vmax.f32 %v3903, 0.0
    %v4219 = vmax.f32 %v3554, 0.0
    %v4220 = vmax.f32 %v3556, 0.0
    %v4221 = vmax.f32 %v3907, 0.0
    %v4222 = vmax.f32 %v3909, 0.0
    %v4223 = vmax.f32 %v3558, 0.0
    %v4224 = vmax.f32 %v3560, 0.0
    %v4225 = vmax.f32 %v3911, 0.0
    %v4226 = vmax.f32 %v3913, 0.0
    %v4227 = vmax.f32 %v3564, 0.0
    %v4228 = vmax.f32 %v3566, 0.0
    %v4229 = vmax.f32 %v3917, 0.0
    %v4230 = vmax.f32 %v3919, 0.0
    %v4231 = vmax.f32 %v3568, 0.0
    %v4232 = vmax.f32 %v3570, 0.0
    %v4233 = vmax.f32 %v3921, 0.0
    %v4234 = vmax.f32 %v3923, 0.0
    %v4235 = vmax.f32 %v3574, 0.0
    %v4236 = vmax.f32 %v3576, 0.0
    %v4237 = vmax.f32 %v3927, 0.0
    %v4238 = vmax.f32 %v3929, 0.0
    %v4239 = vmax.f32 %v3578, 0.0
    %v4240 = vmax.f32 %v3580, 0.0
    %v4241 = vmax.f32 %v3931, 0.0
    %v4242 = vmax.f32 %v3933, 0.0
    %v4243 = vmax.f32 %v3584, 0.0
    %v4244 = vmax.f32 %v3586, 0.0
    %v4245 = vmax.f32 %v3937, 0.0
    %v4246 = vmax.f32 %v3939, 0.0
    %v4247 = vmax.f32 %v3588, 0.0
    %v4248 = vmax.f32 %v3590, 0.0
    %v4249 = vmax.f32 %v3941, 0.0
    %v4250 = vmax.f32 %v3943, 0.0
    %v4251 = vmax.f32 %v3594, 0.0
    %v4252 = vmax.f32 %v3596, 0.0
    %v4253 = vmax.f32 %v3947, 0.0
    %v4254 = vmax.f32 %v3949, 0.0
    %v4255 = vmax.f32 %v3598, 0.0
    %v4256 = vmax.f32 %v3600, 0.0
    %v4257 = vmax.f32 %v3951, 0.0
    %v4258 = vmax.f32 %v3953, 0.0
    %v4259 = vmax.f32 %v3604, 0.0
    %v4260 = vmax.f32 %v3606, 0.0
    %v4261 = vmax.f32 %v3957, 0.0
    %v4262 = vmax.f32 %v3959, 0.0
    %v4263 = vmax.f32 %v3608, 0.0
    %v4264 = vmax.f32 %v3610, 0.0
    %v4265 = vmax.f32 %v3961, 0.0
    %v4266 = vmax.f32 %v3963, 0.0
    %v4267 = vmax.f32 %v3614, 0.0
    %v4268 = vmax.f32 %v3616, 0.0
    %v4269 = vmax.f32 %v3967, 0.0
    %v4270 = vmax.f32 %v3969, 0.0
    %v4271 = vmax.f32 %v3618, 0.0
    %v4272 = vmax.f32 %v3620, 0.0
    %v4273 = vmax.f32 %v3971, 0.0
    %v4274 = vmax.f32 %v3973, 0.0
    %v4275 = vmax.f32 %v3624, 0.0
    %v4276 = vmax.f32 %v3626, 0.0
    %v4277 = vmax.f32 %v3977, 0.0
    %v4278 = vmax.f32 %v3979, 0.0
    %v4279 = vmax.f32 %v3628, 0.0
    %v4280 = vmax.f32 %v3630, 0.0
    %v4281 = vmax.f32 %v3981, 0.0
    %v4282 = vmax.f32 %v3983, 0.0
    %v4283 = vmax.f32 %v3634, 0.0
    %v4284 = vmax.f32 %v3636, 0.0
    %v4285 = vmax.f32 %v3987, 0.0
    %v4286 = vmax.f32 %v3989, 0.0
    %v4287 = vmax.f32 %v3638, 0.0
    %v4288 = vmax.f32 %v3640, 0.0
    %v4289 = vmax.f32 %v3991, 0.0
    %v4290 = vmax.f32 %v3993, 0.0
    %v4291 = vmax.f32 %v3644, 0.0
    %v4292 = vmax.f32 %v3646, 0.0
    %v4293 = vmax.f32 %v3997, 0.0
    %v4294 = vmax.f32 %v3999, 0.0
    %v4295 = vmax.f32 %v3648, 0.0
    %v4296 = vmax.f32 %v3650, 0.0
    %v4297 = vmax.f32 %v4001, 0.0
    %v4298 = vmax.f32 %v4003, 0.0
    %v4299 = vmax.f32 %v3654, 0.0
    %v4300 = vmax.f32 %v3656, 0.0
    %v4301 = vmax.f32 %v4007, 0.0
    %v4302 = vmax.f32 %v4009, 0.0
    %v4303 = vmax.f32 %v3658, 0.0
    %v4304 = vmax.f32 %v3660, 0.0
    %v4305 = vmax.f32 %v4011, 0.0
    %v4306 = vmax.f32 %v4013, 0.0
    %v4307 = vmax.f32 %v3664, 0.0
    %v4308 = vmax.f32 %v3666, 0.0
    %v4309 = vmax.f32 %v4017, 0.0
    %v4310 = vmax.f32 %v4019, 0.0
    %v4311 = vmax.f32 %v3668, 0.0
    %v4312 = vmax.f32 %v3670, 0.0
    %v4313 = vmax.f32 %v4021, 0.0
    %v4314 = vmax.f32 %v4023, 0.0
    %v4315 = vmax.f32 %v3674, 0.0
    %v4316 = vmax.f32 %v3676, 0.0
    %v4317 = vmax.f32 %v4027, 0.0
    %v4318 = vmax.f32 %v4029, 0.0
    %v4319 = vmax.f32 %v3678, 0.0
    %v4320 = vmax.f32 %v3680, 0.0
    %v4321 = vmax.f32 %v4031, 0.0
    %v4322 = vmax.f32 %v4033, 0.0
    %v4323 = vmax.f32 %v3684, 0.0
    %v4324 = vmax.f32 %v3686, 0.0
    %v4325 = vmax.f32 %v4037, 0.0
    %v4326 = vmax.f32 %v4039, 0.0
    %v4327 = vmax.f32 %v3688, 0.0
    %v4328 = vmax.f32 %v3690, 0.0
    %v4329 = vmax.f32 %v4041, 0.0
    %v4330 = vmax.f32 %v4043, 0.0
    %v4331 = vmax.f32 %v3694, 0.0
    %v4332 = vmax.f32 %v3696, 0.0
    %v4333 = vmax.f32 %v4047, 0.0
    %v4334 = vmax.f32 %v4049, 0.0
    %v4335 = vmax.f32 %v3698, 0.0
    %v4336 = vmax.f32 %v3700, 0.0
    %v4337 = vmax.f32 %v4051, 0.0
    %v4338 = vmax.f32 %v4053, 0.0
    %v4339 = vmax.f32 %v3704, 0.0
    %v4340 = vmax.f32 %v3706, 0.0
    %v4341 = vmax.f32 %v4057, 0.0
    %v4342 = vmax.f32 %v4059, 0.0
    %v4343 = vmax.f32 %v3708, 0.0
    %v4344 = vmax.f32 %v3710, 0.0
    %v4345 = vmax.f32 %v4061, 0.0
    %v4346 = vmax.f32 %v4063, 0.0
    %v4347 = vmax.f32 %v3714, 0.0
    %v4348 = vmax.f32 %v3716, 0.0
    %v4349 = vmax.f32 %v4067, 0.0
    %v4350 = vmax.f32 %v4069, 0.0
    %v4351 = vmax.f32 %v3718, 0.0
    %v4352 = vmax.f32 %v3720, 0.0
    %v4353 = vmax.f32 %v4071, 0.0
    %v4354 = vmax.f32 %v4073, 0.0
    %v4355 = vmax.f32 %v3724, 0.0
    %v4356 = vmax.f32 %v3726, 0.0
    %v4357 = vmax.f32 %v4077, 0.0
    %v4358 = vmax.f32 %v4079, 0.0
    %v4359 = vmax.f32 %v3728, 0.0
    %v4360 = vmax.f32 %v3730, 0.0
    %v4361 = vmax.f32 %v4081, 0.0
    %v4362 = vmax.f32 %v4083, 0.0
    %v4363 = vmax.f32 %v3734, 0.0
    %v4364 = vmax.f32 %v3736, 0.0
    %v4365 = vmax.f32 %v4087, 0.0
    %v4366 = vmax.f32 %v4089, 0.0
    %v4367 = vmax.f32 %v3738, 0.0
    %v4368 = vmax.f32 %v3740, 0.0
    %v4369 = vmax.f32 %v4091, 0.0
    %v4370 = vmax.f32 %v4093, 0.0
    %v4371 = vmax.f32 %v3744, 0.0
    %v4372 = vmax.f32 %v3746, 0.0
    %v4373 = vmax.f32 %v4097, 0.0
    %v4374 = vmax.f32 %v4099, 0.0
    %v4375 = vmax.f32 %v3748, 0.0
    %v4376 = vmax.f32 %v3750, 0.0
    %v4377 = vmax.f32 %v4101, 0.0
    %v4378 = vmax.f32 %v4103, 0.0
    %v4379 = vmax.f32 %v3754, 0.0
    %v4380 = vmax.f32 %v3756, 0.0
    %v4381 = vmax.f32 %v4107, 0.0
    %v4382 = vmax.f32 %v4109, 0.0
    %v4383 = vmax.f32 %v3758, 0.0
    %v4384 = vmax.f32 %v3760, 0.0
    %v4385 = vmax.f32 %v4111, 0.0
    %v4386 = vmax.f32 %v4113, 0.0
    %v4387 = vmax.f32 %v3764, 0.0
    %v4388 = vmax.f32 %v3766, 0.0
    %v4389 = vmax.f32 %v4117, 0.0
    %v4390 = vmax.f32 %v4119, 0.0
    %v4391 = vmax.f32 %v3768, 0.0
    %v4392 = vmax.f32 %v3770, 0.0
    %v4393 = vmax.f32 %v4121, 0.0
    %v4394 = vmax.f32 %v4123, 0.0
    %v4395 = vmax.f32 %v3774, 0.0
    %v4396 = vmax.f32 %v3776, 0.0
    %v4397 = vmax.f32 %v4127, 0.0
    %v4398 = vmax.f32 %v4129, 0.0
    %v4399 = vmax.f32 %v3778, 0.0
    %v4400 = vmax.f32 %v3780, 0.0
    %v4401 = vmax.f32 %v4131, 0.0
    %v4402 = vmax.f32 %v4133, 0.0
    %v4403 = vmax.f32 %v3784, 0.0
    %v4404 = vmax.f32 %v3786, 0.0
    %v4405 = vmax.f32 %v4137, 0.0
    %v4406 = vmax.f32 %v4139, 0.0
    %v4407 = vmax.f32 %v3788, 0.0
    %v4408 = vmax.f32 %v3790, 0.0
    %v4409 = vmax.f32 %v4141, 0.0
    %v4410 = vmax.f32 %v4143, 0.0
    %v4411 = vmax.f32 %v3794, 0.0
    %v4412 = vmax.f32 %v3796, 0.0
    %v4413 = vmax.f32 %v4147, 0.0
    %v4414 = vmax.f32 %v4149, 0.0
    %v4415 = vmax.f32 %v3798, 0.0
    %v4416 = vmax.f32 %v3800, 0.0
    %v4417 = vmax.f32 %v4151, 0.0
    %v4418 = vmax.f32 %v4153, 0.0
    %v4419 = vmax.f32 %v3804, 0.0
    %v4420 = vmax.f32 %v3806, 0.0
    %v4421 = vmax.f32 %v4157, 0.0
    %v4422 = vmax.f32 %v4159, 0.0
    %v4423 = vmax.f32 %v3808, 0.0
    %v4424 = vmax.f32 %v3810, 0.0
    %v4425 = vmax.f32 %v4161, 0.0
    %v4426 = vmax.f32 %v4163, 0.0
    %v4427 = vmax.f32 %v3814, 0.0
    %v4428 = vmax.f32 %v3816, 0.0
    %v4429 = vmax.f32 %v4167, 0.0
    %v4430 = vmax.f32 %v4169, 0.0
    %v4431 = vmax.f32 %v3818, 0.0
    %v4432 = vmax.f32 %v3820, 0.0
    %v4433 = vmax.f32 %v4171, 0.0
    %v4434 = vmax.f32 %v4173, 0.0
    %v4435 = vmax.f32 %v3824, 0.0
    %v4436 = vmax.f32 %v3826, 0.0
    %v4437 = vmax.f32 %v4177, 0.0
    %v4438 = vmax.f32 %v4179, 0.0
    %v4439 = vmax.f32 %v3828, 0.0
    %v4440 = vmax.f32 %v3830, 0.0
    %v4441 = vmax.f32 %v4181, 0.0
    %v4442 = vmax.f32 %v4183, 0.0
    %v4443 = vmax.f32 %v3834, 0.0
    %v4444 = vmax.f32 %v3836, 0.0
    %v4445 = vmax.f32 %v4187, 0.0
    %v4446 = vmax.f32 %v4189, 0.0
    %v4447 = vmax.f32 %v3838, 0.0
    %v4448 = vmax.f32 %v3840, 0.0
    %v4449 = vmax.f32 %v4191, 0.0
    %v4450 = vmax.f32 %v4193, 0.0
    %v4451 = vpack.c.bf16 %v4199, %v4195
    %v4452 = vpack.c.bf16 %v4200, %v4196
    %v4453 = vpack.c.bf16 %v4201, %v4197
    %v4454 = vpack.c.bf16 %v4202, %v4198
    %v4455 = vpack.c.bf16 %v4207, %v4203
    %v4456 = vpack.c.bf16 %v4208, %v4204
    %v4457 = vpack.c.bf16 %v4209, %v4205
    %v4458 = vpack.c.bf16 %v4210, %v4206
    %v4459 = vpack.c.bf16 %v4215, %v4211
    %v4460 = vpack.c.bf16 %v4216, %v4212
    %v4461 = vpack.c.bf16 %v4217, %v4213
    %v4462 = vpack.c.bf16 %v4218, %v4214
    %v4463 = vpack.c.bf16 %v4223, %v4219
    %v4464 = vpack.c.bf16 %v4224, %v4220
    %v4465 = vpack.c.bf16 %v4225, %v4221
    %v4466 = vpack.c.bf16 %v4226, %v4222
    %v4467 = vpack.c.bf16 %v4231, %v4227
    %v4468 = vpack.c.bf16 %v4232, %v4228
    %v4469 = vpack.c.bf16 %v4233, %v4229
    %v4470 = vpack.c.bf16 %v4234, %v4230
    %v4471 = vpack.c.bf16 %v4239, %v4235
    %v4472 = vpack.c.bf16 %v4240, %v4236
    %v4473 = vpack.c.bf16 %v4241, %v4237
    %v4474 = vpack.c.bf16 %v4242, %v4238
    %v4475 = vpack.c.bf16 %v4247, %v4243
    %v4476 = vpack.c.bf16 %v4248, %v4244
    %v4477 = vpack.c.bf16 %v4249, %v4245
    %v4478 = vpack.c.bf16 %v4250, %v4246
    %v4479 = vpack.c.bf16 %v4255, %v4251
    %v4480 = vpack.c.bf16 %v4256, %v4252
    %v4481 = vpack.c.bf16 %v4257, %v4253
    %v4482 = vpack.c.bf16 %v4258, %v4254
    %v4483 = vpack.c.bf16 %v4263, %v4259
    %v4484 = vpack.c.bf16 %v4264, %v4260
    %v4485 = vpack.c.bf16 %v4265, %v4261
    %v4486 = vpack.c.bf16 %v4266, %v4262
    %v4487 = vpack.c.bf16 %v4271, %v4267
    %v4488 = vpack.c.bf16 %v4272, %v4268
    %v4489 = vpack.c.bf16 %v4273, %v4269
    %v4490 = vpack.c.bf16 %v4274, %v4270
    %v4491 = vpack.c.bf16 %v4279, %v4275
    %v4492 = vpack.c.bf16 %v4280, %v4276
    %v4493 = vpack.c.bf16 %v4281, %v4277
    %v4494 = vpack.c.bf16 %v4282, %v4278
    %v4495 = vpack.c.bf16 %v4287, %v4283
    %v4496 = vpack.c.bf16 %v4288, %v4284
    %v4497 = vpack.c.bf16 %v4289, %v4285
    %v4498 = vpack.c.bf16 %v4290, %v4286
    %v4499 = vpack.c.bf16 %v4295, %v4291
    %v4500 = vpack.c.bf16 %v4296, %v4292
    %v4501 = vpack.c.bf16 %v4297, %v4293
    %v4502 = vpack.c.bf16 %v4298, %v4294
    %v4503 = vpack.c.bf16 %v4303, %v4299
    %v4504 = vpack.c.bf16 %v4304, %v4300
    %v4505 = vpack.c.bf16 %v4305, %v4301
    %v4506 = vpack.c.bf16 %v4306, %v4302
    %v4507 = vpack.c.bf16 %v4311, %v4307
    %v4508 = vpack.c.bf16 %v4312, %v4308
    %v4509 = vpack.c.bf16 %v4313, %v4309
    %v4510 = vpack.c.bf16 %v4314, %v4310
    %v4511 = vpack.c.bf16 %v4319, %v4315
    %v4512 = vpack.c.bf16 %v4320, %v4316
    %v4513 = vpack.c.bf16 %v4321, %v4317
    %v4514 = vpack.c.bf16 %v4322, %v4318
    %v4515 = vpack.c.bf16 %v4327, %v4323
    %v4516 = vpack.c.bf16 %v4328, %v4324
    %v4517 = vpack.c.bf16 %v4329, %v4325
    %v4518 = vpack.c.bf16 %v4330, %v4326
    %v4519 = vpack.c.bf16 %v4335, %v4331
    %v4520 = vpack.c.bf16 %v4336, %v4332
    %v4521 = vpack.c.bf16 %v4337, %v4333
    %v4522 = vpack.c.bf16 %v4338, %v4334
    %v4523 = vpack.c.bf16 %v4343, %v4339
    %v4524 = vpack.c.bf16 %v4344, %v4340
    %v4525 = vpack.c.bf16 %v4345, %v4341
    %v4526 = vpack.c.bf16 %v4346, %v4342
    %v4527 = vpack.c.bf16 %v4351, %v4347
    %v4528 = vpack.c.bf16 %v4352, %v4348
    %v4529 = vpack.c.bf16 %v4353, %v4349
    %v4530 = vpack.c.bf16 %v4354, %v4350
    %v4531 = vpack.c.bf16 %v4359, %v4355
    %v4532 = vpack.c.bf16 %v4360, %v4356
    %v4533 = vpack.c.bf16 %v4361, %v4357
    %v4534 = vpack.c.bf16 %v4362, %v4358
    %v4535 = vpack.c.bf16 %v4367, %v4363
    %v4536 = vpack.c.bf16 %v4368, %v4364
    %v4537 = vpack.c.bf16 %v4369, %v4365
    %v4538 = vpack.c.bf16 %v4370, %v4366
    %v4539 = vpack.c.bf16 %v4375, %v4371
    %v4540 = vpack.c.bf16 %v4376, %v4372
    %v4541 = vpack.c.bf16 %v4377, %v4373
    %v4542 = vpack.c.bf16 %v4378, %v4374
    %v4543 = vpack.c.bf16 %v4383, %v4379
    %v4544 = vpack.c.bf16 %v4384, %v4380
    %v4545 = vpack.c.bf16 %v4385, %v4381
    %v4546 = vpack.c.bf16 %v4386, %v4382
    %v4547 = vpack.c.bf16 %v4391, %v4387
    %v4548 = vpack.c.bf16 %v4392, %v4388
    %v4549 = vpack.c.bf16 %v4393, %v4389
    %v4550 = vpack.c.bf16 %v4394, %v4390
    %v4551 = vpack.c.bf16 %v4399, %v4395
    %v4552 = vpack.c.bf16 %v4400, %v4396
    %v4553 = vpack.c.bf16 %v4401, %v4397
    %v4554 = vpack.c.bf16 %v4402, %v4398
    %v4555 = vpack.c.bf16 %v4407, %v4403
    %v4556 = vpack.c.bf16 %v4408, %v4404
    %v4557 = vpack.c.bf16 %v4409, %v4405
    %v4558 = vpack.c.bf16 %v4410, %v4406
    %v4559 = vpack.c.bf16 %v4415, %v4411
    %v4560 = vpack.c.bf16 %v4416, %v4412
    %v4561 = vpack.c.bf16 %v4417, %v4413
    %v4562 = vpack.c.bf16 %v4418, %v4414
    %v4563 = vpack.c.bf16 %v4423, %v4419
    %v4564 = vpack.c.bf16 %v4424, %v4420
    %v4565 = vpack.c.bf16 %v4425, %v4421
    %v4566 = vpack.c.bf16 %v4426, %v4422
    %v4567 = vpack.c.bf16 %v4431, %v4427
    %v4568 = vpack.c.bf16 %v4432, %v4428
    %v4569 = vpack.c.bf16 %v4433, %v4429
    %v4570 = vpack.c.bf16 %v4434, %v4430
    %v4571 = vpack.c.bf16 %v4439, %v4435
    %v4572 = vpack.c.bf16 %v4440, %v4436
    %v4573 = vpack.c.bf16 %v4441, %v4437
    %v4574 = vpack.c.bf16 %v4442, %v4438
    %v4575 = vpack.c.bf16 %v4447, %v4443
    %v4576 = vpack.c.bf16 %v4448, %v4444
    %v4577 = vpack.c.bf16 %v4449, %v4445
    %v4578 = vpack.c.bf16 %v4450, %v4446
    %v4579 = vld [vmem:[#allocation10] sm:$0xff]
    %v4580 = vld [vmem:[#allocation10 + $0x8] sm:$0xff]
    %v4581 = vld [vmem:[#allocation10 + $0x10] sm:$0xff]
    %v4582 = vld [vmem:[#allocation10 + $0x18] sm:$0xff]
    %v4583 = vld [vmem:[#allocation10 + $0x20] sm:$0xff]
    %v4584 = vld [vmem:[#allocation10 + $0x28] sm:$0xff]
    %v4585 = vld [vmem:[#allocation10 + $0x30] sm:$0xff]
    %v4586 = vld [vmem:[#allocation10 + $0x38] sm:$0xff]
    %v4587 = vld [vmem:[#allocation10 + $0x40] sm:$0xff]
    %v4588 = vld [vmem:[#allocation10 + $0x48] sm:$0xff]
    %v4589 = vld [vmem:[#allocation10 + $0x50] sm:$0xff]
    %v4590 = vld [vmem:[#allocation10 + $0x58] sm:$0xff]
    %v4591 = vld [vmem:[#allocation10 + $0x60] sm:$0xff]
    %v4592 = vld [vmem:[#allocation10 + $0x68] sm:$0xff]
    %v4593 = vld [vmem:[#allocation10 + $0x70] sm:$0xff]
    %v4594 = vld [vmem:[#allocation10 + $0x78] sm:$0xff]
    %v4595 = vld [vmem:[#allocation10 + $0x80] sm:$0xff]
    %v4596 = vld [vmem:[#allocation10 + $0x88] sm:$0xff]
    %v4597 = vld [vmem:[#allocation10 + $0x90] sm:$0xff]
    %v4598 = vld [vmem:[#allocation10 + $0x98] sm:$0xff]
    %v4599 = vld [vmem:[#allocation10 + $0xa0] sm:$0xff]
    %v4600 = vld [vmem:[#allocation10 + $0xa8] sm:$0xff]
    %v4601 = vld [vmem:[#allocation10 + $0xb0] sm:$0xff]
    %v4602 = vld [vmem:[#allocation10 + $0xb8] sm:$0xff]
    %v4603 = vld [vmem:[#allocation10 + $0xc0] sm:$0xff]
    %v4604 = vld [vmem:[#allocation10 + $0xc8] sm:$0xff]
    %v4605 = vld [vmem:[#allocation10 + $0xd0] sm:$0xff]
    %v4606 = vld [vmem:[#allocation10 + $0xd8] sm:$0xff]
    %v4607 = vld [vmem:[#allocation10 + $0xe0] sm:$0xff]
    %v4608 = vld [vmem:[#allocation10 + $0xe8] sm:$0xff]
    %v4609 = vld [vmem:[#allocation10 + $0xf0] sm:$0xff]
    %v4610 = vld [vmem:[#allocation10 + $0xf8] sm:$0xff]
    %v4611 = vld [vmem:[#allocation10 + $0x100] sm:$0xff]
    %v4612 = vld [vmem:[#allocation10 + $0x108] sm:$0xff]
    %v4613 = vld [vmem:[#allocation10 + $0x110] sm:$0xff]
    %v4614 = vld [vmem:[#allocation10 + $0x118] sm:$0xff]
    %v4615 = vld [vmem:[#allocation10 + $0x120] sm:$0xff]
    %v4616 = vld [vmem:[#allocation10 + $0x128] sm:$0xff]
    %v4617 = vld [vmem:[#allocation10 + $0x130] sm:$0xff]
    %v4618 = vld [vmem:[#allocation10 + $0x138] sm:$0xff]
    %v4619 = vld [vmem:[#allocation10 + $0x140] sm:$0xff]
    %v4620 = vld [vmem:[#allocation10 + $0x148] sm:$0xff]
    %v4621 = vld [vmem:[#allocation10 + $0x150] sm:$0xff]
    %v4622 = vld [vmem:[#allocation10 + $0x158] sm:$0xff]
    %v4623 = vld [vmem:[#allocation10 + $0x160] sm:$0xff]
    %v4624 = vld [vmem:[#allocation10 + $0x168] sm:$0xff]
    %v4625 = vld [vmem:[#allocation10 + $0x170] sm:$0xff]
    %v4626 = vld [vmem:[#allocation10 + $0x178] sm:$0xff]
    %v4627 = vld [vmem:[#allocation10 + $0x180] sm:$0xff]
    %v4628 = vld [vmem:[#allocation10 + $0x188] sm:$0xff]
    %v4629 = vld [vmem:[#allocation10 + $0x190] sm:$0xff]
    %v4630 = vld [vmem:[#allocation10 + $0x198] sm:$0xff]
    %v4631 = vld [vmem:[#allocation10 + $0x1a0] sm:$0xff]
    %v4632 = vld [vmem:[#allocation10 + $0x1a8] sm:$0xff]
    %v4633 = vld [vmem:[#allocation10 + $0x1b0] sm:$0xff]
    %v4634 = vld [vmem:[#allocation10 + $0x1b8] sm:$0xff]
    %v4635 = vld [vmem:[#allocation10 + $0x1c0] sm:$0xff]
    %v4636 = vld [vmem:[#allocation10 + $0x1c8] sm:$0xff]
    %v4637 = vld [vmem:[#allocation10 + $0x1d0] sm:$0xff]
    %v4638 = vld [vmem:[#allocation10 + $0x1d8] sm:$0xff]
    %v4639 = vld [vmem:[#allocation10 + $0x1e0] sm:$0xff]
    %v4640 = vld [vmem:[#allocation10 + $0x1e8] sm:$0xff]
    %v4641 = vld [vmem:[#allocation10 + $0x1f0] sm:$0xff]
    %v4642 = vld [vmem:[#allocation10 + $0x1f8] sm:$0xff]
    %v4643 = vld [vmem:[%s8] sm:$0x3]
    %v4645 = vlaneseq
    %v4646 = vshrl.u32 %v4645, 7
    %v4647 = vsub.s32 0, %v4646
    %v4648 = vrot.slane %v4643, %v4647
    %v4649 = vlaneseq
    %v4650 = vshrl.u32 %v4649, 7
    %v4651 = vsub.s32 1, %v4650
    %v4652 = vrot.slane %v4643, %v4651
    %v4719 = vunpack.c.l.b16 %v4579
    %v4720 = vunpack.c.h.b16 %v4579
    %v4721 = vunpack.c.l.b16 %v4580
    %v4722 = vunpack.c.h.b16 %v4580
    %v4723 = vunpack.c.l.b16 %v4581
    %v4724 = vunpack.c.h.b16 %v4581
    %v4725 = vunpack.c.l.b16 %v4582
    %v4726 = vunpack.c.h.b16 %v4582
    %v4727 = vunpack.c.l.b16 %v4583
    %v4728 = vunpack.c.h.b16 %v4583
    %v4729 = vunpack.c.l.b16 %v4584
    %v4730 = vunpack.c.h.b16 %v4584
    %v4731 = vunpack.c.l.b16 %v4585
    %v4732 = vunpack.c.h.b16 %v4585
    %v4733 = vunpack.c.l.b16 %v4586
    %v4734 = vunpack.c.h.b16 %v4586
    %v4735 = vunpack.c.l.b16 %v4587
    %v4736 = vunpack.c.h.b16 %v4587
    %v4737 = vunpack.c.l.b16 %v4588
    %v4738 = vunpack.c.h.b16 %v4588
    %v4739 = vunpack.c.l.b16 %v4589
    %v4740 = vunpack.c.h.b16 %v4589
    %v4741 = vunpack.c.l.b16 %v4590
    %v4742 = vunpack.c.h.b16 %v4590
    %v4743 = vunpack.c.l.b16 %v4591
    %v4744 = vunpack.c.h.b16 %v4591
    %v4745 = vunpack.c.l.b16 %v4592
    %v4746 = vunpack.c.h.b16 %v4592
    %v4747 = vunpack.c.l.b16 %v4593
    %v4748 = vunpack.c.h.b16 %v4593
    %v4749 = vunpack.c.l.b16 %v4594
    %v4750 = vunpack.c.h.b16 %v4594
    %v4751 = vunpack.c.l.b16 %v4595
    %v4752 = vunpack.c.h.b16 %v4595
    %v4753 = vunpack.c.l.b16 %v4596
    %v4754 = vunpack.c.h.b16 %v4596
    %v4755 = vunpack.c.l.b16 %v4597
    %v4756 = vunpack.c.h.b16 %v4597
    %v4757 = vunpack.c.l.b16 %v4598
    %v4758 = vunpack.c.h.b16 %v4598
    %v4759 = vunpack.c.l.b16 %v4599
    %v4760 = vunpack.c.h.b16 %v4599
    %v4761 = vunpack.c.l.b16 %v4600
    %v4762 = vunpack.c.h.b16 %v4600
    %v4763 = vunpack.c.l.b16 %v4601
    %v4764 = vunpack.c.h.b16 %v4601
    %v4765 = vunpack.c.l.b16 %v4602
    %v4766 = vunpack.c.h.b16 %v4602
    %v4767 = vunpack.c.l.b16 %v4603
    %v4768 = vunpack.c.h.b16 %v4603
    %v4769 = vunpack.c.l.b16 %v4604
    %v4770 = vunpack.c.h.b16 %v4604
    %v4771 = vunpack.c.l.b16 %v4605
    %v4772 = vunpack.c.h.b16 %v4605
    %v4773 = vunpack.c.l.b16 %v4606
    %v4774 = vunpack.c.h.b16 %v4606
    %v4775 = vunpack.c.l.b16 %v4607
    %v4776 = vunpack.c.h.b16 %v4607
    %v4777 = vunpack.c.l.b16 %v4608
    %v4778 = vunpack.c.h.b16 %v4608
    %v4779 = vunpack.c.l.b16 %v4609
    %v4780 = vunpack.c.h.b16 %v4609
    %v4781 = vunpack.c.l.b16 %v4610
    %v4782 = vunpack.c.h.b16 %v4610
    %v4783 = vunpack.c.l.b16 %v4611
    %v4784 = vunpack.c.h.b16 %v4611
    %v4785 = vunpack.c.l.b16 %v4612
    %v4786 = vunpack.c.h.b16 %v4612
    %v4787 = vunpack.c.l.b16 %v4613
    %v4788 = vunpack.c.h.b16 %v4613
    %v4789 = vunpack.c.l.b16 %v4614
    %v4790 = vunpack.c.h.b16 %v4614
    %v4791 = vunpack.c.l.b16 %v4615
    %v4792 = vunpack.c.h.b16 %v4615
    %v4793 = vunpack.c.l.b16 %v4616
    %v4794 = vunpack.c.h.b16 %v4616
    %v4795 = vunpack.c.l.b16 %v4617
    %v4796 = vunpack.c.h.b16 %v4617
    %v4797 = vunpack.c.l.b16 %v4618
    %v4798 = vunpack.c.h.b16 %v4618
    %v4799 = vunpack.c.l.b16 %v4619
    %v4800 = vunpack.c.h.b16 %v4619
    %v4801 = vunpack.c.l.b16 %v4620
    %v4802 = vunpack.c.h.b16 %v4620
    %v4803 = vunpack.c.l.b16 %v4621
    %v4804 = vunpack.c.h.b16 %v4621
    %v4805 = vunpack.c.l.b16 %v4622
    %v4806 = vunpack.c.h.b16 %v4622
    %v4807 = vunpack.c.l.b16 %v4623
    %v4808 = vunpack.c.h.b16 %v4623
    %v4809 = vunpack.c.l.b16 %v4624
    %v4810 = vunpack.c.h.b16 %v4624
    %v4811 = vunpack.c.l.b16 %v4625
    %v4812 = vunpack.c.h.b16 %v4625
    %v4813 = vunpack.c.l.b16 %v4626
    %v4814 = vunpack.c.h.b16 %v4626
    %v4815 = vunpack.c.l.b16 %v4627
    %v4816 = vunpack.c.h.b16 %v4627
    %v4817 = vunpack.c.l.b16 %v4628
    %v4818 = vunpack.c.h.b16 %v4628
    %v4819 = vunpack.c.l.b16 %v4629
    %v4820 = vunpack.c.h.b16 %v4629
    %v4821 = vunpack.c.l.b16 %v4630
    %v4822 = vunpack.c.h.b16 %v4630
    %v4823 = vunpack.c.l.b16 %v4631
    %v4824 = vunpack.c.h.b16 %v4631
    %v4825 = vunpack.c.l.b16 %v4632
    %v4826 = vunpack.c.h.b16 %v4632
    %v4827 = vunpack.c.l.b16 %v4633
    %v4828 = vunpack.c.h.b16 %v4633
    %v4829 = vunpack.c.l.b16 %v4634
    %v4830 = vunpack.c.h.b16 %v4634
    %v4831 = vunpack.c.l.b16 %v4635
    %v4832 = vunpack.c.h.b16 %v4635
    %v4833 = vunpack.c.l.b16 %v4636
    %v4834 = vunpack.c.h.b16 %v4636
    %v4835 = vunpack.c.l.b16 %v4637
    %v4836 = vunpack.c.h.b16 %v4637
    %v4837 = vunpack.c.l.b16 %v4638
    %v4838 = vunpack.c.h.b16 %v4638
    %v4839 = vunpack.c.l.b16 %v4639
    %v4840 = vunpack.c.h.b16 %v4639
    %v4841 = vunpack.c.l.b16 %v4640
    %v4842 = vunpack.c.h.b16 %v4640
    %v4843 = vunpack.c.l.b16 %v4641
    %v4844 = vunpack.c.h.b16 %v4641
    %v4845 = vunpack.c.l.b16 %v4642
    %v4846 = vunpack.c.h.b16 %v4642
    %v4847 = vpack.c.b16 %v4721, %v4719
    %v4848 = vpack.c.b16 %v4722, %v4720
    %v4849 = vpack.c.b16 %v4725, %v4723
    %v4850 = vpack.c.b16 %v4726, %v4724
    %v4851 = vpack.c.b16 %v4729, %v4727
    %v4852 = vpack.c.b16 %v4730, %v4728
    %v4853 = vpack.c.b16 %v4733, %v4731
    %v4854 = vpack.c.b16 %v4734, %v4732
    %v4855 = vpack.c.b16 %v4737, %v4735
    %v4856 = vpack.c.b16 %v4738, %v4736
    %v4857 = vpack.c.b16 %v4741, %v4739
    %v4858 = vpack.c.b16 %v4742, %v4740
    %v4859 = vpack.c.b16 %v4745, %v4743
    %v4860 = vpack.c.b16 %v4746, %v4744
    %v4861 = vpack.c.b16 %v4749, %v4747
    %v4862 = vpack.c.b16 %v4750, %v4748
    %v4863 = vpack.c.b16 %v4753, %v4751
    %v4864 = vpack.c.b16 %v4754, %v4752
    %v4865 = vpack.c.b16 %v4757, %v4755
    %v4866 = vpack.c.b16 %v4758, %v4756
    %v4867 = vpack.c.b16 %v4761, %v4759
    %v4868 = vpack.c.b16 %v4762, %v4760
    %v4869 = vpack.c.b16 %v4765, %v4763
    %v4870 = vpack.c.b16 %v4766, %v4764
    %v4871 = vpack.c.b16 %v4769, %v4767
    %v4872 = vpack.c.b16 %v4770, %v4768
    %v4873 = vpack.c.b16 %v4773, %v4771
    %v4874 = vpack.c.b16 %v4774, %v4772
    %v4875 = vpack.c.b16 %v4777, %v4775
    %v4876 = vpack.c.b16 %v4778, %v4776
    %v4877 = vpack.c.b16 %v4781, %v4779
    %v4878 = vpack.c.b16 %v4782, %v4780
    %v4879 = vpack.c.b16 %v4785, %v4783
    %v4880 = vpack.c.b16 %v4786, %v4784
    %v4881 = vpack.c.b16 %v4789, %v4787
    %v4882 = vpack.c.b16 %v4790, %v4788
    %v4883 = vpack.c.b16 %v4793, %v4791
    %v4884 = vpack.c.b16 %v4794, %v4792
    %v4885 = vpack.c.b16 %v4797, %v4795
    %v4886 = vpack.c.b16 %v4798, %v4796
    %v4887 = vpack.c.b16 %v4801, %v4799
    %v4888 = vpack.c.b16 %v4802, %v4800
    %v4889 = vpack.c.b16 %v4805, %v4803
    %v4890 = vpack.c.b16 %v4806, %v4804
    %v4891 = vpack.c.b16 %v4809, %v4807
    %v4892 = vpack.c.b16 %v4810, %v4808
    %v4893 = vpack.c.b16 %v4813, %v4811
    %v4894 = vpack.c.b16 %v4814, %v4812
    %v4895 = vpack.c.b16 %v4817, %v4815
    %v4896 = vpack.c.b16 %v4818, %v4816
    %v4897 = vpack.c.b16 %v4821, %v4819
    %v4898 = vpack.c.b16 %v4822, %v4820
    %v4899 = vpack.c.b16 %v4825, %v4823
    %v4900 = vpack.c.b16 %v4826, %v4824
    %v4901 = vpack.c.b16 %v4829, %v4827
    %v4902 = vpack.c.b16 %v4830, %v4828
    %v4903 = vpack.c.b16 %v4833, %v4831
    %v4904 = vpack.c.b16 %v4834, %v4832
    %v4905 = vpack.c.b16 %v4837, %v4835
    %v4906 = vpack.c.b16 %v4838, %v4836
    %v4907 = vpack.c.b16 %v4841, %v4839
    %v4908 = vpack.c.b16 %v4842, %v4840
    %v4909 = vpack.c.b16 %v4845, %v4843
    %v4910 = vpack.c.b16 %v4846, %v4844
    %4975 = vmatprep.subr.bf16.mxu0 %v4848
    %4976 = vmatpush1.bf16.msra.mxu0 %v4847
    %4977 = vmatprep.subr.bf16.mxu0 %v4850
    %4978 = vmatpush1.bf16.msra.mxu0 %v4849
    %4979 = vmatprep.subr.bf16.mxu0 %v4852
    %4980 = vmatpush1.bf16.msra.mxu0 %v4851
    %4981 = vmatprep.subr.bf16.mxu0 %v4854
    %4982 = vmatpush1.bf16.msra.mxu0 %v4853
    %4983 = vmatprep.subr.bf16.mxu0 %v4856
    %4984 = vmatpush1.bf16.msra.mxu0 %v4855
    %4985 = vmatprep.subr.bf16.mxu0 %v4858
    %4986 = vmatpush1.bf16.msra.mxu0 %v4857
    %4987 = vmatprep.subr.bf16.mxu0 %v4860
    %4988 = vmatpush1.bf16.msra.mxu0 %v4859
    %4989 = vmatprep.subr.bf16.mxu0 %v4862
    %4990 = vmatpush1.bf16.msra.mxu0 %v4861
    %4991 = vmatprep.subr.bf16.mxu0 %v4864
    %4992 = vmatpush1.bf16.msra.mxu0 %v4863
    %4993 = vmatprep.subr.bf16.mxu0 %v4866
    %4994 = vmatpush1.bf16.msra.mxu0 %v4865
    %4995 = vmatprep.subr.bf16.mxu0 %v4868
    %4996 = vmatpush1.bf16.msra.mxu0 %v4867
    %4997 = vmatprep.subr.bf16.mxu0 %v4870
    %4998 = vmatpush1.bf16.msra.mxu0 %v4869
    %4999 = vmatprep.subr.bf16.mxu0 %v4872
    %5000 = vmatpush1.bf16.msra.mxu0 %v4871
    %5001 = vmatprep.subr.bf16.mxu0 %v4874
    %5002 = vmatpush1.bf16.msra.mxu0 %v4873
    %5003 = vmatprep.subr.bf16.mxu0 %v4876
    %5004 = vmatpush1.bf16.msra.mxu0 %v4875
    %5005 = vmatprep.subr.bf16.mxu0 %v4878
    %5006 = vmatpush1.bf16.msra.mxu0 %v4877
    %5007 = vmatprep.mubr.bf16.mxu0 %v4452
    %5008 = vmatmul.mubr.bf16.gmra.mrb[0].mxu0 %v4451
    %v5009 = vpop.f32.mrb[0].mxu0
    %v5010 = vadd.f32 %v4648, %v5009
    %v5011 = vpop.f32.mrb[0].mxu0
    %v5012 = vadd.f32 %v4652, %v5011
    %v5013 = vpop.f32.mrb[0].mxu0
    %v5014 = vadd.f32 %v4648, %v5013
    %v5015 = vpop.f32.mrb[0].mxu0
    %v5016 = vadd.f32 %v4652, %v5015
    %5017 = vmatprep.mubr.bf16.mxu0 %v4456
    %5018 = vmatmul.mubr.bf16.gmra.mrb[0].mxu0 %v4455
    %v5019 = vpop.f32.mrb[0].mxu0
    %v5020 = vadd.f32 %v4648, %v5019
    %v5021 = vpop.f32.mrb[0].mxu0
    %v5022 = vadd.f32 %v4652, %v5021
    %v5023 = vpop.f32.mrb[0].mxu0
    %v5024 = vadd.f32 %v4648, %v5023
    %v5025 = vpop.f32.mrb[0].mxu0
    %v5026 = vadd.f32 %v4652, %v5025
    %5027 = vmatprep.mubr.bf16.mxu0 %v4460
    %5028 = vmatmul.mubr.bf16.gmra.mrb[0].mxu0 %v4459
    %v5029 = vpop.f32.mrb[0].mxu0
    %v5030 = vadd.f32 %v4648, %v5029
    %v5031 = vpop.f32.mrb[0].mxu0
    %v5032 = vadd.f32 %v4652, %v5031
    %v5033 = vpop.f32.mrb[0].mxu0
    %v5034 = vadd.f32 %v4648, %v5033
    %v5035 = vpop.f32.mrb[0].mxu0
    %v5036 = vadd.f32 %v4652, %v5035
    %5037 = vmatprep.mubr.bf16.mxu0 %v4464
    %5038 = vmatmul.mubr.bf16.gmra.mrb[0].mxu0 %v4463
    %v5039 = vpop.f32.mrb[0].mxu0
    %v5040 = vadd.f32 %v4648, %v5039
    %v5041 = vpop.f32.mrb[0].mxu0
    %v5042 = vadd.f32 %v4652, %v5041
    %v5043 = vpop.f32.mrb[0].mxu0
    %v5044 = vadd.f32 %v4648, %v5043
    %v5045 = vpop.f32.mrb[0].mxu0
    %v5046 = vadd.f32 %v4652, %v5045
    %5047 = vmatprep.mubr.bf16.mxu0 %v4468
    %5048 = vmatmul.mubr.bf16.gmra.mrb[0].mxu0 %v4467
    %v5049 = vpop.f32.mrb[0].mxu0
    %v5050 = vadd.f32 %v4648, %v5049
    %v5051 = vpop.f32.mrb[0].mxu0
    %v5052 = vadd.f32 %v4652, %v5051
    %v5053 = vpop.f32.mrb[0].mxu0
    %v5054 = vadd.f32 %v4648, %v5053
    %v5055 = vpop.f32.mrb[0].mxu0
    %v5056 = vadd.f32 %v4652, %v5055
    %5057 = vmatprep.mubr.bf16.mxu0 %v4472
    %5058 = vmatmul.mubr.bf16.gmra.mrb[0].mxu0 %v4471
    %v5059 = vpop.f32.mrb[0].mxu0
    %v5060 = vadd.f32 %v4648, %v5059
    %v5061 = vpop.f32.mrb[0].mxu0
    %v5062 = vadd.f32 %v4652, %v5061
    %v5063 = vpop.f32.mrb[0].mxu0
    %v5064 = vadd.f32 %v4648, %v5063
    %v5065 = vpop.f32.mrb[0].mxu0
    %v5066 = vadd.f32 %v4652, %v5065
    %5067 = vmatprep.mubr.bf16.mxu0 %v4476
    %5068 = vmatmul.mubr.bf16.gmra.mrb[0].mxu0 %v4475
    %v5069 = vpop.f32.mrb[0].mxu0
    %v5070 = vadd.f32 %v4648, %v5069
    %v5071 = vpop.f32.mrb[0].mxu0
    %v5072 = vadd.f32 %v4652, %v5071
    %v5073 = vpop.f32.mrb[0].mxu0
    %v5074 = vadd.f32 %v4648, %v5073
    %v5075 = vpop.f32.mrb[0].mxu0
    %v5076 = vadd.f32 %v4652, %v5075
    %5077 = vmatprep.mubr.bf16.mxu0 %v4480
    %5078 = vmatmul.mubr.bf16.gmra.mrb[0].mxu0 %v4479
    %v5079 = vpop.f32.mrb[0].mxu0
    %v5080 = vadd.f32 %v4648, %v5079
    %v5081 = vpop.f32.mrb[0].mxu0
    %v5082 = vadd.f32 %v4652, %v5081
    %v5083 = vpop.f32.mrb[0].mxu0
    %v5084 = vadd.f32 %v4648, %v5083
    %v5085 = vpop.f32.mrb[0].mxu0
    %v5086 = vadd.f32 %v4652, %v5085
    %5087 = vmatprep.mubr.bf16.mxu0 %v4484
    %5088 = vmatmul.mubr.bf16.gmra.mrb[0].mxu0 %v4483
    %v5089 = vpop.f32.mrb[0].mxu0
    %v5090 = vadd.f32 %v4648, %v5089
    %v5091 = vpop.f32.mrb[0].mxu0
    %v5092 = vadd.f32 %v4652, %v5091
    %v5093 = vpop.f32.mrb[0].mxu0
    %v5094 = vadd.f32 %v4648, %v5093
    %v5095 = vpop.f32.mrb[0].mxu0
    %v5096 = vadd.f32 %v4652, %v5095
    %5097 = vmatprep.mubr.bf16.mxu0 %v4488
    %5098 = vmatmul.mubr.bf16.gmra.mrb[0].mxu0 %v4487
    %v5099 = vpop.f32.mrb[0].mxu0
    %v5100 = vadd.f32 %v4648, %v5099
    %v5101 = vpop.f32.mrb[0].mxu0
    %v5102 = vadd.f32 %v4652, %v5101
    %v5103 = vpop.f32.mrb[0].mxu0
    %v5104 = vadd.f32 %v4648, %v5103
    %v5105 = vpop.f32.mrb[0].mxu0
    %v5106 = vadd.f32 %v4652, %v5105
    %5107 = vmatprep.mubr.bf16.mxu0 %v4492
    %5108 = vmatmul.mubr.bf16.gmra.mrb[0].mxu0 %v4491
    %v5109 = vpop.f32.mrb[0].mxu0
    %v5110 = vadd.f32 %v4648, %v5109
    %v5111 = vpop.f32.mrb[0].mxu0
    %v5112 = vadd.f32 %v4652, %v5111
    %v5113 = vpop.f32.mrb[0].mxu0
    %v5114 = vadd.f32 %v4648, %v5113
    %v5115 = vpop.f32.mrb[0].mxu0
    %v5116 = vadd.f32 %v4652, %v5115
    %5117 = vmatprep.mubr.bf16.mxu0 %v4496
    %5118 = vmatmul.mubr.bf16.gmra.mrb[0].mxu0 %v4495
    %v5119 = vpop.f32.mrb[0].mxu0
    %v5120 = vadd.f32 %v4648, %v5119
    %v5121 = vpop.f32.mrb[0].mxu0
    %v5122 = vadd.f32 %v4652, %v5121
    %v5123 = vpop.f32.mrb[0].mxu0
    %v5124 = vadd.f32 %v4648, %v5123
    %v5125 = vpop.f32.mrb[0].mxu0
    %v5126 = vadd.f32 %v4652, %v5125
    %5127 = vmatprep.mubr.bf16.mxu0 %v4500
    %5128 = vmatmul.mubr.bf16.gmra.mrb[0].mxu0 %v4499
    %v5129 = vpop.f32.mrb[0].mxu0
    %v5130 = vadd.f32 %v4648, %v5129
    %v5131 = vpop.f32.mrb[0].mxu0
    %v5132 = vadd.f32 %v4652, %v5131
    %v5133 = vpop.f32.mrb[0].mxu0
    %v5134 = vadd.f32 %v4648, %v5133
    %v5135 = vpop.f32.mrb[0].mxu0
    %v5136 = vadd.f32 %v4652, %v5135
    %5137 = vmatprep.mubr.bf16.mxu0 %v4504
    %5138 = vmatmul.mubr.bf16.gmra.mrb[0].mxu0 %v4503
    %v5139 = vpop.f32.mrb[0].mxu0
    %v5140 = vadd.f32 %v4648, %v5139
    %v5141 = vpop.f32.mrb[0].mxu0
    %v5142 = vadd.f32 %v4652, %v5141
    %v5143 = vpop.f32.mrb[0].mxu0
    %v5144 = vadd.f32 %v4648, %v5143
    %v5145 = vpop.f32.mrb[0].mxu0
    %v5146 = vadd.f32 %v4652, %v5145
    %5147 = vmatprep.mubr.bf16.mxu0 %v4508
    %5148 = vmatmul.mubr.bf16.gmra.mrb[0].mxu0 %v4507
    %v5149 = vpop.f32.mrb[0].mxu0
    %v5150 = vadd.f32 %v4648, %v5149
    %v5151 = vpop.f32.mrb[0].mxu0
    %v5152 = vadd.f32 %v4652, %v5151
    %v5153 = vpop.f32.mrb[0].mxu0
    %v5154 = vadd.f32 %v4648, %v5153
    %v5155 = vpop.f32.mrb[0].mxu0
    %v5156 = vadd.f32 %v4652, %v5155
    %5157 = vmatprep.mubr.bf16.mxu0 %v4512
    %5158 = vmatmul.mubr.bf16.gmra.mrb[0].mxu0 %v4511
    %v5159 = vpop.f32.mrb[0].mxu0
    %v5160 = vadd.f32 %v4648, %v5159
    %v5161 = vpop.f32.mrb[0].mxu0
    %v5162 = vadd.f32 %v4652, %v5161
    %v5163 = vpop.f32.mrb[0].mxu0
    %v5164 = vadd.f32 %v4648, %v5163
    %v5165 = vpop.f32.mrb[0].mxu0
    %v5166 = vadd.f32 %v4652, %v5165
    %5167 = vmatprep.mubr.bf16.mxu0 %v4516
    %5168 = vmatmul.mubr.bf16.gmra.mrb[0].mxu0 %v4515
    %v5169 = vpop.f32.mrb[0].mxu0
    %v5170 = vadd.f32 %v4648, %v5169
    %v5171 = vpop.f32.mrb[0].mxu0
    %v5172 = vadd.f32 %v4652, %v5171
    %v5173 = vpop.f32.mrb[0].mxu0
    %v5174 = vadd.f32 %v4648, %v5173
    %v5175 = vpop.f32.mrb[0].mxu0
    %v5176 = vadd.f32 %v4652, %v5175
    %5177 = vmatprep.mubr.bf16.mxu0 %v4520
    %5178 = vmatmul.mubr.bf16.gmra.mrb[0].mxu0 %v4519
    %v5179 = vpop.f32.mrb[0].mxu0
    %v5180 = vadd.f32 %v4648, %v5179
    %v5181 = vpop.f32.mrb[0].mxu0
    %v5182 = vadd.f32 %v4652, %v5181
    %v5183 = vpop.f32.mrb[0].mxu0
    %v5184 = vadd.f32 %v4648, %v5183
    %v5185 = vpop.f32.mrb[0].mxu0
    %v5186 = vadd.f32 %v4652, %v5185
    %5187 = vmatprep.mubr.bf16.mxu0 %v4524
    %5188 = vmatmul.mubr.bf16.gmra.mrb[0].mxu0 %v4523
    %v5189 = vpop.f32.mrb[0].mxu0
    %v5190 = vadd.f32 %v4648, %v5189
    %v5191 = vpop.f32.mrb[0].mxu0
    %v5192 = vadd.f32 %v4652, %v5191
    %v5193 = vpop.f32.mrb[0].mxu0
    %v5194 = vadd.f32 %v4648, %v5193
    %v5195 = vpop.f32.mrb[0].mxu0
    %v5196 = vadd.f32 %v4652, %v5195
    %5197 = vmatprep.mubr.bf16.mxu0 %v4528
    %5198 = vmatmul.mubr.bf16.gmra.mrb[0].mxu0 %v4527
    %v5199 = vpop.f32.mrb[0].mxu0
    %v5200 = vadd.f32 %v4648, %v5199
    %v5201 = vpop.f32.mrb[0].mxu0
    %v5202 = vadd.f32 %v4652, %v5201
    %v5203 = vpop.f32.mrb[0].mxu0
    %v5204 = vadd.f32 %v4648, %v5203
    %v5205 = vpop.f32.mrb[0].mxu0
    %v5206 = vadd.f32 %v4652, %v5205
    %5207 = vmatprep.mubr.bf16.mxu0 %v4532
    %5208 = vmatmul.mubr.bf16.gmra.mrb[0].mxu0 %v4531
    %v5209 = vpop.f32.mrb[0].mxu0
    %v5210 = vadd.f32 %v4648, %v5209
    %v5211 = vpop.f32.mrb[0].mxu0
    %v5212 = vadd.f32 %v4652, %v5211
    %v5213 = vpop.f32.mrb[0].mxu0
    %v5214 = vadd.f32 %v4648, %v5213
    %v5215 = vpop.f32.mrb[0].mxu0
    %v5216 = vadd.f32 %v4652, %v5215
    %5217 = vmatprep.mubr.bf16.mxu0 %v4536
    %5218 = vmatmul.mubr.bf16.gmra.mrb[0].mxu0 %v4535
    %v5219 = vpop.f32.mrb[0].mxu0
    %v5220 = vadd.f32 %v4648, %v5219
    %v5221 = vpop.f32.mrb[0].mxu0
    %v5222 = vadd.f32 %v4652, %v5221
    %v5223 = vpop.f32.mrb[0].mxu0
    %v5224 = vadd.f32 %v4648, %v5223
    %v5225 = vpop.f32.mrb[0].mxu0
    %v5226 = vadd.f32 %v4652, %v5225
    %5227 = vmatprep.mubr.bf16.mxu0 %v4540
    %5228 = vmatmul.mubr.bf16.gmra.mrb[0].mxu0 %v4539
    %v5229 = vpop.f32.mrb[0].mxu0
    %v5230 = vadd.f32 %v4648, %v5229
    %v5231 = vpop.f32.mrb[0].mxu0
    %v5232 = vadd.f32 %v4652, %v5231
    %v5233 = vpop.f32.mrb[0].mxu0
    %v5234 = vadd.f32 %v4648, %v5233
    %v5235 = vpop.f32.mrb[0].mxu0
    %v5236 = vadd.f32 %v4652, %v5235
    %5237 = vmatprep.mubr.bf16.mxu0 %v4544
    %5238 = vmatmul.mubr.bf16.gmra.mrb[0].mxu0 %v4543
    %v5239 = vpop.f32.mrb[0].mxu0
    %v5240 = vadd.f32 %v4648, %v5239
    %v5241 = vpop.f32.mrb[0].mxu0
    %v5242 = vadd.f32 %v4652, %v5241
    %v5243 = vpop.f32.mrb[0].mxu0
    %v5244 = vadd.f32 %v4648, %v5243
    %v5245 = vpop.f32.mrb[0].mxu0
    %v5246 = vadd.f32 %v4652, %v5245
    %5247 = vmatprep.mubr.bf16.mxu0 %v4548
    %5248 = vmatmul.mubr.bf16.gmra.mrb[0].mxu0 %v4547
    %v5249 = vpop.f32.mrb[0].mxu0
    %v5250 = vadd.f32 %v4648, %v5249
    %v5251 = vpop.f32.mrb[0].mxu0
    %v5252 = vadd.f32 %v4652, %v5251
    %v5253 = vpop.f32.mrb[0].mxu0
    %v5254 = vadd.f32 %v4648, %v5253
    %v5255 = vpop.f32.mrb[0].mxu0
    %v5256 = vadd.f32 %v4652, %v5255
    %5257 = vmatprep.mubr.bf16.mxu0 %v4552
    %5258 = vmatmul.mubr.bf16.gmra.mrb[0].mxu0 %v4551
    %v5259 = vpop.f32.mrb[0].mxu0
    %v5260 = vadd.f32 %v4648, %v5259
    %v5261 = vpop.f32.mrb[0].mxu0
    %v5262 = vadd.f32 %v4652, %v5261
    %v5263 = vpop.f32.mrb[0].mxu0
    %v5264 = vadd.f32 %v4648, %v5263
    %v5265 = vpop.f32.mrb[0].mxu0
    %v5266 = vadd.f32 %v4652, %v5265
    %5267 = vmatprep.mubr.bf16.mxu0 %v4556
    %5268 = vmatmul.mubr.bf16.gmra.mrb[0].mxu0 %v4555
    %v5269 = vpop.f32.mrb[0].mxu0
    %v5270 = vadd.f32 %v4648, %v5269
    %v5271 = vpop.f32.mrb[0].mxu0
    %v5272 = vadd.f32 %v4652, %v5271
    %v5273 = vpop.f32.mrb[0].mxu0
    %v5274 = vadd.f32 %v4648, %v5273
    %v5275 = vpop.f32.mrb[0].mxu0
    %v5276 = vadd.f32 %v4652, %v5275
    %5277 = vmatprep.mubr.bf16.mxu0 %v4560
    %5278 = vmatmul.mubr.bf16.gmra.mrb[0].mxu0 %v4559
    %v5279 = vpop.f32.mrb[0].mxu0
    %v5280 = vadd.f32 %v4648, %v5279
    %v5281 = vpop.f32.mrb[0].mxu0
    %v5282 = vadd.f32 %v4652, %v5281
    %v5283 = vpop.f32.mrb[0].mxu0
    %v5284 = vadd.f32 %v4648, %v5283
    %v5285 = vpop.f32.mrb[0].mxu0
    %v5286 = vadd.f32 %v4652, %v5285
    %5287 = vmatprep.mubr.bf16.mxu0 %v4564
    %5288 = vmatmul.mubr.bf16.gmra.mrb[0].mxu0 %v4563
    %v5289 = vpop.f32.mrb[0].mxu0
    %v5290 = vadd.f32 %v4648, %v5289
    %v5291 = vpop.f32.mrb[0].mxu0
    %v5292 = vadd.f32 %v4652, %v5291
    %v5293 = vpop.f32.mrb[0].mxu0
    %v5294 = vadd.f32 %v4648, %v5293
    %v5295 = vpop.f32.mrb[0].mxu0
    %v5296 = vadd.f32 %v4652, %v5295
    %5297 = vmatprep.mubr.bf16.mxu0 %v4568
    %5298 = vmatmul.mubr.bf16.gmra.mrb[0].mxu0 %v4567
    %v5299 = vpop.f32.mrb[0].mxu0
    %v5300 = vadd.f32 %v4648, %v5299
    %v5301 = vpop.f32.mrb[0].mxu0
    %v5302 = vadd.f32 %v4652, %v5301
    %v5303 = vpop.f32.mrb[0].mxu0
    %v5304 = vadd.f32 %v4648, %v5303
    %v5305 = vpop.f32.mrb[0].mxu0
    %v5306 = vadd.f32 %v4652, %v5305
    %5307 = vmatprep.mubr.bf16.mxu0 %v4572
    %5308 = vmatmul.mubr.bf16.gmra.mrb[0].mxu0 %v4571
    %v5309 = vpop.f32.mrb[0].mxu0
    %v5310 = vadd.f32 %v4648, %v5309
    %v5311 = vpop.f32.mrb[0].mxu0
    %v5312 = vadd.f32 %v4652, %v5311
    %v5313 = vpop.f32.mrb[0].mxu0
    %v5314 = vadd.f32 %v4648, %v5313
    %v5315 = vpop.f32.mrb[0].mxu0
    %v5316 = vadd.f32 %v4652, %v5315
    %5317 = vmatprep.mubr.bf16.mxu0 %v4576
    %5318 = vmatmul.mubr.bf16.gmra.mrb[0].mxu0 %v4575
    %v5319 = vpop.f32.mrb[0].mxu0
    %v5320 = vadd.f32 %v4648, %v5319
    %v5321 = vpop.f32.mrb[0].mxu0
    %v5322 = vadd.f32 %v4652, %v5321
    %v5323 = vpop.f32.mrb[0].mxu0
    %v5324 = vadd.f32 %v4648, %v5323
    %v5325 = vpop.f32.mrb[0].mxu0
    %v5326 = vadd.f32 %v4652, %v5325
    %5327 = vdwg.mxu0
    %5328 = vmatprep.subr.bf16.mxu0 %v4880
    %5329 = vmatpush1.bf16.msra.mxu0 %v4879
    %5330 = vmatprep.subr.bf16.mxu0 %v4882
    %5331 = vmatpush1.bf16.msra.mxu0 %v4881
    %5332 = vmatprep.subr.bf16.mxu0 %v4884
    %5333 = vmatpush1.bf16.msra.mxu0 %v4883
    %5334 = vmatprep.subr.bf16.mxu0 %v4886
    %5335 = vmatpush1.bf16.msra.mxu0 %v4885
    %5336 = vmatprep.subr.bf16.mxu0 %v4888
    %5337 = vmatpush1.bf16.msra.mxu0 %v4887
    %5338 = vmatprep.subr.bf16.mxu0 %v4890
    %5339 = vmatpush1.bf16.msra.mxu0 %v4889
    %5340 = vmatprep.subr.bf16.mxu0 %v4892
    %5341 = vmatpush1.bf16.msra.mxu0 %v4891
    %5342 = vmatprep.subr.bf16.mxu0 %v4894
    %5343 = vmatpush1.bf16.msra.mxu0 %v4893
    %5344 = vmatprep.subr.bf16.mxu0 %v4896
    %5345 = vmatpush1.bf16.msra.mxu0 %v4895
    %5346 = vmatprep.subr.bf16.mxu0 %v4898
    %5347 = vmatpush1.bf16.msra.mxu0 %v4897
    %5348 = vmatprep.subr.bf16.mxu0 %v4900
    %5349 = vmatpush1.bf16.msra.mxu0 %v4899
    %5350 = vmatprep.subr.bf16.mxu0 %v4902
    %5351 = vmatpush1.bf16.msra.mxu0 %v4901
    %5352 = vmatprep.subr.bf16.mxu0 %v4904
    %5353 = vmatpush1.bf16.msra.mxu0 %v4903
    %5354 = vmatprep.subr.bf16.mxu0 %v4906
    %5355 = vmatpush1.bf16.msra.mxu0 %v4905
    %5356 = vmatprep.subr.bf16.mxu0 %v4908
    %5357 = vmatpush1.bf16.msra.mxu0 %v4907
    %5358 = vmatprep.subr.bf16.mxu0 %v4910
    %5359 = vmatpush1.bf16.msra.mxu0 %v4909
    %5360 = vmatprep.mubr.bf16.mxu0 %v4454
    %5361 = vmatmul.mubr.bf16.gmra.mrb[0].mxu0 %v4453
    %v5362 = vpop.f32.mrb[0].mxu0
    %v5363 = vadd.f32 %v5010, %v5362
    %v5364 = vpop.f32.mrb[0].mxu0
    %v5365 = vadd.f32 %v5012, %v5364
    %v5366 = vpop.f32.mrb[0].mxu0
    %v5367 = vadd.f32 %v5014, %v5366
    %v5368 = vpop.f32.mrb[0].mxu0
    %v5369 = vadd.f32 %v5016, %v5368
    %5370 = vmatprep.mubr.bf16.mxu0 %v4458
    %5371 = vmatmul.mubr.bf16.gmra.mrb[0].mxu0 %v4457
    %v5372 = vpop.f32.mrb[0].mxu0
    %v5373 = vadd.f32 %v5020, %v5372
    %v5374 = vpop.f32.mrb[0].mxu0
    %v5375 = vadd.f32 %v5022, %v5374
    %v5376 = vpop.f32.mrb[0].mxu0
    %v5377 = vadd.f32 %v5024, %v5376
    %v5378 = vpop.f32.mrb[0].mxu0
    %v5379 = vadd.f32 %v5026, %v5378
    %5380 = vmatprep.mubr.bf16.mxu0 %v4462
    %5381 = vmatmul.mubr.bf16.gmra.mrb[0].mxu0 %v4461
    %v5382 = vpop.f32.mrb[0].mxu0
    %v5383 = vadd.f32 %v5030, %v5382
    %v5384 = vpop.f32.mrb[0].mxu0
    %v5385 = vadd.f32 %v5032, %v5384
    %v5386 = vpop.f32.mrb[0].mxu0
    %v5387 = vadd.f32 %v5034, %v5386
    %v5388 = vpop.f32.mrb[0].mxu0
    %v5389 = vadd.f32 %v5036, %v5388
    %5390 = vmatprep.mubr.bf16.mxu0 %v4466
    %5391 = vmatmul.mubr.bf16.gmra.mrb[0].mxu0 %v4465
    %v5392 = vpop.f32.mrb[0].mxu0
    %v5393 = vadd.f32 %v5040, %v5392
    %v5394 = vpop.f32.mrb[0].mxu0
    %v5395 = vadd.f32 %v5042, %v5394
    %v5396 = vpop.f32.mrb[0].mxu0
    %v5397 = vadd.f32 %v5044, %v5396
    %v5398 = vpop.f32.mrb[0].mxu0
    %v5399 = vadd.f32 %v5046, %v5398
    %5400 = vmatprep.mubr.bf16.mxu0 %v4470
    %5401 = vmatmul.mubr.bf16.gmra.mrb[0].mxu0 %v4469
    %v5402 = vpop.f32.mrb[0].mxu0
    %v5403 = vadd.f32 %v5050, %v5402
    %v5404 = vpop.f32.mrb[0].mxu0
    %v5405 = vadd.f32 %v5052, %v5404
    %v5406 = vpop.f32.mrb[0].mxu0
    %v5407 = vadd.f32 %v5054, %v5406
    %v5408 = vpop.f32.mrb[0].mxu0
    %v5409 = vadd.f32 %v5056, %v5408
    %5410 = vmatprep.mubr.bf16.mxu0 %v4474
    %5411 = vmatmul.mubr.bf16.gmra.mrb[0].mxu0 %v4473
    %v5412 = vpop.f32.mrb[0].mxu0
    %v5413 = vadd.f32 %v5060, %v5412
    %v5414 = vpop.f32.mrb[0].mxu0
    %v5415 = vadd.f32 %v5062, %v5414
    %v5416 = vpop.f32.mrb[0].mxu0
    %v5417 = vadd.f32 %v5064, %v5416
    %v5418 = vpop.f32.mrb[0].mxu0
    %v5419 = vadd.f32 %v5066, %v5418
    %5420 = vmatprep.mubr.bf16.mxu0 %v4478
    %5421 = vmatmul.mubr.bf16.gmra.mrb[0].mxu0 %v4477
    %v5422 = vpop.f32.mrb[0].mxu0
    %v5423 = vadd.f32 %v5070, %v5422
    %v5424 = vpop.f32.mrb[0].mxu0
    %v5425 = vadd.f32 %v5072, %v5424
    %v5426 = vpop.f32.mrb[0].mxu0
    %v5427 = vadd.f32 %v5074, %v5426
    %v5428 = vpop.f32.mrb[0].mxu0
    %v5429 = vadd.f32 %v5076, %v5428
    %5430 = vmatprep.mubr.bf16.mxu0 %v4482
    %5431 = vmatmul.mubr.bf16.gmra.mrb[0].mxu0 %v4481
    %v5432 = vpop.f32.mrb[0].mxu0
    %v5433 = vadd.f32 %v5080, %v5432
    %v5434 = vpop.f32.mrb[0].mxu0
    %v5435 = vadd.f32 %v5082, %v5434
    %v5436 = vpop.f32.mrb[0].mxu0
    %v5437 = vadd.f32 %v5084, %v5436
    %v5438 = vpop.f32.mrb[0].mxu0
    %v5439 = vadd.f32 %v5086, %v5438
    %5440 = vmatprep.mubr.bf16.mxu0 %v4486
    %5441 = vmatmul.mubr.bf16.gmra.mrb[0].mxu0 %v4485
    %v5442 = vpop.f32.mrb[0].mxu0
    %v5443 = vadd.f32 %v5090, %v5442
    %v5444 = vpop.f32.mrb[0].mxu0
    %v5445 = vadd.f32 %v5092, %v5444
    %v5446 = vpop.f32.mrb[0].mxu0
    %v5447 = vadd.f32 %v5094, %v5446
    %v5448 = vpop.f32.mrb[0].mxu0
    %v5449 = vadd.f32 %v5096, %v5448
    %5450 = vmatprep.mubr.bf16.mxu0 %v4490
    %5451 = vmatmul.mubr.bf16.gmra.mrb[0].mxu0 %v4489
    %v5452 = vpop.f32.mrb[0].mxu0
    %v5453 = vadd.f32 %v5100, %v5452
    %v5454 = vpop.f32.mrb[0].mxu0
    %v5455 = vadd.f32 %v5102, %v5454
    %v5456 = vpop.f32.mrb[0].mxu0
    %v5457 = vadd.f32 %v5104, %v5456
    %v5458 = vpop.f32.mrb[0].mxu0
    %v5459 = vadd.f32 %v5106, %v5458
    %5460 = vmatprep.mubr.bf16.mxu0 %v4494
    %5461 = vmatmul.mubr.bf16.gmra.mrb[0].mxu0 %v4493
    %v5462 = vpop.f32.mrb[0].mxu0
    %v5463 = vadd.f32 %v5110, %v5462
    %v5464 = vpop.f32.mrb[0].mxu0
    %v5465 = vadd.f32 %v5112, %v5464
    %v5466 = vpop.f32.mrb[0].mxu0
    %v5467 = vadd.f32 %v5114, %v5466
    %v5468 = vpop.f32.mrb[0].mxu0
    %v5469 = vadd.f32 %v5116, %v5468
    %5470 = vmatprep.mubr.bf16.mxu0 %v4498
    %5471 = vmatmul.mubr.bf16.gmra.mrb[0].mxu0 %v4497
    %v5472 = vpop.f32.mrb[0].mxu0
    %v5473 = vadd.f32 %v5120, %v5472
    %v5474 = vpop.f32.mrb[0].mxu0
    %v5475 = vadd.f32 %v5122, %v5474
    %v5476 = vpop.f32.mrb[0].mxu0
    %v5477 = vadd.f32 %v5124, %v5476
    %v5478 = vpop.f32.mrb[0].mxu0
    %v5479 = vadd.f32 %v5126, %v5478
    %5480 = vmatprep.mubr.bf16.mxu0 %v4502
    %5481 = vmatmul.mubr.bf16.gmra.mrb[0].mxu0 %v4501
    %v5482 = vpop.f32.mrb[0].mxu0
    %v5483 = vadd.f32 %v5130, %v5482
    %v5484 = vpop.f32.mrb[0].mxu0
    %v5485 = vadd.f32 %v5132, %v5484
    %v5486 = vpop.f32.mrb[0].mxu0
    %v5487 = vadd.f32 %v5134, %v5486
    %v5488 = vpop.f32.mrb[0].mxu0
    %v5489 = vadd.f32 %v5136, %v5488
    %5490 = vmatprep.mubr.bf16.mxu0 %v4506
    %5491 = vmatmul.mubr.bf16.gmra.mrb[0].mxu0 %v4505
    %v5492 = vpop.f32.mrb[0].mxu0
    %v5493 = vadd.f32 %v5140, %v5492
    %v5494 = vpop.f32.mrb[0].mxu0
    %v5495 = vadd.f32 %v5142, %v5494
    %v5496 = vpop.f32.mrb[0].mxu0
    %v5497 = vadd.f32 %v5144, %v5496
    %v5498 = vpop.f32.mrb[0].mxu0
    %v5499 = vadd.f32 %v5146, %v5498
    %5500 = vmatprep.mubr.bf16.mxu0 %v4510
    %5501 = vmatmul.mubr.bf16.gmra.mrb[0].mxu0 %v4509
    %v5502 = vpop.f32.mrb[0].mxu0
    %v5503 = vadd.f32 %v5150, %v5502
    %v5504 = vpop.f32.mrb[0].mxu0
    %v5505 = vadd.f32 %v5152, %v5504
    %v5506 = vpop.f32.mrb[0].mxu0
    %v5507 = vadd.f32 %v5154, %v5506
    %v5508 = vpop.f32.mrb[0].mxu0
    %v5509 = vadd.f32 %v5156, %v5508
    %5510 = vmatprep.mubr.bf16.mxu0 %v4514
    %5511 = vmatmul.mubr.bf16.gmra.mrb[0].mxu0 %v4513
    %v5512 = vpop.f32.mrb[0].mxu0
    %v5513 = vadd.f32 %v5160, %v5512
    %v5514 = vpop.f32.mrb[0].mxu0
    %v5515 = vadd.f32 %v5162, %v5514
    %v5516 = vpop.f32.mrb[0].mxu0
    %v5517 = vadd.f32 %v5164, %v5516
    %v5518 = vpop.f32.mrb[0].mxu0
    %v5519 = vadd.f32 %v5166, %v5518
    %5520 = vmatprep.mubr.bf16.mxu0 %v4518
    %5521 = vmatmul.mubr.bf16.gmra.mrb[0].mxu0 %v4517
    %v5522 = vpop.f32.mrb[0].mxu0
    %v5523 = vadd.f32 %v5170, %v5522
    %v5524 = vpop.f32.mrb[0].mxu0
    %v5525 = vadd.f32 %v5172, %v5524
    %v5526 = vpop.f32.mrb[0].mxu0
    %v5527 = vadd.f32 %v5174, %v5526
    %v5528 = vpop.f32.mrb[0].mxu0
    %v5529 = vadd.f32 %v5176, %v5528
    %5530 = vmatprep.mubr.bf16.mxu0 %v4522
    %5531 = vmatmul.mubr.bf16.gmra.mrb[0].mxu0 %v4521
    %v5532 = vpop.f32.mrb[0].mxu0
    %v5533 = vadd.f32 %v5180, %v5532
    %v5534 = vpop.f32.mrb[0].mxu0
    %v5535 = vadd.f32 %v5182, %v5534
    %v5536 = vpop.f32.mrb[0].mxu0
    %v5537 = vadd.f32 %v5184, %v5536
    %v5538 = vpop.f32.mrb[0].mxu0
    %v5539 = vadd.f32 %v5186, %v5538
    %5540 = vmatprep.mubr.bf16.mxu0 %v4526
    %5541 = vmatmul.mubr.bf16.gmra.mrb[0].mxu0 %v4525
    %v5542 = vpop.f32.mrb[0].mxu0
    %v5543 = vadd.f32 %v5190, %v5542
    %v5544 = vpop.f32.mrb[0].mxu0
    %v5545 = vadd.f32 %v5192, %v5544
    %v5546 = vpop.f32.mrb[0].mxu0
    %v5547 = vadd.f32 %v5194, %v5546
    %v5548 = vpop.f32.mrb[0].mxu0
    %v5549 = vadd.f32 %v5196, %v5548
    %5550 = vmatprep.mubr.bf16.mxu0 %v4530
    %5551 = vmatmul.mubr.bf16.gmra.mrb[0].mxu0 %v4529
    %v5552 = vpop.f32.mrb[0].mxu0
    %v5553 = vadd.f32 %v5200, %v5552
    %v5554 = vpop.f32.mrb[0].mxu0
    %v5555 = vadd.f32 %v5202, %v5554
    %v5556 = vpop.f32.mrb[0].mxu0
    %v5557 = vadd.f32 %v5204, %v5556
    %v5558 = vpop.f32.mrb[0].mxu0
    %v5559 = vadd.f32 %v5206, %v5558
    %5560 = vmatprep.mubr.bf16.mxu0 %v4534
    %5561 = vmatmul.mubr.bf16.gmra.mrb[0].mxu0 %v4533
    %v5562 = vpop.f32.mrb[0].mxu0
    %v5563 = vadd.f32 %v5210, %v5562
    %v5564 = vpop.f32.mrb[0].mxu0
    %v5565 = vadd.f32 %v5212, %v5564
    %v5566 = vpop.f32.mrb[0].mxu0
    %v5567 = vadd.f32 %v5214, %v5566
    %v5568 = vpop.f32.mrb[0].mxu0
    %v5569 = vadd.f32 %v5216, %v5568
    %5570 = vmatprep.mubr.bf16.mxu0 %v4538
    %5571 = vmatmul.mubr.bf16.gmra.mrb[0].mxu0 %v4537
    %v5572 = vpop.f32.mrb[0].mxu0
    %v5573 = vadd.f32 %v5220, %v5572
    %v5574 = vpop.f32.mrb[0].mxu0
    %v5575 = vadd.f32 %v5222, %v5574
    %v5576 = vpop.f32.mrb[0].mxu0
    %v5577 = vadd.f32 %v5224, %v5576
    %v5578 = vpop.f32.mrb[0].mxu0
    %v5579 = vadd.f32 %v5226, %v5578
    %5580 = vmatprep.mubr.bf16.mxu0 %v4542
    %5581 = vmatmul.mubr.bf16.gmra.mrb[0].mxu0 %v4541
    %v5582 = vpop.f32.mrb[0].mxu0
    %v5583 = vadd.f32 %v5230, %v5582
    %v5584 = vpop.f32.mrb[0].mxu0
    %v5585 = vadd.f32 %v5232, %v5584
    %v5586 = vpop.f32.mrb[0].mxu0
    %v5587 = vadd.f32 %v5234, %v5586
    %v5588 = vpop.f32.mrb[0].mxu0
    %v5589 = vadd.f32 %v5236, %v5588
    %5590 = vmatprep.mubr.bf16.mxu0 %v4546
    %5591 = vmatmul.mubr.bf16.gmra.mrb[0].mxu0 %v4545
    %v5592 = vpop.f32.mrb[0].mxu0
    %v5593 = vadd.f32 %v5240, %v5592
    %v5594 = vpop.f32.mrb[0].mxu0
    %v5595 = vadd.f32 %v5242, %v5594
    %v5596 = vpop.f32.mrb[0].mxu0
    %v5597 = vadd.f32 %v5244, %v5596
    %v5598 = vpop.f32.mrb[0].mxu0
    %v5599 = vadd.f32 %v5246, %v5598
    %5600 = vmatprep.mubr.bf16.mxu0 %v4550
    %5601 = vmatmul.mubr.bf16.gmra.mrb[0].mxu0 %v4549
    %v5602 = vpop.f32.mrb[0].mxu0
    %v5603 = vadd.f32 %v5250, %v5602
    %v5604 = vpop.f32.mrb[0].mxu0
    %v5605 = vadd.f32 %v5252, %v5604
    %v5606 = vpop.f32.mrb[0].mxu0
    %v5607 = vadd.f32 %v5254, %v5606
    %v5608 = vpop.f32.mrb[0].mxu0
    %v5609 = vadd.f32 %v5256, %v5608
    %5610 = vmatprep.mubr.bf16.mxu0 %v4554
    %5611 = vmatmul.mubr.bf16.gmra.mrb[0].mxu0 %v4553
    %v5612 = vpop.f32.mrb[0].mxu0
    %v5613 = vadd.f32 %v5260, %v5612
    %v5614 = vpop.f32.mrb[0].mxu0
    %v5615 = vadd.f32 %v5262, %v5614
    %v5616 = vpop.f32.mrb[0].mxu0
    %v5617 = vadd.f32 %v5264, %v5616
    %v5618 = vpop.f32.mrb[0].mxu0
    %v5619 = vadd.f32 %v5266, %v5618
    %5620 = vmatprep.mubr.bf16.mxu0 %v4558
    %5621 = vmatmul.mubr.bf16.gmra.mrb[0].mxu0 %v4557
    %v5622 = vpop.f32.mrb[0].mxu0
    %v5623 = vadd.f32 %v5270, %v5622
    %v5624 = vpop.f32.mrb[0].mxu0
    %v5625 = vadd.f32 %v5272, %v5624
    %v5626 = vpop.f32.mrb[0].mxu0
    %v5627 = vadd.f32 %v5274, %v5626
    %v5628 = vpop.f32.mrb[0].mxu0
    %v5629 = vadd.f32 %v5276, %v5628
    %5630 = vmatprep.mubr.bf16.mxu0 %v4562
    %5631 = vmatmul.mubr.bf16.gmra.mrb[0].mxu0 %v4561
    %v5632 = vpop.f32.mrb[0].mxu0
    %v5633 = vadd.f32 %v5280, %v5632
    %v5634 = vpop.f32.mrb[0].mxu0
    %v5635 = vadd.f32 %v5282, %v5634
    %v5636 = vpop.f32.mrb[0].mxu0
    %v5637 = vadd.f32 %v5284, %v5636
    %v5638 = vpop.f32.mrb[0].mxu0
    %v5639 = vadd.f32 %v5286, %v5638
    %5640 = vmatprep.mubr.bf16.mxu0 %v4566
    %5641 = vmatmul.mubr.bf16.gmra.mrb[0].mxu0 %v4565
    %v5642 = vpop.f32.mrb[0].mxu0
    %v5643 = vadd.f32 %v5290, %v5642
    %v5644 = vpop.f32.mrb[0].mxu0
    %v5645 = vadd.f32 %v5292, %v5644
    %v5646 = vpop.f32.mrb[0].mxu0
    %v5647 = vadd.f32 %v5294, %v5646
    %v5648 = vpop.f32.mrb[0].mxu0
    %v5649 = vadd.f32 %v5296, %v5648
    %5650 = vmatprep.mubr.bf16.mxu0 %v4570
    %5651 = vmatmul.mubr.bf16.gmra.mrb[0].mxu0 %v4569
    %v5652 = vpop.f32.mrb[0].mxu0
    %v5653 = vadd.f32 %v5300, %v5652
    %v5654 = vpop.f32.mrb[0].mxu0
    %v5655 = vadd.f32 %v5302, %v5654
    %v5656 = vpop.f32.mrb[0].mxu0
    %v5657 = vadd.f32 %v5304, %v5656
    %v5658 = vpop.f32.mrb[0].mxu0
    %v5659 = vadd.f32 %v5306, %v5658
    %5660 = vmatprep.mubr.bf16.mxu0 %v4574
    %5661 = vmatmul.mubr.bf16.gmra.mrb[0].mxu0 %v4573
    %v5662 = vpop.f32.mrb[0].mxu0
    %v5663 = vadd.f32 %v5310, %v5662
    %v5664 = vpop.f32.mrb[0].mxu0
    %v5665 = vadd.f32 %v5312, %v5664
    %v5666 = vpop.f32.mrb[0].mxu0
    %v5667 = vadd.f32 %v5314, %v5666
    %v5668 = vpop.f32.mrb[0].mxu0
    %v5669 = vadd.f32 %v5316, %v5668
    %5670 = vmatprep.mubr.bf16.mxu0 %v4578
    %5671 = vmatmul.mubr.bf16.gmra.mrb[0].mxu0 %v4577
    %v5672 = vpop.f32.mrb[0].mxu0
    %v5673 = vadd.f32 %v5320, %v5672
    %v5674 = vpop.f32.mrb[0].mxu0
    %v5675 = vadd.f32 %v5322, %v5674
    %v5676 = vpop.f32.mrb[0].mxu0
    %v5677 = vadd.f32 %v5324, %v5676
    %v5678 = vpop.f32.mrb[0].mxu0
    %v5679 = vadd.f32 %v5326, %v5678
    %5680 = vdwg.mxu0
    %v5681 = vmul.f32 %v5363, 0.5
    %v5682 = vmul.f32 %v5365, 0.5
    %v5683 = vmul.f32 %v5367, 0.5
    %v5684 = vmul.f32 %v5369, 0.5
    %v5685 = vmul.f32 %v5373, 0.5
    %v5686 = vmul.f32 %v5375, 0.5
    %v5687 = vmul.f32 %v5377, 0.5
    %v5688 = vmul.f32 %v5379, 0.5
    %v5689 = vmul.f32 %v5383, 0.5
    %v5690 = vmul.f32 %v5385, 0.5
    %v5691 = vmul.f32 %v5387, 0.5
    %v5692 = vmul.f32 %v5389, 0.5
    %v5693 = vmul.f32 %v5393, 0.5
    %v5694 = vmul.f32 %v5395, 0.5
    %v5695 = vmul.f32 %v5397, 0.5
    %v5696 = vmul.f32 %v5399, 0.5
    %v5697 = vmul.f32 %v5403, 0.5
    %v5698 = vmul.f32 %v5405, 0.5
    %v5699 = vmul.f32 %v5407, 0.5
    %v5700 = vmul.f32 %v5409, 0.5
    %v5701 = vmul.f32 %v5413, 0.5
    %v5702 = vmul.f32 %v5415, 0.5
    %v5703 = vmul.f32 %v5417, 0.5
    %v5704 = vmul.f32 %v5419, 0.5
    %v5705 = vmul.f32 %v5423, 0.5
    %v5706 = vmul.f32 %v5425, 0.5
    %v5707 = vmul.f32 %v5427, 0.5
    %v5708 = vmul.f32 %v5429, 0.5
    %v5709 = vmul.f32 %v5433, 0.5
    %v5710 = vmul.f32 %v5435, 0.5
    %v5711 = vmul.f32 %v5437, 0.5
    %v5712 = vmul.f32 %v5439, 0.5
    %v5713 = vmul.f32 %v5443, 0.5
    %v5714 = vmul.f32 %v5445, 0.5
    %v5715 = vmul.f32 %v5447, 0.5
    %v5716 = vmul.f32 %v5449, 0.5
    %v5717 = vmul.f32 %v5453, 0.5
    %v5718 = vmul.f32 %v5455, 0.5
    %v5719 = vmul.f32 %v5457, 0.5
    %v5720 = vmul.f32 %v5459, 0.5
    %v5721 = vmul.f32 %v5463, 0.5
    %v5722 = vmul.f32 %v5465, 0.5
    %v5723 = vmul.f32 %v5467, 0.5
    %v5724 = vmul.f32 %v5469, 0.5
    %v5725 = vmul.f32 %v5473, 0.5
    %v5726 = vmul.f32 %v5475, 0.5
    %v5727 = vmul.f32 %v5477, 0.5
    %v5728 = vmul.f32 %v5479, 0.5
    %v5729 = vmul.f32 %v5483, 0.5
    %v5730 = vmul.f32 %v5485, 0.5
    %v5731 = vmul.f32 %v5487, 0.5
    %v5732 = vmul.f32 %v5489, 0.5
    %v5733 = vmul.f32 %v5493, 0.5
    %v5734 = vmul.f32 %v5495, 0.5
    %v5735 = vmul.f32 %v5497, 0.5
    %v5736 = vmul.f32 %v5499, 0.5
    %v5737 = vmul.f32 %v5503, 0.5
    %v5738 = vmul.f32 %v5505, 0.5
    %v5739 = vmul.f32 %v5507, 0.5
    %v5740 = vmul.f32 %v5509, 0.5
    %v5741 = vmul.f32 %v5513, 0.5
    %v5742 = vmul.f32 %v5515, 0.5
    %v5743 = vmul.f32 %v5517, 0.5
    %v5744 = vmul.f32 %v5519, 0.5
    %v5745 = vmul.f32 %v5523, 0.5
    %v5746 = vmul.f32 %v5525, 0.5
    %v5747 = vmul.f32 %v5527, 0.5
    %v5748 = vmul.f32 %v5529, 0.5
    %v5749 = vmul.f32 %v5533, 0.5
    %v5750 = vmul.f32 %v5535, 0.5
    %v5751 = vmul.f32 %v5537, 0.5
    %v5752 = vmul.f32 %v5539, 0.5
    %v5753 = vmul.f32 %v5543, 0.5
    %v5754 = vmul.f32 %v5545, 0.5
    %v5755 = vmul.f32 %v5547, 0.5
    %v5756 = vmul.f32 %v5549, 0.5
    %v5757 = vmul.f32 %v5553, 0.5
    %v5758 = vmul.f32 %v5555, 0.5
    %v5759 = vmul.f32 %v5557, 0.5
    %v5760 = vmul.f32 %v5559, 0.5
    %v5761 = vmul.f32 %v5563, 0.5
    %v5762 = vmul.f32 %v5565, 0.5
    %v5763 = vmul.f32 %v5567, 0.5
    %v5764 = vmul.f32 %v5569, 0.5
    %v5765 = vmul.f32 %v5573, 0.5
    %v5766 = vmul.f32 %v5575, 0.5
    %v5767 = vmul.f32 %v5577, 0.5
    %v5768 = vmul.f32 %v5579, 0.5
    %v5769 = vmul.f32 %v5583, 0.5
    %v5770 = vmul.f32 %v5585, 0.5
    %v5771 = vmul.f32 %v5587, 0.5
    %v5772 = vmul.f32 %v5589, 0.5
    %v5773 = vmul.f32 %v5593, 0.5
    %v5774 = vmul.f32 %v5595, 0.5
    %v5775 = vmul.f32 %v5597, 0.5
    %v5776 = vmul.f32 %v5599, 0.5
    %v5777 = vmul.f32 %v5603, 0.5
    %v5778 = vmul.f32 %v5605, 0.5
    %v5779 = vmul.f32 %v5607, 0.5
    %v5780 = vmul.f32 %v5609, 0.5
    %v5781 = vmul.f32 %v5613, 0.5
    %v5782 = vmul.f32 %v5615, 0.5
    %v5783 = vmul.f32 %v5617, 0.5
    %v5784 = vmul.f32 %v5619, 0.5
    %v5785 = vmul.f32 %v5623, 0.5
    %v5786 = vmul.f32 %v5625, 0.5
    %v5787 = vmul.f32 %v5627, 0.5
    %v5788 = vmul.f32 %v5629, 0.5
    %v5789 = vmul.f32 %v5633, 0.5
    %v5790 = vmul.f32 %v5635, 0.5
    %v5791 = vmul.f32 %v5637, 0.5
    %v5792 = vmul.f32 %v5639, 0.5
    %v5793 = vmul.f32 %v5643, 0.5
    %v5794 = vmul.f32 %v5645, 0.5
    %v5795 = vmul.f32 %v5647, 0.5
    %v5796 = vmul.f32 %v5649, 0.5
    %v5797 = vmul.f32 %v5653, 0.5
    %v5798 = vmul.f32 %v5655, 0.5
    %v5799 = vmul.f32 %v5657, 0.5
    %v5800 = vmul.f32 %v5659, 0.5
    %v5801 = vmul.f32 %v5663, 0.5
    %v5802 = vmul.f32 %v5665, 0.5
    %v5803 = vmul.f32 %v5667, 0.5
    %v5804 = vmul.f32 %v5669, 0.5
    %v5805 = vmul.f32 %v5673, 0.5
    %v5806 = vmul.f32 %v5675, 0.5
    %v5807 = vmul.f32 %v5677, 0.5
    %v5808 = vmul.f32 %v5679, 0.5
    %v5809 = vtanh.pop %v5681
    %v5810 = vtanh.pop %v5682
    %v5811 = vtanh.pop %v5683
    %v5812 = vtanh.pop %v5684
    %v5813 = vtanh.pop %v5685
    %v5814 = vtanh.pop %v5686
    %v5815 = vtanh.pop %v5687
    %v5816 = vtanh.pop %v5688
    %v5817 = vtanh.pop %v5689
    %v5818 = vtanh.pop %v5690
    %v5819 = vtanh.pop %v5691
    %v5820 = vtanh.pop %v5692
    %v5821 = vtanh.pop %v5693
    %v5822 = vtanh.pop %v5694
    %v5823 = vtanh.pop %v5695
    %v5824 = vtanh.pop %v5696
    %v5825 = vtanh.pop %v5697
    %v5826 = vtanh.pop %v5698
    %v5827 = vtanh.pop %v5699
    %v5828 = vtanh.pop %v5700
    %v5829 = vtanh.pop %v5701
    %v5830 = vtanh.pop %v5702
    %v5831 = vtanh.pop %v5703
    %v5832 = vtanh.pop %v5704
    %v5833 = vtanh.pop %v5705
    %v5834 = vtanh.pop %v5706
    %v5835 = vtanh.pop %v5707
    %v5836 = vtanh.pop %v5708
    %v5837 = vtanh.pop %v5709
    %v5838 = vtanh.pop %v5710
    %v5839 = vtanh.pop %v5711
    %v5840 = vtanh.pop %v5712
    %v5841 = vtanh.pop %v5713
    %v5842 = vtanh.pop %v5714
    %v5843 = vtanh.pop %v5715
    %v5844 = vtanh.pop %v5716
    %v5845 = vtanh.pop %v5717
    %v5846 = vtanh.pop %v5718
    %v5847 = vtanh.pop %v5719
    %v5848 = vtanh.pop %v5720
    %v5849 = vtanh.pop %v5721
    %v5850 = vtanh.pop %v5722
    %v5851 = vtanh.pop %v5723
    %v5852 = vtanh.pop %v5724
    %v5853 = vtanh.pop %v5725
    %v5854 = vtanh.pop %v5726
    %v5855 = vtanh.pop %v5727
    %v5856 = vtanh.pop %v5728
    %v5857 = vtanh.pop %v5729
    %v5858 = vtanh.pop %v5730
    %v5859 = vtanh.pop %v5731
    %v5860 = vtanh.pop %v5732
    %v5861 = vtanh.pop %v5733
    %v5862 = vtanh.pop %v5734
    %v5863 = vtanh.pop %v5735
    %v5864 = vtanh.pop %v5736
    %v5865 = vtanh.pop %v5737
    %v5866 = vtanh.pop %v5738
    %v5867 = vtanh.pop %v5739
    %v5868 = vtanh.pop %v5740
    %v5869 = vtanh.pop %v5741
    %v5870 = vtanh.pop %v5742
    %v5871 = vtanh.pop %v5743
    %v5872 = vtanh.pop %v5744
    %v5873 = vtanh.pop %v5745
    %v5874 = vtanh.pop %v5746
    %v5875 = vtanh.pop %v5747
    %v5876 = vtanh.pop %v5748
    %v5877 = vtanh.pop %v5749
    %v5878 = vtanh.pop %v5750
    %v5879 = vtanh.pop %v5751
    %v5880 = vtanh.pop %v5752
    %v5881 = vtanh.pop %v5753
    %v5882 = vtanh.pop %v5754
    %v5883 = vtanh.pop %v5755
    %v5884 = vtanh.pop %v5756
    %v5885 = vtanh.pop %v5757
    %v5886 = vtanh.pop %v5758
    %v5887 = vtanh.pop %v5759
    %v5888 = vtanh.pop %v5760
    %v5889 = vtanh.pop %v5761
    %v5890 = vtanh.pop %v5762
    %v5891 = vtanh.pop %v5763
    %v5892 = vtanh.pop %v5764
    %v5893 = vtanh.pop %v5765
    %v5894 = vtanh.pop %v5766
    %v5895 = vtanh.pop %v5767
    %v5896 = vtanh.pop %v5768
    %v5897 = vtanh.pop %v5769
    %v5898 = vtanh.pop %v5770
    %v5899 = vtanh.pop %v5771
    %v5900 = vtanh.pop %v5772
    %v5901 = vtanh.pop %v5773
    %v5902 = vtanh.pop %v5774
    %v5903 = vtanh.pop %v5775
    %v5904 = vtanh.pop %v5776
    %v5905 = vtanh.pop %v5777
    %v5906 = vtanh.pop %v5778
    %v5907 = vtanh.pop %v5779
    %v5908 = vtanh.pop %v5780
    %v5909 = vtanh.pop %v5781
    %v5910 = vtanh.pop %v5782
    %v5911 = vtanh.pop %v5783
    %v5912 = vtanh.pop %v5784
    %v5913 = vtanh.pop %v5785
    %v5914 = vtanh.pop %v5786
    %v5915 = vtanh.pop %v5787
    %v5916 = vtanh.pop %v5788
    %v5917 = vtanh.pop %v5789
    %v5918 = vtanh.pop %v5790
    %v5919 = vtanh.pop %v5791
    %v5920 = vtanh.pop %v5792
    %v5921 = vtanh.pop %v5793
    %v5922 = vtanh.pop %v5794
    %v5923 = vtanh.pop %v5795
    %v5924 = vtanh.pop %v5796
    %v5925 = vtanh.pop %v5797
    %v5926 = vtanh.pop %v5798
    %v5927 = vtanh.pop %v5799
    %v5928 = vtanh.pop %v5800
    %v5929 = vtanh.pop %v5801
    %v5930 = vtanh.pop %v5802
    %v5931 = vtanh.pop %v5803
    %v5932 = vtanh.pop %v5804
    %v5933 = vtanh.pop %v5805
    %v5934 = vtanh.pop %v5806
    %v5935 = vtanh.pop %v5807
    %v5936 = vtanh.pop %v5808
    %v5937 = vmul.f32 %v5809, 0.5
    %v5938 = vmul.f32 %v5810, 0.5
    %v5939 = vmul.f32 %v5811, 0.5
    %v5940 = vmul.f32 %v5812, 0.5
    %v5941 = vmul.f32 %v5813, 0.5
    %v5942 = vmul.f32 %v5814, 0.5
    %v5943 = vmul.f32 %v5815, 0.5
    %v5944 = vmul.f32 %v5816, 0.5
    %v5945 = vmul.f32 %v5817, 0.5
    %v5946 = vmul.f32 %v5818, 0.5
    %v5947 = vmul.f32 %v5819, 0.5
    %v5948 = vmul.f32 %v5820, 0.5
    %v5949 = vmul.f32 %v5821, 0.5
    %v5950 = vmul.f32 %v5822, 0.5
    %v5951 = vmul.f32 %v5823, 0.5
    %v5952 = vmul.f32 %v5824, 0.5
    %v5953 = vmul.f32 %v5825, 0.5
    %v5954 = vmul.f32 %v5826, 0.5
    %v5955 = vmul.f32 %v5827, 0.5
    %v5956 = vmul.f32 %v5828, 0.5
    %v5957 = vmul.f32 %v5829, 0.5
    %v5958 = vmul.f32 %v5830, 0.5
    %v5959 = vmul.f32 %v5831, 0.5
    %v5960 = vmul.f32 %v5832, 0.5
    %v5961 = vmul.f32 %v5833, 0.5
    %v5962 = vmul.f32 %v5834, 0.5
    %v5963 = vmul.f32 %v5835, 0.5
    %v5964 = vmul.f32 %v5836, 0.5
    %v5965 = vmul.f32 %v5837, 0.5
    %v5966 = vmul.f32 %v5838, 0.5
    %v5967 = vmul.f32 %v5839, 0.5
    %v5968 = vmul.f32 %v5840, 0.5
    %v5969 = vmul.f32 %v5841, 0.5
    %v5970 = vmul.f32 %v5842, 0.5
    %v5971 = vmul.f32 %v5843, 0.5
    %v5972 = vmul.f32 %v5844, 0.5
    %v5973 = vmul.f32 %v5845, 0.5
    %v5974 = vmul.f32 %v5846, 0.5
    %v5975 = vmul.f32 %v5847, 0.5
    %v5976 = vmul.f32 %v5848, 0.5
    %v5977 = vmul.f32 %v5849, 0.5
    %v5978 = vmul.f32 %v5850, 0.5
    %v5979 = vmul.f32 %v5851, 0.5
    %v5980 = vmul.f32 %v5852, 0.5
    %v5981 = vmul.f32 %v5853, 0.5
    %v5982 = vmul.f32 %v5854, 0.5
    %v5983 = vmul.f32 %v5855, 0.5
    %v5984 = vmul.f32 %v5856, 0.5
    %v5985 = vmul.f32 %v5857, 0.5
    %v5986 = vmul.f32 %v5858, 0.5
    %v5987 = vmul.f32 %v5859, 0.5
    %v5988 = vmul.f32 %v5860, 0.5
    %v5989 = vmul.f32 %v5861, 0.5
    %v5990 = vmul.f32 %v5862, 0.5
    %v5991 = vmul.f32 %v5863, 0.5
    %v5992 = vmul.f32 %v5864, 0.5
    %v5993 = vmul.f32 %v5865, 0.5
    %v5994 = vmul.f32 %v5866, 0.5
    %v5995 = vmul.f32 %v5867, 0.5
    %v5996 = vmul.f32 %v5868, 0.5
    %v5997 = vmul.f32 %v5869, 0.5
    %v5998 = vmul.f32 %v5870, 0.5
    %v5999 = vmul.f32 %v5871, 0.5
    %v6000 = vmul.f32 %v5872, 0.5
    %v6001 = vmul.f32 %v5873, 0.5
    %v6002 = vmul.f32 %v5874, 0.5
    %v6003 = vmul.f32 %v5875, 0.5
    %v6004 = vmul.f32 %v5876, 0.5
    %v6005 = vmul.f32 %v5877, 0.5
    %v6006 = vmul.f32 %v5878, 0.5
    %v6007 = vmul.f32 %v5879, 0.5
    %v6008 = vmul.f32 %v5880, 0.5
    %v6009 = vmul.f32 %v5881, 0.5
    %v6010 = vmul.f32 %v5882, 0.5
    %v6011 = vmul.f32 %v5883, 0.5
    %v6012 = vmul.f32 %v5884, 0.5
    %v6013 = vmul.f32 %v5885, 0.5
    %v6014 = vmul.f32 %v5886, 0.5
    %v6015 = vmul.f32 %v5887, 0.5
    %v6016 = vmul.f32 %v5888, 0.5
    %v6017 = vmul.f32 %v5889, 0.5
    %v6018 = vmul.f32 %v5890, 0.5
    %v6019 = vmul.f32 %v5891, 0.5
    %v6020 = vmul.f32 %v5892, 0.5
    %v6021 = vmul.f32 %v5893, 0.5
    %v6022 = vmul.f32 %v5894, 0.5
    %v6023 = vmul.f32 %v5895, 0.5
    %v6024 = vmul.f32 %v5896, 0.5
    %v6025 = vmul.f32 %v5897, 0.5
    %v6026 = vmul.f32 %v5898, 0.5
    %v6027 = vmul.f32 %v5899, 0.5
    %v6028 = vmul.f32 %v5900, 0.5
    %v6029 = vmul.f32 %v5901, 0.5
    %v6030 = vmul.f32 %v5902, 0.5
    %v6031 = vmul.f32 %v5903, 0.5
    %v6032 = vmul.f32 %v5904, 0.5
    %v6033 = vmul.f32 %v5905, 0.5
    %v6034 = vmul.f32 %v5906, 0.5
    %v6035 = vmul.f32 %v5907, 0.5
    %v6036 = vmul.f32 %v5908, 0.5
    %v6037 = vmul.f32 %v5909, 0.5
    %v6038 = vmul.f32 %v5910, 0.5
    %v6039 = vmul.f32 %v5911, 0.5
    %v6040 = vmul.f32 %v5912, 0.5
    %v6041 = vmul.f32 %v5913, 0.5
    %v6042 = vmul.f32 %v5914, 0.5
    %v6043 = vmul.f32 %v5915, 0.5
    %v6044 = vmul.f32 %v5916, 0.5
    %v6045 = vmul.f32 %v5917, 0.5
    %v6046 = vmul.f32 %v5918, 0.5
    %v6047 = vmul.f32 %v5919, 0.5
    %v6048 = vmul.f32 %v5920, 0.5
    %v6049 = vmul.f32 %v5921, 0.5
    %v6050 = vmul.f32 %v5922, 0.5
    %v6051 = vmul.f32 %v5923, 0.5
    %v6052 = vmul.f32 %v5924, 0.5
    %v6053 = vmul.f32 %v5925, 0.5
    %v6054 = vmul.f32 %v5926, 0.5
    %v6055 = vmul.f32 %v5927, 0.5
    %v6056 = vmul.f32 %v5928, 0.5
    %v6057 = vmul.f32 %v5929, 0.5
    %v6058 = vmul.f32 %v5930, 0.5
    %v6059 = vmul.f32 %v5931, 0.5
    %v6060 = vmul.f32 %v5932, 0.5
    %v6061 = vmul.f32 %v5933, 0.5
    %v6062 = vmul.f32 %v5934, 0.5
    %v6063 = vmul.f32 %v5935, 0.5
    %v6064 = vmul.f32 %v5936, 0.5
    %v6065 = vadd.f32 %v5937, 0.5
    %v6066 = vadd.f32 %v5938, 0.5
    %v6067 = vadd.f32 %v5939, 0.5
    %v6068 = vadd.f32 %v5940, 0.5
    %v6069 = vadd.f32 %v5941, 0.5
    %v6070 = vadd.f32 %v5942, 0.5
    %v6071 = vadd.f32 %v5943, 0.5
    %v6072 = vadd.f32 %v5944, 0.5
    %v6073 = vadd.f32 %v5945, 0.5
    %v6074 = vadd.f32 %v5946, 0.5
    %v6075 = vadd.f32 %v5947, 0.5
    %v6076 = vadd.f32 %v5948, 0.5
    %v6077 = vadd.f32 %v5949, 0.5
    %v6078 = vadd.f32 %v5950, 0.5
    %v6079 = vadd.f32 %v5951, 0.5
    %v6080 = vadd.f32 %v5952, 0.5
    %v6081 = vadd.f32 %v5953, 0.5
    %v6082 = vadd.f32 %v5954, 0.5
    %v6083 = vadd.f32 %v5955, 0.5
    %v6084 = vadd.f32 %v5956, 0.5
    %v6085 = vadd.f32 %v5957, 0.5
    %v6086 = vadd.f32 %v5958, 0.5
    %v6087 = vadd.f32 %v5959, 0.5
    %v6088 = vadd.f32 %v5960, 0.5
    %v6089 = vadd.f32 %v5961, 0.5
    %v6090 = vadd.f32 %v5962, 0.5
    %v6091 = vadd.f32 %v5963, 0.5
    %v6092 = vadd.f32 %v5964, 0.5
    %v6093 = vadd.f32 %v5965, 0.5
    %v6094 = vadd.f32 %v5966, 0.5
    %v6095 = vadd.f32 %v5967, 0.5
    %v6096 = vadd.f32 %v5968, 0.5
    %v6097 = vadd.f32 %v5969, 0.5
    %v6098 = vadd.f32 %v5970, 0.5
    %v6099 = vadd.f32 %v5971, 0.5
    %v6100 = vadd.f32 %v5972, 0.5
    %v6101 = vadd.f32 %v5973, 0.5
    %v6102 = vadd.f32 %v5974, 0.5
    %v6103 = vadd.f32 %v5975, 0.5
    %v6104 = vadd.f32 %v5976, 0.5
    %v6105 = vadd.f32 %v5977, 0.5
    %v6106 = vadd.f32 %v5978, 0.5
    %v6107 = vadd.f32 %v5979, 0.5
    %v6108 = vadd.f32 %v5980, 0.5
    %v6109 = vadd.f32 %v5981, 0.5
    %v6110 = vadd.f32 %v5982, 0.5
    %v6111 = vadd.f32 %v5983, 0.5
    %v6112 = vadd.f32 %v5984, 0.5
    %v6113 = vadd.f32 %v5985, 0.5
    %v6114 = vadd.f32 %v5986, 0.5
    %v6115 = vadd.f32 %v5987, 0.5
    %v6116 = vadd.f32 %v5988, 0.5
    %v6117 = vadd.f32 %v5989, 0.5
    %v6118 = vadd.f32 %v5990, 0.5
    %v6119 = vadd.f32 %v5991, 0.5
    %v6120 = vadd.f32 %v5992, 0.5
    %v6121 = vadd.f32 %v5993, 0.5
    %v6122 = vadd.f32 %v5994, 0.5
    %v6123 = vadd.f32 %v5995, 0.5
    %v6124 = vadd.f32 %v5996, 0.5
    %v6125 = vadd.f32 %v5997, 0.5
    %v6126 = vadd.f32 %v5998, 0.5
    %v6127 = vadd.f32 %v5999, 0.5
    %v6128 = vadd.f32 %v6000, 0.5
    %v6129 = vadd.f32 %v6001, 0.5
    %v6130 = vadd.f32 %v6002, 0.5
    %v6131 = vadd.f32 %v6003, 0.5
    %v6132 = vadd.f32 %v6004, 0.5
    %v6133 = vadd.f32 %v6005, 0.5
    %v6134 = vadd.f32 %v6006, 0.5
    %v6135 = vadd.f32 %v6007, 0.5
    %v6136 = vadd.f32 %v6008, 0.5
    %v6137 = vadd.f32 %v6009, 0.5
    %v6138 = vadd.f32 %v6010, 0.5
    %v6139 = vadd.f32 %v6011, 0.5
    %v6140 = vadd.f32 %v6012, 0.5
    %v6141 = vadd.f32 %v6013, 0.5
    %v6142 = vadd.f32 %v6014, 0.5
    %v6143 = vadd.f32 %v6015, 0.5
    %v6144 = vadd.f32 %v6016, 0.5
    %v6145 = vadd.f32 %v6017, 0.5
    %v6146 = vadd.f32 %v6018, 0.5
    %v6147 = vadd.f32 %v6019, 0.5
    %v6148 = vadd.f32 %v6020, 0.5
    %v6149 = vadd.f32 %v6021, 0.5
    %v6150 = vadd.f32 %v6022, 0.5
    %v6151 = vadd.f32 %v6023, 0.5
    %v6152 = vadd.f32 %v6024, 0.5
    %v6153 = vadd.f32 %v6025, 0.5
    %v6154 = vadd.f32 %v6026, 0.5
    %v6155 = vadd.f32 %v6027, 0.5
    %v6156 = vadd.f32 %v6028, 0.5
    %v6157 = vadd.f32 %v6029, 0.5
    %v6158 = vadd.f32 %v6030, 0.5
    %v6159 = vadd.f32 %v6031, 0.5
    %v6160 = vadd.f32 %v6032, 0.5
    %v6161 = vadd.f32 %v6033, 0.5
    %v6162 = vadd.f32 %v6034, 0.5
    %v6163 = vadd.f32 %v6035, 0.5
    %v6164 = vadd.f32 %v6036, 0.5
    %v6165 = vadd.f32 %v6037, 0.5
    %v6166 = vadd.f32 %v6038, 0.5
    %v6167 = vadd.f32 %v6039, 0.5
    %v6168 = vadd.f32 %v6040, 0.5
    %v6169 = vadd.f32 %v6041, 0.5
    %v6170 = vadd.f32 %v6042, 0.5
    %v6171 = vadd.f32 %v6043, 0.5
    %v6172 = vadd.f32 %v6044, 0.5
    %v6173 = vadd.f32 %v6045, 0.5
    %v6174 = vadd.f32 %v6046, 0.5
    %v6175 = vadd.f32 %v6047, 0.5
    %v6176 = vadd.f32 %v6048, 0.5
    %v6177 = vadd.f32 %v6049, 0.5
    %v6178 = vadd.f32 %v6050, 0.5
    %v6179 = vadd.f32 %v6051, 0.5
    %v6180 = vadd.f32 %v6052, 0.5
    %v6181 = vadd.f32 %v6053, 0.5
    %v6182 = vadd.f32 %v6054, 0.5
    %v6183 = vadd.f32 %v6055, 0.5
    %v6184 = vadd.f32 %v6056, 0.5
    %v6185 = vadd.f32 %v6057, 0.5
    %v6186 = vadd.f32 %v6058, 0.5
    %v6187 = vadd.f32 %v6059, 0.5
    %v6188 = vadd.f32 %v6060, 0.5
    %v6189 = vadd.f32 %v6061, 0.5
    %v6190 = vadd.f32 %v6062, 0.5
    %v6191 = vadd.f32 %v6063, 0.5
    %v6192 = vadd.f32 %v6064, 0.5
    %6193 = vst [vmem:[#allocation11] sm:$0xff] %v6065
    %6194 = vst [vmem:[#allocation11 + $0x8] sm:$0xff] %v6066
    %6195 = vst [vmem:[#allocation11 + $0x10] sm:$0xff] %v6067
    %6196 = vst [vmem:[#allocation11 + $0x18] sm:$0xff] %v6068
    %6197 = vst [vmem:[#allocation11 + $0x20] sm:$0xff] %v6069
    %6198 = vst [vmem:[#allocation11 + $0x28] sm:$0xff] %v6070
    %6199 = vst [vmem:[#allocation11 + $0x30] sm:$0xff] %v6071
    %6200 = vst [vmem:[#allocation11 + $0x38] sm:$0xff] %v6072
    %6201 = vst [vmem:[#allocation11 + $0x40] sm:$0xff] %v6073
    %6202 = vst [vmem:[#allocation11 + $0x48] sm:$0xff] %v6074
    %6203 = vst [vmem:[#allocation11 + $0x50] sm:$0xff] %v6075
    %6204 = vst [vmem:[#allocation11 + $0x58] sm:$0xff] %v6076
    %6205 = vst [vmem:[#allocation11 + $0x60] sm:$0xff] %v6077
    %6206 = vst [vmem:[#allocation11 + $0x68] sm:$0xff] %v6078
    %6207 = vst [vmem:[#allocation11 + $0x70] sm:$0xff] %v6079
    %6208 = vst [vmem:[#allocation11 + $0x78] sm:$0xff] %v6080
    %6209 = vst [vmem:[#allocation11 + $0x80] sm:$0xff] %v6081
    %6210 = vst [vmem:[#allocation11 + $0x88] sm:$0xff] %v6082
    %6211 = vst [vmem:[#allocation11 + $0x90] sm:$0xff] %v6083
    %6212 = vst [vmem:[#allocation11 + $0x98] sm:$0xff] %v6084
    %6213 = vst [vmem:[#allocation11 + $0xa0] sm:$0xff] %v6085
    %6214 = vst [vmem:[#allocation11 + $0xa8] sm:$0xff] %v6086
    %6215 = vst [vmem:[#allocation11 + $0xb0] sm:$0xff] %v6087
    %6216 = vst [vmem:[#allocation11 + $0xb8] sm:$0xff] %v6088
    %6217 = vst [vmem:[#allocation11 + $0xc0] sm:$0xff] %v6089
    %6218 = vst [vmem:[#allocation11 + $0xc8] sm:$0xff] %v6090
    %6219 = vst [vmem:[#allocation11 + $0xd0] sm:$0xff] %v6091
    %6220 = vst [vmem:[#allocation11 + $0xd8] sm:$0xff] %v6092
    %6221 = vst [vmem:[#allocation11 + $0xe0] sm:$0xff] %v6093
    %6222 = vst [vmem:[#allocation11 + $0xe8] sm:$0xff] %v6094
    %6223 = vst [vmem:[#allocation11 + $0xf0] sm:$0xff] %v6095
    %6224 = vst [vmem:[#allocation11 + $0xf8] sm:$0xff] %v6096
    %6225 = vst [vmem:[#allocation11 + $0x100] sm:$0xff] %v6097
    %6226 = vst [vmem:[#allocation11 + $0x108] sm:$0xff] %v6098
    %6227 = vst [vmem:[#allocation11 + $0x110] sm:$0xff] %v6099
    %6228 = vst [vmem:[#allocation11 + $0x118] sm:$0xff] %v6100
    %6229 = vst [vmem:[#allocation11 + $0x120] sm:$0xff] %v6101
    %6230 = vst [vmem:[#allocation11 + $0x128] sm:$0xff] %v6102
    %6231 = vst [vmem:[#allocation11 + $0x130] sm:$0xff] %v6103
    %6232 = vst [vmem:[#allocation11 + $0x138] sm:$0xff] %v6104
    %6233 = vst [vmem:[#allocation11 + $0x140] sm:$0xff] %v6105
    %6234 = vst [vmem:[#allocation11 + $0x148] sm:$0xff] %v6106
    %6235 = vst [vmem:[#allocation11 + $0x150] sm:$0xff] %v6107
    %6236 = vst [vmem:[#allocation11 + $0x158] sm:$0xff] %v6108
    %6237 = vst [vmem:[#allocation11 + $0x160] sm:$0xff] %v6109
    %6238 = vst [vmem:[#allocation11 + $0x168] sm:$0xff] %v6110
    %6239 = vst [vmem:[#allocation11 + $0x170] sm:$0xff] %v6111
    %6240 = vst [vmem:[#allocation11 + $0x178] sm:$0xff] %v6112
    %6241 = vst [vmem:[#allocation11 + $0x180] sm:$0xff] %v6113
    %6242 = vst [vmem:[#allocation11 + $0x188] sm:$0xff] %v6114
    %6243 = vst [vmem:[#allocation11 + $0x190] sm:$0xff] %v6115
    %6244 = vst [vmem:[#allocation11 + $0x198] sm:$0xff] %v6116
    %6245 = vst [vmem:[#allocation11 + $0x1a0] sm:$0xff] %v6117
    %6246 = vst [vmem:[#allocation11 + $0x1a8] sm:$0xff] %v6118
    %6247 = vst [vmem:[#allocation11 + $0x1b0] sm:$0xff] %v6119
    %6248 = vst [vmem:[#allocation11 + $0x1b8] sm:$0xff] %v6120
    %6249 = vst [vmem:[#allocation11 + $0x1c0] sm:$0xff] %v6121
    %6250 = vst [vmem:[#allocation11 + $0x1c8] sm:$0xff] %v6122
    %6251 = vst [vmem:[#allocation11 + $0x1d0] sm:$0xff] %v6123
    %6252 = vst [vmem:[#allocation11 + $0x1d8] sm:$0xff] %v6124
    %6253 = vst [vmem:[#allocation11 + $0x1e0] sm:$0xff] %v6125
    %6254 = vst [vmem:[#allocation11 + $0x1e8] sm:$0xff] %v6126
    %6255 = vst [vmem:[#allocation11 + $0x1f0] sm:$0xff] %v6127
    %6256 = vst [vmem:[#allocation11 + $0x1f8] sm:$0xff] %v6128
    %6257 = vst [vmem:[#allocation11 + $0x200] sm:$0xff] %v6129
    %6258 = vst [vmem:[#allocation11 + $0x208] sm:$0xff] %v6130
    %6259 = vst [vmem:[#allocation11 + $0x210] sm:$0xff] %v6131
    %6260 = vst [vmem:[#allocation11 + $0x218] sm:$0xff] %v6132
    %6261 = vst [vmem:[#allocation11 + $0x220] sm:$0xff] %v6133
    %6262 = vst [vmem:[#allocation11 + $0x228] sm:$0xff] %v6134
    %6263 = vst [vmem:[#allocation11 + $0x230] sm:$0xff] %v6135
    %6264 = vst [vmem:[#allocation11 + $0x238] sm:$0xff] %v6136
    %6265 = vst [vmem:[#allocation11 + $0x240] sm:$0xff] %v6137
    %6266 = vst [vmem:[#allocation11 + $0x248] sm:$0xff] %v6138
    %6267 = vst [vmem:[#allocation11 + $0x250] sm:$0xff] %v6139
    %6268 = vst [vmem:[#allocation11 + $0x258] sm:$0xff] %v6140
    %6269 = vst [vmem:[#allocation11 + $0x260] sm:$0xff] %v6141
    %6270 = vst [vmem:[#allocation11 + $0x268] sm:$0xff] %v6142
    %6271 = vst [vmem:[#allocation11 + $0x270] sm:$0xff] %v6143
    %6272 = vst [vmem:[#allocation11 + $0x278] sm:$0xff] %v6144
    %6273 = vst [vmem:[#allocation11 + $0x280] sm:$0xff] %v6145
    %6274 = vst [vmem:[#allocation11 + $0x288] sm:$0xff] %v6146
    %6275 = vst [vmem:[#allocation11 + $0x290] sm:$0xff] %v6147
    %6276 = vst [vmem:[#allocation11 + $0x298] sm:$0xff] %v6148
    %6277 = vst [vmem:[#allocation11 + $0x2a0] sm:$0xff] %v6149
    %6278 = vst [vmem:[#allocation11 + $0x2a8] sm:$0xff] %v6150
    %6279 = vst [vmem:[#allocation11 + $0x2b0] sm:$0xff] %v6151
    %6280 = vst [vmem:[#allocation11 + $0x2b8] sm:$0xff] %v6152
    %6281 = vst [vmem:[#allocation11 + $0x2c0] sm:$0xff] %v6153
    %6282 = vst [vmem:[#allocation11 + $0x2c8] sm:$0xff] %v6154
    %6283 = vst [vmem:[#allocation11 + $0x2d0] sm:$0xff] %v6155
    %6284 = vst [vmem:[#allocation11 + $0x2d8] sm:$0xff] %v6156
    %6285 = vst [vmem:[#allocation11 + $0x2e0] sm:$0xff] %v6157
    %6286 = vst [vmem:[#allocation11 + $0x2e8] sm:$0xff] %v6158
    %6287 = vst [vmem:[#allocation11 + $0x2f0] sm:$0xff] %v6159
    %6288 = vst [vmem:[#allocation11 + $0x2f8] sm:$0xff] %v6160
    %6289 = vst [vmem:[#allocation11 + $0x300] sm:$0xff] %v6161
    %6290 = vst [vmem:[#allocation11 + $0x308] sm:$0xff] %v6162
    %6291 = vst [vmem:[#allocation11 + $0x310] sm:$0xff] %v6163
    %6292 = vst [vmem:[#allocation11 + $0x318] sm:$0xff] %v6164
    %6293 = vst [vmem:[#allocation11 + $0x320] sm:$0xff] %v6165
    %6294 = vst [vmem:[#allocation11 + $0x328] sm:$0xff] %v6166
    %6295 = vst [vmem:[#allocation11 + $0x330] sm:$0xff] %v6167
    %6296 = vst [vmem:[#allocation11 + $0x338] sm:$0xff] %v6168
    %6297 = vst [vmem:[#allocation11 + $0x340] sm:$0xff] %v6169
    %6298 = vst [vmem:[#allocation11 + $0x348] sm:$0xff] %v6170
    %6299 = vst [vmem:[#allocation11 + $0x350] sm:$0xff] %v6171
    %6300 = vst [vmem:[#allocation11 + $0x358] sm:$0xff] %v6172
    %6301 = vst [vmem:[#allocation11 + $0x360] sm:$0xff] %v6173
    %6302 = vst [vmem:[#allocation11 + $0x368] sm:$0xff] %v6174
    %6303 = vst [vmem:[#allocation11 + $0x370] sm:$0xff] %v6175
    %6304 = vst [vmem:[#allocation11 + $0x378] sm:$0xff] %v6176
    %6305 = vst [vmem:[#allocation11 + $0x380] sm:$0xff] %v6177
    %6306 = vst [vmem:[#allocation11 + $0x388] sm:$0xff] %v6178
    %6307 = vst [vmem:[#allocation11 + $0x390] sm:$0xff] %v6179
    %6308 = vst [vmem:[#allocation11 + $0x398] sm:$0xff] %v6180
    %6309 = vst [vmem:[#allocation11 + $0x3a0] sm:$0xff] %v6181
    %6310 = vst [vmem:[#allocation11 + $0x3a8] sm:$0xff] %v6182
    %6311 = vst [vmem:[#allocation11 + $0x3b0] sm:$0xff] %v6183
    %6312 = vst [vmem:[#allocation11 + $0x3b8] sm:$0xff] %v6184
    %6313 = vst [vmem:[#allocation11 + $0x3c0] sm:$0xff] %v6185
    %6314 = vst [vmem:[#allocation11 + $0x3c8] sm:$0xff] %v6186
    %6315 = vst [vmem:[#allocation11 + $0x3d0] sm:$0xff] %v6187
    %6316 = vst [vmem:[#allocation11 + $0x3d8] sm:$0xff] %v6188
    %6317 = vst [vmem:[#allocation11 + $0x3e0] sm:$0xff] %v6189
    %6318 = vst [vmem:[#allocation11 + $0x3e8] sm:$0xff] %v6190
    %6319 = vst [vmem:[#allocation11 + $0x3f0] sm:$0xff] %v6191
    %6320 = vst [vmem:[#allocation11 + $0x3f8] sm:$0xff] %v6192
    // Predicated region
    $region58: #{tpu_custom_call.1} parent=1 // pred_check
      _
    $region59: #{tpu_custom_call.1} parent=1 // pred_check_branch
      %6322 = sbr.rel (0) target = $region61
    $region60: #{tpu_custom_call.1} parent=1 // pred_region
      %s6324 = ssub.s32 16384, 16384
      %6325 = vsyncadd [#allocation4], %s6324
      %s6326 = sshll.u32 [#allocation11], 4
      %s6327 = int_to_ptr.vmem [resolvable:$true] %s6326
      %6332 = dma.vmem_to_hbm [thread:$0]  %s6327, 16384, %s9, [#allocation4], 256, 256, 16
    $region61: #{tpu_custom_call.1} parent=1 // pred_fallthru
      _
    // Predicated region
    $region62: #{tpu_custom_call.1} parent=1 // pred_check
      _
    $region63: #{tpu_custom_call.1} parent=1 // pred_check_branch
      %6334 = sbr.rel (0) target = $region65
    $region64: #{tpu_custom_call.1} parent=1 // pred_region
      %6335 = dma.done [#allocation4], 16384
    $region65: #{tpu_custom_call.1} parent=1 // pred_fallthru
      _
    %6336 = vsyncpa [#allocation3], 1
    %6337 = vsyncpa [#allocation6], 1
    %6338 = vsyncpa [#allocation9], 1
    %6339 = vsyncpa [#allocation4], 1

</llo_original>
